<compile_context>
chip_gen: v7x
topology: tpu7x:2x2x1
jax: 0.10.0
libtpu: 0.0.40
codegen_flags: <defaults>
</compile_context>

<pallas_src>
import jax
import jax.numpy as jnp
from jax.experimental import pallas as pl
from jax.experimental.pallas import tpu as pltpu

# ----- model hyper-parameters (module defaults, emb_dim shrunk for a small test) -----
R_MAX = 5.0
NUM_BESSEL = 8
NUM_POLY_CUTOFF = 5
MAX_ELL = 2
NUM_LAYERS = 3
EMB_DIM = 32                        # module default is 64, kept small per instructions
IN_DIM = 1
SH_DIM = (MAX_ELL + 1) ** 2         # 9
NUM_PATHS = 5                       # 0ex0e->0e, 0ex1o->1o, 0ex2e->2e, 1ox0e->1o, 2ex0e->2e

# gate / skip tensor-product path of each SH component m (m-major, l(m) = 0,1,1,1,2,...)
_GATE_PATH = (0, 1, 1, 1, 2, 2, 2, 2, 2)
_SKIP_PATH = (-1, 3, 3, 3, 4, 4, 4, 4, 4)
_N1 = 1.0 / (2.0 ** 0.5)            # TODO(synk): crude path-count normalization stand-in
_N2 = 1.0 / (2.0 ** 0.5)
_NORM = (1.0, _N1, _N1, _N1, _N2, _N2, _N2, _N2, _N2)


# ============================ fused forward kernel ============================
def mace_fused_kernel(pos_ref, h0_ref, ee_ref, e2e_ref,
                      w1_ref, b1_ref, w2_ref, b2_ref,
                      wg_ref, ws_ref, rep_ref, mf_ref, out_ref):
    f32 = jnp.float32
    N = pos_ref.shape[1]
    C = out_ref.shape[2]
    D9 = h0_ref.shape[2]
    E = ee_ref.shape[0]

    pos = pos_ref[0]                                        # (N, 3)
    h = h0_ref[0]                                           # (N, 9C), higher-l cols pre-zeroed

    # ---- incidence one-hots built in-kernel from int32 edge indices ----
    # Convention (DiffDock-style TensorProductConvLayer): messages gather node features
    # at edge_index[1] and are scatter-summed onto edge_index[0].
    e0 = ee_ref[:, 0:1]                                     # (E, 1)  edge_index[0]
    e1 = ee_ref[:, 1:2]                                     # (E, 1)  edge_index[1]
    iota_en = jax.lax.broadcasted_iota(jnp.int32, (E, N), 1)
    g_e0 = (iota_en == e0).astype(f32)                      # (E, N): one-hot of edges[0]
    g_e1 = (iota_en == e1).astype(f32)                      # (E, N): one-hot of edges[1] (gather)
    iota_ne = jax.lax.broadcasted_iota(jnp.int32, (N, E), 0)
    scat = (iota_ne == e2e_ref[0:1, :]).astype(f32)         # (N, E): scatter-sum to edges[0]

    # ---- edge geometry: vectors, lengths, spherical harmonics (E on sublanes) ----
    vec = jnp.dot(g_e0 - g_e1, pos, preferred_element_type=f32)   # (E, 3) = pos[e0] - pos[e1]
    x = vec[:, 0:1]
    y = vec[:, 1:2]
    z = vec[:, 2:3]
    r = jnp.sqrt(x * x + y * y + z * z)                     # (E, 1) edge lengths
    inv_r = 1.0 / jnp.maximum(r, 1e-9)                      # guard zero-length edges
    ux, uy, uz = x * inv_r, y * inv_r, z * inv_r            # normalize=True

    # sh broadcast over its C channels -> (E, 9C) via lane-range masks (no concat/slices)
    lane = jax.lax.broadcasted_iota(jnp.int32, (1, D9), 1)

    def bm(m):
        return jnp.logical_and(lane >= m * C, lane < (m + 1) * C).astype(f32)

    s3 = 3.0 ** 0.5
    s5 = 5.0 ** 0.5
    s15 = 15.0 ** 0.5
    # real spherical harmonics l=0..2, 'component' normalization, e3nn-style (y,z,x) order
    # TODO(synk): exact e3nn component ordering / sign convention for l=2 not verified.
    sh_full = (bm(0)
               + bm(1) * (s3 * uy) + bm(2) * (s3 * uz) + bm(3) * (s3 * ux)
               + bm(4) * (s15 * ux * uy)
               + bm(5) * (s15 * uy * uz)
               + bm(6) * ((s5 / 2.0) * (3.0 * uz * uz - 1.0))
               + bm(7) * (s15 * ux * uz)
               + bm(8) * ((s15 / 2.0) * (ux * ux - uy * uy)))          # (E, 9C)

    # ---- RadialEmbeddingBlock: Bessel basis * polynomial cutoff ----
    nb = jax.lax.broadcasted_iota(jnp.int32, (1, NUM_BESSEL), 1).astype(f32) + 1.0
    arg = (jnp.pi / R_MAX) * r * nb                                    # (E, NB)
    bessel = (2.0 / R_MAX) ** 0.5 * jnp.sin(arg) * inv_r
    t = r / R_MAX
    p = float(NUM_POLY_CUTOFF)
    t2 = t * t
    t4 = t2 * t2
    t5 = t4 * t
    t6 = t5 * t
    t7 = t6 * t
    env = (1.0
           - (p + 1.0) * (p + 2.0) / 2.0 * t5
           + p * (p + 2.0) * t6
           - p * (p + 1.0) / 2.0 * t7)
    env = jnp.where(r < R_MAX, env, 0.0)
    rad = bessel * env                                                 # (E, NB)

    for layer in range(NUM_LAYERS):
        # --- gather neighbour feats via one-hot matmul (in-kernel, no HBM round trip) ---
        hd = jnp.dot(g_e1, h, preferred_element_type=f32)              # (E, 9C)

        # --- TensorProductConvLayer.fc : Linear -> ReLU -> Linear (per-edge TP weights) ---
        hid = jnp.maximum(
            jnp.dot(rad, w1_ref[layer], preferred_element_type=f32) + b1_ref[layer], 0.0)
        w = jnp.dot(hid, w2_ref[layer], preferred_element_type=f32) + b2_ref[layer]   # (E, 5C)

        # --- expand to full lane width with exact 0/1 selector matmuls (norm folded in) ---
        wg = jnp.dot(w, wg_ref[...], preferred_element_type=f32)      # (E, 9C) gate-path weight
        ws = jnp.dot(w, ws_ref[...], preferred_element_type=f32)      # (E, 9C) skip-path weight
        hd0f = jnp.dot(hd[:, 0:C], rep_ref[...],
                       preferred_element_type=f32)                    # (E, 9C) scalar chans repl.

        # --- channel-wise tensor product with edge SH: full-width FMAs, stays in registers ---
        msg = wg * sh_full * hd0f + ws * hd                           # (E, 9C)

        # --- scatter-sum aggregation (aggr='sum') as one MXU matmul ---
        agg = jnp.dot(scat, msg, preferred_element_type=f32)          # (N, 9C)

        # --- per-irrep channel mixing (block-diagonal) + residual self-connection ---
        h = jnp.dot(agg, mf_ref[layer], preferred_element_type=f32) + h

    out_ref[0] = h[:, 0:C]          # scalar_pred=True -> keep l=0 channels only


# ================================ parameters ================================
def _block_diag_mix(m_l):
    """(9C, 9C) block-diagonal mixing matrix from per-l (C, C) matrices, lane-major layout."""
    C = m_l.shape[-1]
    l_of_m = (0, 1, 1, 1, 2, 2, 2, 2, 2)
    mf = jnp.zeros((SH_DIM * C, SH_DIM * C), jnp.float32)
    for m, l in enumerate(l_of_m):
        mf = mf.at[m * C:(m + 1) * C, m * C:(m + 1) * C].set(m_l[l])
    return mf


def _path_selector(path_of_m, C):
    """(5C, 9C) exact 0/1 selector: block m gets norm[m] * I_C from its path's weight slot."""
    eye = jnp.eye(C, dtype=jnp.float32)
    cols = []
    for m in range(SH_DIM):
        col = jnp.zeros((NUM_PATHS * C, C), jnp.float32)
        pth = path_of_m[m]
        if pth >= 0:
            col = col.at[pth * C:(pth + 1) * C, :].set(_NORM[m] * eye)
        cols.append(col)
    return jnp.concatenate(cols, axis=1)


def init_params(key):
    C = EMB_DIM
    L = NUM_LAYERS
    keys = jax.random.split(key, 1 + 3 * L)
    emb = jax.random.normal(keys[0], (IN_DIM, C), jnp.float32)   # nn.Embedding(in_dim, emb_dim)
    W1 = jnp.stack([jax.random.normal(keys[1 + 3 * i], (NUM_BESSEL, C), jnp.float32)
                    / NUM_BESSEL ** 0.5 for i in range(L)])                  # (L, NB, C)
    W2 = jnp.stack([jax.random.normal(keys[2 + 3 * i], (C, NUM_PATHS * C), jnp.float32)
                    / C ** 0.5 for i in range(L)])                           # (L, C, 5C)
    M = [jax.random.normal(keys[3 + 3 * i], (3, C, C), jnp.float32) / C ** 0.5
         for i in range(L)]
    MF = jnp.stack([_block_diag_mix(M[i]) for i in range(L)])                # (L, 9C, 9C)
    b1 = jnp.zeros((L, 1, C), jnp.float32)
    b2 = jnp.zeros((L, 1, NUM_PATHS * C), jnp.float32)
    WG = _path_selector(_GATE_PATH, C)                                       # (5C, 9C)
    WS = _path_selector(_SKIP_PATH, C)                                       # (5C, 9C)
    REP = jnp.tile(jnp.eye(C, dtype=jnp.float32), (1, SH_DIM))               # (C, 9C)
    return dict(emb=emb, W1=W1, b1=b1, W2=W2, b2=b2, MF=MF, WG=WG, WS=WS, REP=REP)


# ================================ forward ================================
def mace_forward(params, atom_types, edges, positions):
    B, N = atom_types.shape
    C = EMB_DIM
    L = NUM_LAYERS
    D9 = SH_DIM * C
    E = edges.shape[0]

    ee = edges.astype(jnp.int32)                             # (E, 2)
    e2e = ee.T                                               # (2, E), mirrors `edges = edges.t()`
    h0 = params["emb"][atom_types]                           # (B, N, C) embedding lookup
    # initial node features: scalar block + zero higher-l blocks (padded outside the kernel)
    h0f = jnp.concatenate(
        [h0, jnp.zeros((B, N, (SH_DIM - 1) * C), jnp.float32)], axis=-1)     # (B, N, 9C)

    out = pl.pallas_call(
        mace_fused_kernel,
        out_shape=jax.ShapeDtypeStruct((B, N, C), jnp.float32),
        grid_spec=pltpu.PrefetchScalarGridSpec(
            num_scalar_prefetch=0,
            grid=(B,),
            in_specs=[
                pl.BlockSpec((1, N, 3), lambda b: (b, 0, 0)),                # positions
                pl.BlockSpec((1, N, D9), lambda b: (b, 0, 0)),               # padded init feats
                pl.BlockSpec((E, 2), lambda b: (0, 0)),                      # edge index (E, 2)
                pl.BlockSpec((2, E), lambda b: (0, 0)),                      # edge index (2, E)
                pl.BlockSpec((L, NUM_BESSEL, C), lambda b: (0, 0, 0)),       # W1
                pl.BlockSpec((L, 1, C), lambda b: (0, 0, 0)),                # b1
                pl.BlockSpec((L, C, NUM_PATHS * C), lambda b: (0, 0, 0)),    # W2
                pl.BlockSpec((L, 1, NUM_PATHS * C), lambda b: (0, 0, 0)),    # b2
                pl.BlockSpec((NUM_PATHS * C, D9), lambda b: (0, 0)),         # gate-path selector
                pl.BlockSpec((NUM_PATHS * C, D9), lambda b: (0, 0)),         # skip-path selector
                pl.BlockSpec((C, D9), lambda b: (0, 0)),                     # scalar replicator
                pl.BlockSpec((L, D9, D9), lambda b: (0, 0, 0)),              # block-diag mixing
            ],
            out_specs=pl.BlockSpec((1, N, C), lambda b: (b, 0, 0)),
        ),
        compiler_params=pltpu.CompilerParams(
            dimension_semantics=("parallel",)),   # batch items independent -> 2 TCs on v7x
    )(positions, h0f, ee, e2e,
      params["W1"], params["b1"], params["W2"], params["b2"],
      params["WG"], params["WS"], params["REP"], params["MF"])

    return out                                               # (B, N, C) == h[:, :, :emb_dim]


# ================================ main ================================
if __name__ == "__main__":
    key = jax.random.PRNGKey(0)
    k_pos, k_par = jax.random.split(key)

    B, N, E = 2, 8, 16
    atom_types = jnp.zeros((B, N), jnp.int32)                       # in_dim = 1 -> all type 0
    idx = jnp.arange(E, dtype=jnp.int32)
    src = idx % N
    dst = (src + 1 + idx // N) % N                                  # deterministic, no self-loops
    edges = jnp.stack([src, dst], axis=1)                           # (E, 2)
    positions = jax.random.normal(k_pos, (B, N, 3), jnp.float32)    # (B, N, 3)

    params = init_params(k_par)
    out = jax.jit(mace_forward)(params, atom_types, edges, positions)
    jax.block_until_ready(out)
    assert out.shape == (B, N, EMB_DIM) and out.dtype == jnp.float32
    assert bool(jnp.all(jnp.isfinite(out)))
    print("KERNEL_OK")
</pallas_src>

<mosaic_0001>
module attributes {stable_mosaic.version = 11 : i64} {
  func.func @mace_fused_kernel(%arg0: i32, %arg1: memref<1x8x3xf32, #tpu.memory_space<vmem>>, %arg2: memref<1x8x288xf32, #tpu.memory_space<vmem>>, %arg3: memref<16x2xi32, #tpu.memory_space<vmem>>, %arg4: memref<2x16xi32, #tpu.memory_space<vmem>>, %arg5: memref<3x8x32xf32, #tpu.memory_space<vmem>>, %arg6: memref<3x1x32xf32, #tpu.memory_space<vmem>>, %arg7: memref<3x32x160xf32, #tpu.memory_space<vmem>>, %arg8: memref<3x1x160xf32, #tpu.memory_space<vmem>>, %arg9: memref<160x288xf32, #tpu.memory_space<vmem>>, %arg10: memref<160x288xf32, #tpu.memory_space<vmem>>, %arg11: memref<32x288xf32, #tpu.memory_space<vmem>>, %arg12: memref<3x288x288xf32, #tpu.memory_space<vmem>>, %arg13: memref<1x8x32xf32, #tpu.memory_space<vmem>>) attributes {dimension_semantics = [#tpu.dimension_semantics<parallel>], iteration_bounds = array<i64: 2>, scalar_prefetch = 0 : i64, scratch_operands = 0 : i64, tpu.core_type = #tpu.core_type<tc>, window_params = [{transform_indices = @transform_0, window_bounds = array<i64: 1, 8, 3>}, {transform_indices = @transform_1, window_bounds = array<i64: 1, 8, 288>}, {pipeline_mode = #tpu.pipeline_mode<synchronous>, transform_indices = @transform_2, window_bounds = array<i64: 16, 2>}, {pipeline_mode = #tpu.pipeline_mode<synchronous>, transform_indices = @transform_3, window_bounds = array<i64: 2, 16>}, {pipeline_mode = #tpu.pipeline_mode<synchronous>, transform_indices = @transform_4, window_bounds = array<i64: 3, 8, 32>}, {pipeline_mode = #tpu.pipeline_mode<synchronous>, transform_indices = @transform_5, window_bounds = array<i64: 3, 1, 32>}, {pipeline_mode = #tpu.pipeline_mode<synchronous>, transform_indices = @transform_6, window_bounds = array<i64: 3, 32, 160>}, {pipeline_mode = #tpu.pipeline_mode<synchronous>, transform_indices = @transform_7, window_bounds = array<i64: 3, 1, 160>}, {pipeline_mode = #tpu.pipeline_mode<synchronous>, transform_indices = @transform_8, window_bounds = array<i64: 160, 288>}, {pipeline_mode = #tpu.pipeline_mode<synchronous>, transform_indices = @transform_9, window_bounds = array<i64: 160, 288>}, {pipeline_mode = #tpu.pipeline_mode<synchronous>, transform_indices = @transform_10, window_bounds = array<i64: 32, 288>}, {pipeline_mode = #tpu.pipeline_mode<synchronous>, transform_indices = @transform_11, window_bounds = array<i64: 3, 288, 288>}, {transform_indices = @transform_12, window_bounds = array<i64: 1, 8, 32>}]} {
    %c0 = arith.constant 0 : index
    %c0_0 = arith.constant 0 : index
    %c0_1 = arith.constant 0 : index
    %0 = vector.load %arg1[%c0, %c0_0, %c0_1] : memref<1x8x3xf32, #tpu.memory_space<vmem>>, vector<1x8x3xf32>
    %1 = vector.shape_cast %0 : vector<1x8x3xf32> to vector<8x3xf32>
    %c0_2 = arith.constant 0 : index
    %c0_3 = arith.constant 0 : index
    %c0_4 = arith.constant 0 : index
    %2 = vector.load %arg2[%c0_2, %c0_3, %c0_4] : memref<1x8x288xf32, #tpu.memory_space<vmem>>, vector<1x8x288xf32>
    %3 = vector.shape_cast %2 : vector<1x8x288xf32> to vector<8x288xf32>
    %c0_5 = arith.constant 0 : index
    %c0_6 = arith.constant 0 : index
    %4 = vector.load %arg3[%c0_5, %c0_6] : memref<16x2xi32, #tpu.memory_space<vmem>>, vector<16x1xi32>
    %c0_7 = arith.constant 0 : index
    %c1 = arith.constant 1 : index
    %5 = vector.load %arg3[%c0_7, %c1] : memref<16x2xi32, #tpu.memory_space<vmem>>, vector<16x1xi32>
    %6 = tpu.iota {dimensions = array<i32: 1>} : vector<16x8xi32>
    %7 = vector.broadcast %4 : vector<16x1xi32> to vector<16x8xi32>
    %8 = arith.cmpi eq, %6, %7 : vector<16x8xi32>
    %9 = arith.extui %8 : vector<16x8xi1> to vector<16x8xi32>
    %10 = arith.sitofp %9 : vector<16x8xi32> to vector<16x8xf32>
    %11 = vector.broadcast %5 : vector<16x1xi32> to vector<16x8xi32>
    %12 = arith.cmpi eq, %6, %11 : vector<16x8xi32>
    %13 = arith.extui %12 : vector<16x8xi1> to vector<16x8xi32>
    %14 = arith.sitofp %13 : vector<16x8xi32> to vector<16x8xf32>
    %15 = tpu.iota {dimensions = array<i32: 0>} : vector<8x16xi32>
    %c0_8 = arith.constant 0 : index
    %c0_9 = arith.constant 0 : index
    %16 = vector.load %arg4[%c0_8, %c0_9] : memref<2x16xi32, #tpu.memory_space<vmem>>, vector<1x16xi32>
    %17 = vector.broadcast %16 : vector<1x16xi32> to vector<8x16xi32>
    %18 = arith.cmpi eq, %15, %17 : vector<8x16xi32>
    %19 = arith.extui %18 : vector<8x16xi1> to vector<8x16xi32>
    %20 = arith.sitofp %19 : vector<8x16xi32> to vector<8x16xf32>
    %21 = arith.subf %10, %14 : vector<16x8xf32>
    %cst = arith.constant dense<0.000000e+00> : vector<16x3xf32>
    %22 = tpu.matmul %21, %1, %cst {dimension_numbers = #tpu.dot_dimension_numbers<[1], [0], [0], [1], [0, 0, 1, 1], [], []>} : vector<16x8xf32>, vector<8x3xf32>, vector<16x3xf32> -> vector<16x3xf32>
    %23 = vector.extract_strided_slice %22 {offsets = [0, 0], sizes = [16, 1], strides = [1, 1]} : vector<16x3xf32> to vector<16x1xf32>
    %24 = vector.extract_strided_slice %22 {offsets = [0, 1], sizes = [16, 1], strides = [1, 1]} : vector<16x3xf32> to vector<16x1xf32>
    %25 = vector.extract_strided_slice %22 {offsets = [0, 2], sizes = [16, 1], strides = [1, 1]} : vector<16x3xf32> to vector<16x1xf32>
    %26 = arith.mulf %23, %23 : vector<16x1xf32>
    %27 = arith.mulf %24, %24 : vector<16x1xf32>
    %28 = arith.addf %26, %27 : vector<16x1xf32>
    %29 = arith.mulf %25, %25 : vector<16x1xf32>
    %30 = arith.addf %28, %29 : vector<16x1xf32>
    %31 = math.sqrt %30 : vector<16x1xf32>
    %cst_10 = arith.constant 9.99999971E-10 : f32
    %32 = vector.broadcast %cst_10 : f32 to vector<16x1xf32>
    %33 = arith.maximumf %31, %32 : vector<16x1xf32>
    %cst_11 = arith.constant 1.000000e+00 : f32
    %34 = vector.broadcast %cst_11 : f32 to vector<16x1xf32>
    %35 = arith.divf %34, %33 : vector<16x1xf32>
    %36 = arith.mulf %23, %35 : vector<16x1xf32>
    %37 = arith.mulf %24, %35 : vector<16x1xf32>
    %38 = arith.mulf %25, %35 : vector<16x1xf32>
    %39 = tpu.iota {dimensions = array<i32: 1>} : vector<1x288xi32>
    %c0_i32 = arith.constant 0 : i32
    %40 = vector.broadcast %c0_i32 : i32 to vector<1x288xi32>
    %41 = arith.cmpi sge, %39, %40 : vector<1x288xi32>
    %c32_i32 = arith.constant 32 : i32
    %42 = vector.broadcast %c32_i32 : i32 to vector<1x288xi32>
    %43 = arith.cmpi slt, %39, %42 : vector<1x288xi32>
    %44 = arith.andi %41, %43 : vector<1x288xi1>
    %45 = arith.extui %44 : vector<1x288xi1> to vector<1x288xi32>
    %46 = arith.sitofp %45 : vector<1x288xi32> to vector<1x288xf32>
    %c32_i32_12 = arith.constant 32 : i32
    %47 = vector.broadcast %c32_i32_12 : i32 to vector<1x288xi32>
    %48 = arith.cmpi sge, %39, %47 : vector<1x288xi32>
    %c64_i32 = arith.constant 64 : i32
    %49 = vector.broadcast %c64_i32 : i32 to vector<1x288xi32>
    %50 = arith.cmpi slt, %39, %49 : vector<1x288xi32>
    %51 = arith.andi %48, %50 : vector<1x288xi1>
    %52 = arith.extui %51 : vector<1x288xi1> to vector<1x288xi32>
    %53 = arith.sitofp %52 : vector<1x288xi32> to vector<1x288xf32>
    %cst_13 = arith.constant 1.73205078 : f32
    %54 = vector.broadcast %cst_13 : f32 to vector<16x1xf32>
    %55 = arith.mulf %54, %37 : vector<16x1xf32>
    %56 = vector.broadcast %53 : vector<1x288xf32> to vector<16x288xf32>
    %57 = vector.broadcast %55 : vector<16x1xf32> to vector<16x288xf32>
    %58 = arith.mulf %56, %57 : vector<16x288xf32>
    %59 = vector.broadcast %46 : vector<1x288xf32> to vector<16x288xf32>
    %60 = arith.addf %59, %58 : vector<16x288xf32>
    %c64_i32_14 = arith.constant 64 : i32
    %61 = vector.broadcast %c64_i32_14 : i32 to vector<1x288xi32>
    %62 = arith.cmpi sge, %39, %61 : vector<1x288xi32>
    %c96_i32 = arith.constant 96 : i32
    %63 = vector.broadcast %c96_i32 : i32 to vector<1x288xi32>
    %64 = arith.cmpi slt, %39, %63 : vector<1x288xi32>
    %65 = arith.andi %62, %64 : vector<1x288xi1>
    %66 = arith.extui %65 : vector<1x288xi1> to vector<1x288xi32>
    %67 = arith.sitofp %66 : vector<1x288xi32> to vector<1x288xf32>
    %cst_15 = arith.constant 1.73205078 : f32
    %68 = vector.broadcast %cst_15 : f32 to vector<16x1xf32>
    %69 = arith.mulf %68, %38 : vector<16x1xf32>
    %70 = vector.broadcast %67 : vector<1x288xf32> to vector<16x288xf32>
    %71 = vector.broadcast %69 : vector<16x1xf32> to vector<16x288xf32>
    %72 = arith.mulf %70, %71 : vector<16x288xf32>
    %73 = arith.addf %60, %72 : vector<16x288xf32>
    %c96_i32_16 = arith.constant 96 : i32
    %74 = vector.broadcast %c96_i32_16 : i32 to vector<1x288xi32>
    %75 = arith.cmpi sge, %39, %74 : vector<1x288xi32>
    %c128_i32 = arith.constant 128 : i32
    %76 = vector.broadcast %c128_i32 : i32 to vector<1x288xi32>
    %77 = arith.cmpi slt, %39, %76 : vector<1x288xi32>
    %78 = arith.andi %75, %77 : vector<1x288xi1>
    %79 = arith.extui %78 : vector<1x288xi1> to vector<1x288xi32>
    %80 = arith.sitofp %79 : vector<1x288xi32> to vector<1x288xf32>
    %cst_17 = arith.constant 1.73205078 : f32
    %81 = vector.broadcast %cst_17 : f32 to vector<16x1xf32>
    %82 = arith.mulf %81, %36 : vector<16x1xf32>
    %83 = vector.broadcast %80 : vector<1x288xf32> to vector<16x288xf32>
    %84 = vector.broadcast %82 : vector<16x1xf32> to vector<16x288xf32>
    %85 = arith.mulf %83, %84 : vector<16x288xf32>
    %86 = arith.addf %73, %85 : vector<16x288xf32>
    %c128_i32_18 = arith.constant 128 : i32
    %87 = vector.broadcast %c128_i32_18 : i32 to vector<1x288xi32>
    %88 = arith.cmpi sge, %39, %87 : vector<1x288xi32>
    %c160_i32 = arith.constant 160 : i32
    %89 = vector.broadcast %c160_i32 : i32 to vector<1x288xi32>
    %90 = arith.cmpi slt, %39, %89 : vector<1x288xi32>
    %91 = arith.andi %88, %90 : vector<1x288xi1>
    %92 = arith.extui %91 : vector<1x288xi1> to vector<1x288xi32>
    %93 = arith.sitofp %92 : vector<1x288xi32> to vector<1x288xf32>
    %cst_19 = arith.constant 3.87298346 : f32
    %94 = vector.broadcast %cst_19 : f32 to vector<16x1xf32>
    %95 = arith.mulf %94, %36 : vector<16x1xf32>
    %96 = arith.mulf %95, %37 : vector<16x1xf32>
    %97 = vector.broadcast %93 : vector<1x288xf32> to vector<16x288xf32>
    %98 = vector.broadcast %96 : vector<16x1xf32> to vector<16x288xf32>
    %99 = arith.mulf %97, %98 : vector<16x288xf32>
    %100 = arith.addf %86, %99 : vector<16x288xf32>
    %c160_i32_20 = arith.constant 160 : i32
    %101 = vector.broadcast %c160_i32_20 : i32 to vector<1x288xi32>
    %102 = arith.cmpi sge, %39, %101 : vector<1x288xi32>
    %c192_i32 = arith.constant 192 : i32
    %103 = vector.broadcast %c192_i32 : i32 to vector<1x288xi32>
    %104 = arith.cmpi slt, %39, %103 : vector<1x288xi32>
    %105 = arith.andi %102, %104 : vector<1x288xi1>
    %106 = arith.extui %105 : vector<1x288xi1> to vector<1x288xi32>
    %107 = arith.sitofp %106 : vector<1x288xi32> to vector<1x288xf32>
    %cst_21 = arith.constant 3.87298346 : f32
    %108 = vector.broadcast %cst_21 : f32 to vector<16x1xf32>
    %109 = arith.mulf %108, %37 : vector<16x1xf32>
    %110 = arith.mulf %109, %38 : vector<16x1xf32>
    %111 = vector.broadcast %107 : vector<1x288xf32> to vector<16x288xf32>
    %112 = vector.broadcast %110 : vector<16x1xf32> to vector<16x288xf32>
    %113 = arith.mulf %111, %112 : vector<16x288xf32>
    %114 = arith.addf %100, %113 : vector<16x288xf32>
    %c192_i32_22 = arith.constant 192 : i32
    %115 = vector.broadcast %c192_i32_22 : i32 to vector<1x288xi32>
    %116 = arith.cmpi sge, %39, %115 : vector<1x288xi32>
    %c224_i32 = arith.constant 224 : i32
    %117 = vector.broadcast %c224_i32 : i32 to vector<1x288xi32>
    %118 = arith.cmpi slt, %39, %117 : vector<1x288xi32>
    %119 = arith.andi %116, %118 : vector<1x288xi1>
    %120 = arith.extui %119 : vector<1x288xi1> to vector<1x288xi32>
    %121 = arith.sitofp %120 : vector<1x288xi32> to vector<1x288xf32>
    %cst_23 = arith.constant 3.000000e+00 : f32
    %122 = vector.broadcast %cst_23 : f32 to vector<16x1xf32>
    %123 = arith.mulf %122, %38 : vector<16x1xf32>
    %124 = arith.mulf %123, %38 : vector<16x1xf32>
    %cst_24 = arith.constant 1.000000e+00 : f32
    %125 = vector.broadcast %cst_24 : f32 to vector<16x1xf32>
    %126 = arith.subf %124, %125 : vector<16x1xf32>
    %cst_25 = arith.constant 1.11803401 : f32
    %127 = vector.broadcast %cst_25 : f32 to vector<16x1xf32>
    %128 = arith.mulf %127, %126 : vector<16x1xf32>
    %129 = vector.broadcast %121 : vector<1x288xf32> to vector<16x288xf32>
    %130 = vector.broadcast %128 : vector<16x1xf32> to vector<16x288xf32>
    %131 = arith.mulf %129, %130 : vector<16x288xf32>
    %132 = arith.addf %114, %131 : vector<16x288xf32>
    %c224_i32_26 = arith.constant 224 : i32
    %133 = vector.broadcast %c224_i32_26 : i32 to vector<1x288xi32>
    %134 = arith.cmpi sge, %39, %133 : vector<1x288xi32>
    %c256_i32 = arith.constant 256 : i32
    %135 = vector.broadcast %c256_i32 : i32 to vector<1x288xi32>
    %136 = arith.cmpi slt, %39, %135 : vector<1x288xi32>
    %137 = arith.andi %134, %136 : vector<1x288xi1>
    %138 = arith.extui %137 : vector<1x288xi1> to vector<1x288xi32>
    %139 = arith.sitofp %138 : vector<1x288xi32> to vector<1x288xf32>
    %cst_27 = arith.constant 3.87298346 : f32
    %140 = vector.broadcast %cst_27 : f32 to vector<16x1xf32>
    %141 = arith.mulf %140, %36 : vector<16x1xf32>
    %142 = arith.mulf %141, %38 : vector<16x1xf32>
    %143 = vector.broadcast %139 : vector<1x288xf32> to vector<16x288xf32>
    %144 = vector.broadcast %142 : vector<16x1xf32> to vector<16x288xf32>
    %145 = arith.mulf %143, %144 : vector<16x288xf32>
    %146 = arith.addf %132, %145 : vector<16x288xf32>
    %c256_i32_28 = arith.constant 256 : i32
    %147 = vector.broadcast %c256_i32_28 : i32 to vector<1x288xi32>
    %148 = arith.cmpi sge, %39, %147 : vector<1x288xi32>
    %c288_i32 = arith.constant 288 : i32
    %149 = vector.broadcast %c288_i32 : i32 to vector<1x288xi32>
    %150 = arith.cmpi slt, %39, %149 : vector<1x288xi32>
    %151 = arith.andi %148, %150 : vector<1x288xi1>
    %152 = arith.extui %151 : vector<1x288xi1> to vector<1x288xi32>
    %153 = arith.sitofp %152 : vector<1x288xi32> to vector<1x288xf32>
    %154 = arith.mulf %36, %36 : vector<16x1xf32>
    %155 = arith.mulf %37, %37 : vector<16x1xf32>
    %156 = arith.subf %154, %155 : vector<16x1xf32>
    %cst_29 = arith.constant 1.93649173 : f32
    %157 = vector.broadcast %cst_29 : f32 to vector<16x1xf32>
    %158 = arith.mulf %157, %156 : vector<16x1xf32>
    %159 = vector.broadcast %153 : vector<1x288xf32> to vector<16x288xf32>
    %160 = vector.broadcast %158 : vector<16x1xf32> to vector<16x288xf32>
    %161 = arith.mulf %159, %160 : vector<16x288xf32>
    %162 = arith.addf %146, %161 : vector<16x288xf32>
    %163 = tpu.iota {dimensions = array<i32: 1>} : vector<1x8xi32>
    %164 = arith.sitofp %163 : vector<1x8xi32> to vector<1x8xf32>
    %cst_30 = arith.constant 1.000000e+00 : f32
    %165 = vector.broadcast %cst_30 : f32 to vector<1x8xf32>
    %166 = arith.addf %164, %165 : vector<1x8xf32>
    %cst_31 = arith.constant 0.628318548 : f32
    %167 = vector.broadcast %cst_31 : f32 to vector<16x1xf32>
    %168 = arith.mulf %167, %31 : vector<16x1xf32>
    %169 = vector.broadcast %168 : vector<16x1xf32> to vector<16x8xf32>
    %170 = vector.broadcast %166 : vector<1x8xf32> to vector<16x8xf32>
    %171 = arith.mulf %169, %170 : vector<16x8xf32>
    %172 = math.sin %171 : vector<16x8xf32>
    %cst_32 = arith.constant 0.632455527 : f32
    %173 = vector.broadcast %cst_32 : f32 to vector<16x8xf32>
    %174 = arith.mulf %173, %172 : vector<16x8xf32>
    %175 = vector.broadcast %35 : vector<16x1xf32> to vector<16x8xf32>
    %176 = arith.mulf %174, %175 : vector<16x8xf32>
    %cst_33 = arith.constant 5.000000e+00 : f32
    %177 = vector.broadcast %cst_33 : f32 to vector<16x1xf32>
    %178 = arith.divf %31, %177 : vector<16x1xf32>
    %179 = arith.mulf %178, %178 : vector<16x1xf32>
    %180 = arith.mulf %179, %179 : vector<16x1xf32>
    %181 = arith.mulf %180, %178 : vector<16x1xf32>
    %182 = arith.mulf %181, %178 : vector<16x1xf32>
    %183 = arith.mulf %182, %178 : vector<16x1xf32>
    %cst_34 = arith.constant 2.100000e+01 : f32
    %184 = vector.broadcast %cst_34 : f32 to vector<16x1xf32>
    %185 = arith.mulf %184, %181 : vector<16x1xf32>
    %cst_35 = arith.constant 1.000000e+00 : f32
    %186 = vector.broadcast %cst_35 : f32 to vector<16x1xf32>
    %187 = arith.subf %186, %185 : vector<16x1xf32>
    %cst_36 = arith.constant 3.500000e+01 : f32
    %188 = vector.broadcast %cst_36 : f32 to vector<16x1xf32>
    %189 = arith.mulf %188, %182 : vector<16x1xf32>
    %190 = arith.addf %187, %189 : vector<16x1xf32>
    %cst_37 = arith.constant 1.500000e+01 : f32
    %191 = vector.broadcast %cst_37 : f32 to vector<16x1xf32>
    %192 = arith.mulf %191, %183 : vector<16x1xf32>
    %193 = arith.subf %190, %192 : vector<16x1xf32>
    %cst_38 = arith.constant 5.000000e+00 : f32
    %194 = vector.broadcast %cst_38 : f32 to vector<16x1xf32>
    %195 = arith.cmpf olt, %31, %194 : vector<16x1xf32>
    %cst_39 = arith.constant 0.000000e+00 : f32
    %196 = vector.broadcast %cst_39 : f32 to vector<16x1xf32>
    %197 = arith.select %195, %193, %196 : vector<16x1xi1>, vector<16x1xf32>
    %198 = vector.broadcast %197 : vector<16x1xf32> to vector<16x8xf32>
    %199 = arith.mulf %176, %198 : vector<16x8xf32>
    %cst_40 = arith.constant dense<0.000000e+00> : vector<16x288xf32>
    %200 = tpu.matmul %14, %3, %cst_40 {dimension_numbers = #tpu.dot_dimension_numbers<[1], [0], [0], [1], [0, 0, 1, 1], [], []>} : vector<16x8xf32>, vector<8x288xf32>, vector<16x288xf32> -> vector<16x288xf32>
    %c0_41 = arith.constant 0 : index
    %c0_42 = arith.constant 0 : index
    %c0_43 = arith.constant 0 : index
    %201 = vector.load %arg5[%c0_41, %c0_42, %c0_43] : memref<3x8x32xf32, #tpu.memory_space<vmem>>, vector<1x8x32xf32>
    %202 = vector.shape_cast %201 : vector<1x8x32xf32> to vector<8x32xf32>
    %cst_44 = arith.constant dense<0.000000e+00> : vector<16x32xf32>
    %203 = tpu.matmul %199, %202, %cst_44 {dimension_numbers = #tpu.dot_dimension_numbers<[1], [0], [0], [1], [0, 0, 1, 1], [], []>} : vector<16x8xf32>, vector<8x32xf32>, vector<16x32xf32> -> vector<16x32xf32>
    %c0_45 = arith.constant 0 : index
    %c0_46 = arith.constant 0 : index
    %c0_47 = arith.constant 0 : index
    %204 = vector.load %arg6[%c0_45, %c0_46, %c0_47] : memref<3x1x32xf32, #tpu.memory_space<vmem>>, vector<1x1x32xf32>
    %205 = vector.shape_cast %204 : vector<1x1x32xf32> to vector<1x32xf32>
    %206 = vector.broadcast %205 : vector<1x32xf32> to vector<16x32xf32>
    %207 = arith.addf %203, %206 : vector<16x32xf32>
    %cst_48 = arith.constant 0.000000e+00 : f32
    %208 = vector.broadcast %cst_48 : f32 to vector<16x32xf32>
    %209 = arith.maximumf %207, %208 : vector<16x32xf32>
    %c0_49 = arith.constant 0 : index
    %c0_50 = arith.constant 0 : index
    %c0_51 = arith.constant 0 : index
    %210 = vector.load %arg7[%c0_49, %c0_50, %c0_51] : memref<3x32x160xf32, #tpu.memory_space<vmem>>, vector<1x32x160xf32>
    %211 = vector.shape_cast %210 : vector<1x32x160xf32> to vector<32x160xf32>
    %cst_52 = arith.constant dense<0.000000e+00> : vector<16x160xf32>
    %212 = tpu.matmul %209, %211, %cst_52 {dimension_numbers = #tpu.dot_dimension_numbers<[1], [0], [0], [1], [0, 0, 1, 1], [], []>} : vector<16x32xf32>, vector<32x160xf32>, vector<16x160xf32> -> vector<16x160xf32>
    %c0_53 = arith.constant 0 : index
    %c0_54 = arith.constant 0 : index
    %c0_55 = arith.constant 0 : index
    %213 = vector.load %arg8[%c0_53, %c0_54, %c0_55] : memref<3x1x160xf32, #tpu.memory_space<vmem>>, vector<1x1x160xf32>
    %214 = vector.shape_cast %213 : vector<1x1x160xf32> to vector<1x160xf32>
    %215 = vector.broadcast %214 : vector<1x160xf32> to vector<16x160xf32>
    %216 = arith.addf %212, %215 : vector<16x160xf32>
    %c0_56 = arith.constant 0 : index
    %c0_57 = arith.constant 0 : index
    %217 = vector.load %arg9[%c0_56, %c0_57] : memref<160x288xf32, #tpu.memory_space<vmem>>, vector<160x288xf32>
    %cst_58 = arith.constant dense<0.000000e+00> : vector<16x288xf32>
    %218 = tpu.matmul %216, %217, %cst_58 {dimension_numbers = #tpu.dot_dimension_numbers<[1], [0], [0], [1], [0, 0, 1, 1], [], []>} : vector<16x160xf32>, vector<160x288xf32>, vector<16x288xf32> -> vector<16x288xf32>
    %c0_59 = arith.constant 0 : index
    %c0_60 = arith.constant 0 : index
    %219 = vector.load %arg10[%c0_59, %c0_60] : memref<160x288xf32, #tpu.memory_space<vmem>>, vector<160x288xf32>
    %cst_61 = arith.constant dense<0.000000e+00> : vector<16x288xf32>
    %220 = tpu.matmul %216, %219, %cst_61 {dimension_numbers = #tpu.dot_dimension_numbers<[1], [0], [0], [1], [0, 0, 1, 1], [], []>} : vector<16x160xf32>, vector<160x288xf32>, vector<16x288xf32> -> vector<16x288xf32>
    %221 = vector.extract_strided_slice %200 {offsets = [0, 0], sizes = [16, 32], strides = [1, 1]} : vector<16x288xf32> to vector<16x32xf32>
    %c0_62 = arith.constant 0 : index
    %c0_63 = arith.constant 0 : index
    %222 = vector.load %arg11[%c0_62, %c0_63] : memref<32x288xf32, #tpu.memory_space<vmem>>, vector<32x288xf32>
    %cst_64 = arith.constant dense<0.000000e+00> : vector<16x288xf32>
    %223 = tpu.matmul %221, %222, %cst_64 {dimension_numbers = #tpu.dot_dimension_numbers<[1], [0], [0], [1], [0, 0, 1, 1], [], []>} : vector<16x32xf32>, vector<32x288xf32>, vector<16x288xf32> -> vector<16x288xf32>
    %224 = arith.mulf %218, %162 : vector<16x288xf32>
    %225 = arith.mulf %224, %223 : vector<16x288xf32>
    %226 = arith.mulf %220, %200 : vector<16x288xf32>
    %227 = arith.addf %225, %226 : vector<16x288xf32>
    %cst_65 = arith.constant dense<0.000000e+00> : vector<8x288xf32>
    %228 = tpu.matmul %20, %227, %cst_65 {dimension_numbers = #tpu.dot_dimension_numbers<[1], [0], [0], [1], [0, 0, 1, 1], [], []>} : vector<8x16xf32>, vector<16x288xf32>, vector<8x288xf32> -> vector<8x288xf32>
    %c0_66 = arith.constant 0 : index
    %c0_67 = arith.constant 0 : index
    %c0_68 = arith.constant 0 : index
    %229 = vector.load %arg12[%c0_66, %c0_67, %c0_68] : memref<3x288x288xf32, #tpu.memory_space<vmem>>, vector<1x288x288xf32>
    %230 = vector.shape_cast %229 : vector<1x288x288xf32> to vector<288x288xf32>
    %cst_69 = arith.constant dense<0.000000e+00> : vector<8x288xf32>
    %231 = tpu.matmul %228, %230, %cst_69 {dimension_numbers = #tpu.dot_dimension_numbers<[1], [0], [0], [1], [0, 0, 1, 1], [], []>} : vector<8x288xf32>, vector<288x288xf32>, vector<8x288xf32> -> vector<8x288xf32>
    %232 = arith.addf %231, %3 : vector<8x288xf32>
    %cst_70 = arith.constant dense<0.000000e+00> : vector<16x288xf32>
    %233 = tpu.matmul %14, %232, %cst_70 {dimension_numbers = #tpu.dot_dimension_numbers<[1], [0], [0], [1], [0, 0, 1, 1], [], []>} : vector<16x8xf32>, vector<8x288xf32>, vector<16x288xf32> -> vector<16x288xf32>
    %c1_71 = arith.constant 1 : index
    %c0_72 = arith.constant 0 : index
    %c0_73 = arith.constant 0 : index
    %234 = vector.load %arg5[%c1_71, %c0_72, %c0_73] : memref<3x8x32xf32, #tpu.memory_space<vmem>>, vector<1x8x32xf32>
    %235 = vector.shape_cast %234 : vector<1x8x32xf32> to vector<8x32xf32>
    %cst_74 = arith.constant dense<0.000000e+00> : vector<16x32xf32>
    %236 = tpu.matmul %199, %235, %cst_74 {dimension_numbers = #tpu.dot_dimension_numbers<[1], [0], [0], [1], [0, 0, 1, 1], [], []>} : vector<16x8xf32>, vector<8x32xf32>, vector<16x32xf32> -> vector<16x32xf32>
    %c1_75 = arith.constant 1 : index
    %c0_76 = arith.constant 0 : index
    %c0_77 = arith.constant 0 : index
    %237 = vector.load %arg6[%c1_75, %c0_76, %c0_77] : memref<3x1x32xf32, #tpu.memory_space<vmem>>, vector<1x1x32xf32>
    %238 = vector.shape_cast %237 : vector<1x1x32xf32> to vector<1x32xf32>
    %239 = vector.broadcast %238 : vector<1x32xf32> to vector<16x32xf32>
    %240 = arith.addf %236, %239 : vector<16x32xf32>
    %cst_78 = arith.constant 0.000000e+00 : f32
    %241 = vector.broadcast %cst_78 : f32 to vector<16x32xf32>
    %242 = arith.maximumf %240, %241 : vector<16x32xf32>
    %c1_79 = arith.constant 1 : index
    %c0_80 = arith.constant 0 : index
    %c0_81 = arith.constant 0 : index
    %243 = vector.load %arg7[%c1_79, %c0_80, %c0_81] : memref<3x32x160xf32, #tpu.memory_space<vmem>>, vector<1x32x160xf32>
    %244 = vector.shape_cast %243 : vector<1x32x160xf32> to vector<32x160xf32>
    %cst_82 = arith.constant dense<0.000000e+00> : vector<16x160xf32>
    %245 = tpu.matmul %242, %244, %cst_82 {dimension_numbers = #tpu.dot_dimension_numbers<[1], [0], [0], [1], [0, 0, 1, 1], [], []>} : vector<16x32xf32>, vector<32x160xf32>, vector<16x160xf32> -> vector<16x160xf32>
    %c1_83 = arith.constant 1 : index
    %c0_84 = arith.constant 0 : index
    %c0_85 = arith.constant 0 : index
    %246 = vector.load %arg8[%c1_83, %c0_84, %c0_85] : memref<3x1x160xf32, #tpu.memory_space<vmem>>, vector<1x1x160xf32>
    %247 = vector.shape_cast %246 : vector<1x1x160xf32> to vector<1x160xf32>
    %248 = vector.broadcast %247 : vector<1x160xf32> to vector<16x160xf32>
    %249 = arith.addf %245, %248 : vector<16x160xf32>
    %c0_86 = arith.constant 0 : index
    %c0_87 = arith.constant 0 : index
    %250 = vector.load %arg9[%c0_86, %c0_87] : memref<160x288xf32, #tpu.memory_space<vmem>>, vector<160x288xf32>
    %cst_88 = arith.constant dense<0.000000e+00> : vector<16x288xf32>
    %251 = tpu.matmul %249, %250, %cst_88 {dimension_numbers = #tpu.dot_dimension_numbers<[1], [0], [0], [1], [0, 0, 1, 1], [], []>} : vector<16x160xf32>, vector<160x288xf32>, vector<16x288xf32> -> vector<16x288xf32>
    %c0_89 = arith.constant 0 : index
    %c0_90 = arith.constant 0 : index
    %252 = vector.load %arg10[%c0_89, %c0_90] : memref<160x288xf32, #tpu.memory_space<vmem>>, vector<160x288xf32>
    %cst_91 = arith.constant dense<0.000000e+00> : vector<16x288xf32>
    %253 = tpu.matmul %249, %252, %cst_91 {dimension_numbers = #tpu.dot_dimension_numbers<[1], [0], [0], [1], [0, 0, 1, 1], [], []>} : vector<16x160xf32>, vector<160x288xf32>, vector<16x288xf32> -> vector<16x288xf32>
    %254 = vector.extract_strided_slice %233 {offsets = [0, 0], sizes = [16, 32], strides = [1, 1]} : vector<16x288xf32> to vector<16x32xf32>
    %c0_92 = arith.constant 0 : index
    %c0_93 = arith.constant 0 : index
    %255 = vector.load %arg11[%c0_92, %c0_93] : memref<32x288xf32, #tpu.memory_space<vmem>>, vector<32x288xf32>
    %cst_94 = arith.constant dense<0.000000e+00> : vector<16x288xf32>
    %256 = tpu.matmul %254, %255, %cst_94 {dimension_numbers = #tpu.dot_dimension_numbers<[1], [0], [0], [1], [0, 0, 1, 1], [], []>} : vector<16x32xf32>, vector<32x288xf32>, vector<16x288xf32> -> vector<16x288xf32>
    %257 = arith.mulf %251, %162 : vector<16x288xf32>
    %258 = arith.mulf %257, %256 : vector<16x288xf32>
    %259 = arith.mulf %253, %233 : vector<16x288xf32>
    %260 = arith.addf %258, %259 : vector<16x288xf32>
    %cst_95 = arith.constant dense<0.000000e+00> : vector<8x288xf32>
    %261 = tpu.matmul %20, %260, %cst_95 {dimension_numbers = #tpu.dot_dimension_numbers<[1], [0], [0], [1], [0, 0, 1, 1], [], []>} : vector<8x16xf32>, vector<16x288xf32>, vector<8x288xf32> -> vector<8x288xf32>
    %c1_96 = arith.constant 1 : index
    %c0_97 = arith.constant 0 : index
    %c0_98 = arith.constant 0 : index
    %262 = vector.load %arg12[%c1_96, %c0_97, %c0_98] : memref<3x288x288xf32, #tpu.memory_space<vmem>>, vector<1x288x288xf32>
    %263 = vector.shape_cast %262 : vector<1x288x288xf32> to vector<288x288xf32>
    %cst_99 = arith.constant dense<0.000000e+00> : vector<8x288xf32>
    %264 = tpu.matmul %261, %263, %cst_99 {dimension_numbers = #tpu.dot_dimension_numbers<[1], [0], [0], [1], [0, 0, 1, 1], [], []>} : vector<8x288xf32>, vector<288x288xf32>, vector<8x288xf32> -> vector<8x288xf32>
    %265 = arith.addf %264, %232 : vector<8x288xf32>
    %cst_100 = arith.constant dense<0.000000e+00> : vector<16x288xf32>
    %266 = tpu.matmul %14, %265, %cst_100 {dimension_numbers = #tpu.dot_dimension_numbers<[1], [0], [0], [1], [0, 0, 1, 1], [], []>} : vector<16x8xf32>, vector<8x288xf32>, vector<16x288xf32> -> vector<16x288xf32>
    %c2 = arith.constant 2 : index
    %c0_101 = arith.constant 0 : index
    %c0_102 = arith.constant 0 : index
    %267 = vector.load %arg5[%c2, %c0_101, %c0_102] : memref<3x8x32xf32, #tpu.memory_space<vmem>>, vector<1x8x32xf32>
    %268 = vector.shape_cast %267 : vector<1x8x32xf32> to vector<8x32xf32>
    %cst_103 = arith.constant dense<0.000000e+00> : vector<16x32xf32>
    %269 = tpu.matmul %199, %268, %cst_103 {dimension_numbers = #tpu.dot_dimension_numbers<[1], [0], [0], [1], [0, 0, 1, 1], [], []>} : vector<16x8xf32>, vector<8x32xf32>, vector<16x32xf32> -> vector<16x32xf32>
    %c2_104 = arith.constant 2 : index
    %c0_105 = arith.constant 0 : index
    %c0_106 = arith.constant 0 : index
    %270 = vector.load %arg6[%c2_104, %c0_105, %c0_106] : memref<3x1x32xf32, #tpu.memory_space<vmem>>, vector<1x1x32xf32>
    %271 = vector.shape_cast %270 : vector<1x1x32xf32> to vector<1x32xf32>
    %272 = vector.broadcast %271 : vector<1x32xf32> to vector<16x32xf32>
    %273 = arith.addf %269, %272 : vector<16x32xf32>
    %cst_107 = arith.constant 0.000000e+00 : f32
    %274 = vector.broadcast %cst_107 : f32 to vector<16x32xf32>
    %275 = arith.maximumf %273, %274 : vector<16x32xf32>
    %c2_108 = arith.constant 2 : index
    %c0_109 = arith.constant 0 : index
    %c0_110 = arith.constant 0 : index
    %276 = vector.load %arg7[%c2_108, %c0_109, %c0_110] : memref<3x32x160xf32, #tpu.memory_space<vmem>>, vector<1x32x160xf32>
    %277 = vector.shape_cast %276 : vector<1x32x160xf32> to vector<32x160xf32>
    %cst_111 = arith.constant dense<0.000000e+00> : vector<16x160xf32>
    %278 = tpu.matmul %275, %277, %cst_111 {dimension_numbers = #tpu.dot_dimension_numbers<[1], [0], [0], [1], [0, 0, 1, 1], [], []>} : vector<16x32xf32>, vector<32x160xf32>, vector<16x160xf32> -> vector<16x160xf32>
    %c2_112 = arith.constant 2 : index
    %c0_113 = arith.constant 0 : index
    %c0_114 = arith.constant 0 : index
    %279 = vector.load %arg8[%c2_112, %c0_113, %c0_114] : memref<3x1x160xf32, #tpu.memory_space<vmem>>, vector<1x1x160xf32>
    %280 = vector.shape_cast %279 : vector<1x1x160xf32> to vector<1x160xf32>
    %281 = vector.broadcast %280 : vector<1x160xf32> to vector<16x160xf32>
    %282 = arith.addf %278, %281 : vector<16x160xf32>
    %c0_115 = arith.constant 0 : index
    %c0_116 = arith.constant 0 : index
    %283 = vector.load %arg9[%c0_115, %c0_116] : memref<160x288xf32, #tpu.memory_space<vmem>>, vector<160x288xf32>
    %cst_117 = arith.constant dense<0.000000e+00> : vector<16x288xf32>
    %284 = tpu.matmul %282, %283, %cst_117 {dimension_numbers = #tpu.dot_dimension_numbers<[1], [0], [0], [1], [0, 0, 1, 1], [], []>} : vector<16x160xf32>, vector<160x288xf32>, vector<16x288xf32> -> vector<16x288xf32>
    %c0_118 = arith.constant 0 : index
    %c0_119 = arith.constant 0 : index
    %285 = vector.load %arg10[%c0_118, %c0_119] : memref<160x288xf32, #tpu.memory_space<vmem>>, vector<160x288xf32>
    %cst_120 = arith.constant dense<0.000000e+00> : vector<16x288xf32>
    %286 = tpu.matmul %282, %285, %cst_120 {dimension_numbers = #tpu.dot_dimension_numbers<[1], [0], [0], [1], [0, 0, 1, 1], [], []>} : vector<16x160xf32>, vector<160x288xf32>, vector<16x288xf32> -> vector<16x288xf32>
    %287 = vector.extract_strided_slice %266 {offsets = [0, 0], sizes = [16, 32], strides = [1, 1]} : vector<16x288xf32> to vector<16x32xf32>
    %c0_121 = arith.constant 0 : index
    %c0_122 = arith.constant 0 : index
    %288 = vector.load %arg11[%c0_121, %c0_122] : memref<32x288xf32, #tpu.memory_space<vmem>>, vector<32x288xf32>
    %cst_123 = arith.constant dense<0.000000e+00> : vector<16x288xf32>
    %289 = tpu.matmul %287, %288, %cst_123 {dimension_numbers = #tpu.dot_dimension_numbers<[1], [0], [0], [1], [0, 0, 1, 1], [], []>} : vector<16x32xf32>, vector<32x288xf32>, vector<16x288xf32> -> vector<16x288xf32>
    %290 = arith.mulf %284, %162 : vector<16x288xf32>
    %291 = arith.mulf %290, %289 : vector<16x288xf32>
    %292 = arith.mulf %286, %266 : vector<16x288xf32>
    %293 = arith.addf %291, %292 : vector<16x288xf32>
    %cst_124 = arith.constant dense<0.000000e+00> : vector<8x288xf32>
    %294 = tpu.matmul %20, %293, %cst_124 {dimension_numbers = #tpu.dot_dimension_numbers<[1], [0], [0], [1], [0, 0, 1, 1], [], []>} : vector<8x16xf32>, vector<16x288xf32>, vector<8x288xf32> -> vector<8x288xf32>
    %c2_125 = arith.constant 2 : index
    %c0_126 = arith.constant 0 : index
    %c0_127 = arith.constant 0 : index
    %295 = vector.load %arg12[%c2_125, %c0_126, %c0_127] : memref<3x288x288xf32, #tpu.memory_space<vmem>>, vector<1x288x288xf32>
    %296 = vector.shape_cast %295 : vector<1x288x288xf32> to vector<288x288xf32>
    %cst_128 = arith.constant dense<0.000000e+00> : vector<8x288xf32>
    %297 = tpu.matmul %294, %296, %cst_128 {dimension_numbers = #tpu.dot_dimension_numbers<[1], [0], [0], [1], [0, 0, 1, 1], [], []>} : vector<8x288xf32>, vector<288x288xf32>, vector<8x288xf32> -> vector<8x288xf32>
    %298 = arith.addf %297, %265 : vector<8x288xf32>
    %299 = vector.extract_strided_slice %298 {offsets = [0, 0], sizes = [8, 32], strides = [1, 1]} : vector<8x288xf32> to vector<8x32xf32>
    %c0_129 = arith.constant 0 : index
    %c0_130 = arith.constant 0 : index
    %c0_131 = arith.constant 0 : index
    %300 = vector.load %arg13[%c0_129, %c0_130, %c0_131] : memref<1x8x32xf32, #tpu.memory_space<vmem>>, vector<1x8x32xf32>
    %301 = vector.shape_cast %300 : vector<1x8x32xf32> to vector<8x32xf32>
    %302 = vector.shape_cast %299 : vector<8x32xf32> to vector<1x8x32xf32>
    tpu.vector_store %arg13[%c0_129, %c0_130, %c0_131], %302 {strides = array<i32>} : memref<1x8x32xf32, #tpu.memory_space<vmem>>, vector<1x8x32xf32>,
    return
  }
  func.func @transform_0(%arg0: i32) -> (i32, i32, i32) {
    %c0_i32 = arith.constant 0 : i32
    %c0_i32_0 = arith.constant 0 : i32
    %c0_i32_1 = arith.constant 0 : i32
    return %arg0, %c0_i32, %c0_i32_0 : i32, i32, i32
  }
  func.func @transform_1(%arg0: i32) -> (i32, i32, i32) {
    %c0_i32 = arith.constant 0 : i32
    %c0_i32_0 = arith.constant 0 : i32
    %c0_i32_1 = arith.constant 0 : i32
    return %arg0, %c0_i32, %c0_i32_0 : i32, i32, i32
  }
  func.func @transform_2(%arg0: i32) -> (i32, i32) {
    %c0_i32 = arith.constant 0 : i32
    %c0_i32_0 = arith.constant 0 : i32
    %c0_i32_1 = arith.constant 0 : i32
    return %c0_i32, %c0_i32_0 : i32, i32
  }
  func.func @transform_3(%arg0: i32) -> (i32, i32) {
    %c0_i32 = arith.constant 0 : i32
    %c0_i32_0 = arith.constant 0 : i32
    %c0_i32_1 = arith.constant 0 : i32
    return %c0_i32, %c0_i32_0 : i32, i32
  }
  func.func @transform_4(%arg0: i32) -> (i32, i32, i32) {
    %c0_i32 = arith.constant 0 : i32
    %c0_i32_0 = arith.constant 0 : i32
    %c0_i32_1 = arith.constant 0 : i32
    %c0_i32_2 = arith.constant 0 : i32
    return %c0_i32, %c0_i32_0, %c0_i32_1 : i32, i32, i32
  }
  func.func @transform_5(%arg0: i32) -> (i32, i32, i32) {
    %c0_i32 = arith.constant 0 : i32
    %c0_i32_0 = arith.constant 0 : i32
    %c0_i32_1 = arith.constant 0 : i32
    %c0_i32_2 = arith.constant 0 : i32
    return %c0_i32, %c0_i32_0, %c0_i32_1 : i32, i32, i32
  }
  func.func @transform_6(%arg0: i32) -> (i32, i32, i32) {
    %c0_i32 = arith.constant 0 : i32
    %c0_i32_0 = arith.constant 0 : i32
    %c0_i32_1 = arith.constant 0 : i32
    %c0_i32_2 = arith.constant 0 : i32
    return %c0_i32, %c0_i32_0, %c0_i32_1 : i32, i32, i32
  }
  func.func @transform_7(%arg0: i32) -> (i32, i32, i32) {
    %c0_i32 = arith.constant 0 : i32
    %c0_i32_0 = arith.constant 0 : i32
    %c0_i32_1 = arith.constant 0 : i32
    %c0_i32_2 = arith.constant 0 : i32
    return %c0_i32, %c0_i32_0, %c0_i32_1 : i32, i32, i32
  }
  func.func @transform_8(%arg0: i32) -> (i32, i32) {
    %c0_i32 = arith.constant 0 : i32
    %c0_i32_0 = arith.constant 0 : i32
    %c0_i32_1 = arith.constant 0 : i32
    return %c0_i32, %c0_i32_0 : i32, i32
  }
  func.func @transform_9(%arg0: i32) -> (i32, i32) {
    %c0_i32 = arith.constant 0 : i32
    %c0_i32_0 = arith.constant 0 : i32
    %c0_i32_1 = arith.constant 0 : i32
    return %c0_i32, %c0_i32_0 : i32, i32
  }
  func.func @transform_10(%arg0: i32) -> (i32, i32) {
    %c0_i32 = arith.constant 0 : i32
    %c0_i32_0 = arith.constant 0 : i32
    %c0_i32_1 = arith.constant 0 : i32
    return %c0_i32, %c0_i32_0 : i32, i32
  }
  func.func @transform_11(%arg0: i32) -> (i32, i32, i32) {
    %c0_i32 = arith.constant 0 : i32
    %c0_i32_0 = arith.constant 0 : i32
    %c0_i32_1 = arith.constant 0 : i32
    %c0_i32_2 = arith.constant 0 : i32
    return %c0_i32, %c0_i32_0, %c0_i32_1 : i32, i32, i32
  }
  func.func @transform_12(%arg0: i32) -> (i32, i32, i32) {
    %c0_i32 = arith.constant 0 : i32
    %c0_i32_0 = arith.constant 0 : i32
    %c0_i32_1 = arith.constant 0 : i32
    return %arg0, %c0_i32, %c0_i32_0 : i32, i32, i32
  }
}

</mosaic_0001>

<llo_original>
// kernel: mace_forward.1
$region0: #{mace_forward.1}
  #allocation0 [shape = 'u32[]', space=smem, size = 0x4, offset = 0x4, fixed_abs, tag = 'smem constant byte address 0x4 - core index']
  #allocation1 [shape = 'u32[144,128]{1,0:T(1,128)}', space=vmem, size = 0x12000, scoped, tag = 'internal scratch']
  %s0 = inlined_call_operand.vmem [shape: f32[2,8,3], index: 0, kind: input, shape index: {}]
  %s1 = inlined_call_operand.vmem [shape: f32[2,8,288], index: 1, kind: input, shape index: {}]
  %s2 = inlined_call_operand.vmem [shape: s32[16,2], index: 2, kind: input, shape index: {}]
  %s3 = inlined_call_operand.hbm [shape: s32[2,16], index: 3, kind: input, shape index: {}]
  %s4 = inlined_call_operand.hbm [shape: f32[3,8,32], index: 4, kind: input, shape index: {}]
  %s5 = inlined_call_operand.hbm [shape: f32[3,1,32], index: 5, kind: input, shape index: {}]
  %s6 = inlined_call_operand.hbm [shape: f32[3,32,160], index: 6, kind: input, shape index: {}]
  %s7 = inlined_call_operand.hbm [shape: f32[3,1,160], index: 7, kind: input, shape index: {}]
  %s8 = inlined_call_operand.hbm [shape: f32[160,288], index: 8, kind: input, shape index: {}]
  %s9 = inlined_call_operand.hbm [shape: f32[160,288], index: 9, kind: input, shape index: {}]
  %s10 = inlined_call_operand.hbm [shape: f32[32,288], index: 10, kind: input, shape index: {}]
  %s11 = inlined_call_operand.hbm [shape: f32[3,288,288], index: 11, kind: input, shape index: {}]
  %s12 = inlined_call_operand.hbm [shape: f32[2,8,32], index: 12, kind: output, shape index: {}]
  %s13 = sld [smem:[#allocation0]]
  $region117: #{mace_forward.1} parent=0
    _
  %s15 = ssub.s32 1, %s13
  %s16 = scalar_select 0, %s15, %s13
  $region1: #{mace_forward.1} parent=0
    #allocation2 [shape = 'u8[1024]{0}', space=vmem, size = 0x400, scoped, tag = 'input window, operand 3, single buffered']
    #allocation3 [shape = 's32[2]{0}', space=sflag, size = 0x8, scoped, tag = 'scoped memory for mace_forward.1']
    #allocation4 [shape = 's32[2]{0}', space=sflag, size = 0x8, scoped, tag = 'scoped memory for mace_forward.1']
    #allocation5 [shape = 'u8[12288]{0}', space=vmem, size = 0x3000, scoped, tag = 'input window, operand 4, single buffered']
    #allocation6 [shape = 's32[1]{0}', space=sflag, size = 0x4, scoped, tag = 'scoped memory for mace_forward.1']
    #allocation7 [shape = 'u8[1536]{0}', space=vmem, size = 0x800, scoped, tag = 'input window, operand 5, single buffered']
    #allocation8 [shape = 'u8[98304]{0}', space=vmem, size = 0x18000, scoped, tag = 'input window, operand 6, single buffered']
    #allocation9 [shape = 's32[1]{0}', space=sflag, size = 0x4, scoped, tag = 'scoped memory for mace_forward.1']
    #allocation10 [shape = 'u8[3072]{0}', space=vmem, size = 0xc00, scoped, tag = 'input window, operand 7, single buffered']
    #allocation11 [shape = 'u8[245760]{0}', space=vmem, size = 0x3c000, scoped, tag = 'input window, operand 8, single buffered']
    #allocation12 [shape = 's32[1]{0}', space=sflag, size = 0x4, scoped, tag = 'scoped memory for mace_forward.1']
    #allocation13 [shape = 'u8[245760]{0}', space=vmem, size = 0x3c000, scoped, tag = 'input window, operand 9, single buffered']
    #allocation14 [shape = 'u8[49152]{0}', space=vmem, size = 0xc000, scoped, tag = 'input window, operand 10, single buffered']
    #allocation15 [shape = 's32[1]{0}', space=sflag, size = 0x4, scoped, tag = 'scoped memory for mace_forward.1']
    #allocation16 [shape = 'u8[1327104]{0}', space=vmem, size = 0x144000, scoped, tag = 'input window, operand 11, single buffered']
    #allocation17 [shape = 'u8[8192]{0}', space=vmem, size = 0x2000, scoped, tag = 'output window, operand 0']
    %17 = vsyncpa [#allocation3], 0
    %18 = vsyncpa [#allocation6], 0
    %19 = vsyncpa [#allocation9], 0
    %20 = vsyncpa [#allocation12], 0
    %21 = vsyncpa [#allocation15], 0
    %22 = vsyncpa [#allocation4], 0
    %s23 = scalar_lea.sflag [#allocation4], 1
    %24 = vsyncpa %s23, 0
    loop: start=0, step=1, limit=4
    $region2: #{mace_forward.1} parent=1 // loop_pre_header
      _
    $region3: #{mace_forward.1} parent=1 // loop_header
      %s26 = sphi 0, %s30
      %p27 = scmp.ge.s32.totalorder %s26, 4
      %s36 = sphi 0, %s38
      %s39 = sphi 0, %s36
      %s40 = sphi 0, %s39
      %s56 = sphi 0, %s40
      %s62 = sphi 0, %s64
      %s65 = sphi 0, %s62
      %s66 = sphi 0, %s65
      %s82 = sphi 0, %s66
      %s86 = sphi 0, %s86
      %s88 = sphi 0, %s86
      %s89 = sphi 0, %s88
      %s103 = sphi 0, %s89
      %s107 = sphi 0, %s107
      %s109 = sphi 0, %s107
      %s110 = sphi 0, %s109
      %s124 = sphi 0, %s110
      %s128 = sphi 0, %s128
      %s130 = sphi 0, %s128
      %s131 = sphi 0, %s130
      %s145 = sphi 0, %s131
      %s149 = sphi 0, %s149
      %s151 = sphi 0, %s149
      %s152 = sphi 0, %s151
      %s166 = sphi 0, %s152
      %s170 = sphi 0, %s170
      %s172 = sphi 0, %s170
      %s173 = sphi 0, %s172
      %s187 = sphi 0, %s173
      %s191 = sphi 0, %s191
      %s193 = sphi 0, %s191
      %s194 = sphi 0, %s193
      %s208 = sphi 0, %s194
      %s212 = sphi 0, %s212
      %s214 = sphi 0, %s212
      %s215 = sphi 0, %s214
      %s229 = sphi 0, %s215
      %s233 = sphi 0, %s233
      %s235 = sphi 0, %s233
      %s236 = sphi 0, %s235
      %s250 = sphi 0, %s236
      %s254 = sphi 0, %s254
      %s256 = sphi 0, %s254
      %s257 = sphi 0, %s256
      %s271 = sphi 0, %s257
      %s275 = sphi 0, %s275
      %s277 = sphi 0, %s275
      %s278 = sphi 0, %s277
      %s292 = sphi 0, %s278
      %s298 = sphi 0, %s300
      %s301 = sphi 0, %s298
      %s302 = sphi 0, %s301
      %s318 = sphi 0, %s302
    $region4: #{mace_forward.1} parent=1 // loop_header_branch
      %29 = sbr.rel (%p27) target = $region8
    $region5: #{mace_forward.1} parent=1 // loop_body
      %s31 = ssub.s32 %s26, 1
      %s32 = ssub.s32 %s26, 2
      %s33 = sadd.s32 %s26, 1
      %s34 = ssub.s32 %s26, %s33
      %p35 = scmp.eq.s32.totalorder %s34, 0
      %s37 = sadd.s32 %s36, 1
      %s38 = scalar_select %p35, %s36, %s37
      %p41 = pneg %p35
      %p42 = scmp.eq.s32.totalorder %s26, 1
      %p43 = por %p41, %p42
      %p44 = scmp.ne.s32.totalorder %s36, %s39
      %p45 = scmp.eq.s32.totalorder %s26, 0
      %p46 = por %p44, %p45
      %p47 = scmp.ne.s32.totalorder %s36, %s39
      %p48 = scmp.eq.s32.totalorder %s31, 1
      %p49 = por %p47, %p48
      %p50 = scmp.ne.s32.totalorder %s39, %s40
      %p51 = scmp.eq.s32.totalorder %s31, 0
      %p52 = por %p50, %p51
      %p53 = scmp.ne.s32.totalorder %s39, %s40
      %p54 = scmp.eq.s32.totalorder %s32, 1
      %p55 = por %p53, %p54
      %p57 = scmp.ne.s32.totalorder %s40, %s56
      %p58 = scmp.eq.s32.totalorder %s32, 0
      %p59 = por %p57, %p58
      %s60 = ssub.s32 %s26, %s33
      %p61 = scmp.eq.s32.totalorder %s60, 0
      %s63 = sadd.s32 %s62, 1
      %s64 = scalar_select %p61, %s62, %s63
      %p67 = pneg %p61
      %p68 = scmp.eq.s32.totalorder %s26, 1
      %p69 = por %p67, %p68
      %p70 = scmp.ne.s32.totalorder %s62, %s65
      %p71 = scmp.eq.s32.totalorder %s26, 0
      %p72 = por %p70, %p71
      %p73 = scmp.ne.s32.totalorder %s62, %s65
      %p74 = scmp.eq.s32.totalorder %s31, 1
      %p75 = por %p73, %p74
      %p76 = scmp.ne.s32.totalorder %s65, %s66
      %p77 = scmp.eq.s32.totalorder %s31, 0
      %p78 = por %p76, %p77
      %p79 = scmp.ne.s32.totalorder %s65, %s66
      %p80 = scmp.eq.s32.totalorder %s32, 1
      %p81 = por %p79, %p80
      %p83 = scmp.ne.s32.totalorder %s66, %s82
      %p84 = scmp.eq.s32.totalorder %s32, 0
      %p85 = por %p83, %p84
      %s87 = sadd.s32 %s86, 1
      %p90 = scmp.eq.s32.totalorder %s26, 1
      %p91 = scmp.ne.s32.totalorder %s86, %s88
      %p92 = scmp.eq.s32.totalorder %s26, 0
      %p93 = por %p91, %p92
      %p94 = scmp.ne.s32.totalorder %s86, %s88
      %p95 = scmp.eq.s32.totalorder %s31, 1
      %p96 = por %p94, %p95
      %p97 = scmp.ne.s32.totalorder %s88, %s89
      %p98 = scmp.eq.s32.totalorder %s31, 0
      %p99 = por %p97, %p98
      %p100 = scmp.ne.s32.totalorder %s88, %s89
      %p101 = scmp.eq.s32.totalorder %s32, 1
      %p102 = por %p100, %p101
      %p104 = scmp.ne.s32.totalorder %s89, %s103
      %p105 = scmp.eq.s32.totalorder %s32, 0
      %p106 = por %p104, %p105
      %s108 = sadd.s32 %s107, 1
      %p111 = scmp.eq.s32.totalorder %s26, 1
      %p112 = scmp.ne.s32.totalorder %s107, %s109
      %p113 = scmp.eq.s32.totalorder %s26, 0
      %p114 = por %p112, %p113
      %p115 = scmp.ne.s32.totalorder %s107, %s109
      %p116 = scmp.eq.s32.totalorder %s31, 1
      %p117 = por %p115, %p116
      %p118 = scmp.ne.s32.totalorder %s109, %s110
      %p119 = scmp.eq.s32.totalorder %s31, 0
      %p120 = por %p118, %p119
      %p121 = scmp.ne.s32.totalorder %s109, %s110
      %p122 = scmp.eq.s32.totalorder %s32, 1
      %p123 = por %p121, %p122
      %p125 = scmp.ne.s32.totalorder %s110, %s124
      %p126 = scmp.eq.s32.totalorder %s32, 0
      %p127 = por %p125, %p126
      %s129 = sadd.s32 %s128, 1
      %p132 = scmp.eq.s32.totalorder %s26, 1
      %p133 = scmp.ne.s32.totalorder %s128, %s130
      %p134 = scmp.eq.s32.totalorder %s26, 0
      %p135 = por %p133, %p134
      %p136 = scmp.ne.s32.totalorder %s128, %s130
      %p137 = scmp.eq.s32.totalorder %s31, 1
      %p138 = por %p136, %p137
      %p139 = scmp.ne.s32.totalorder %s130, %s131
      %p140 = scmp.eq.s32.totalorder %s31, 0
      %p141 = por %p139, %p140
      %p142 = scmp.ne.s32.totalorder %s130, %s131
      %p143 = scmp.eq.s32.totalorder %s32, 1
      %p144 = por %p142, %p143
      %p146 = scmp.ne.s32.totalorder %s131, %s145
      %p147 = scmp.eq.s32.totalorder %s32, 0
      %p148 = por %p146, %p147
      %s150 = sadd.s32 %s149, 1
      %p153 = scmp.eq.s32.totalorder %s26, 1
      %p154 = scmp.ne.s32.totalorder %s149, %s151
      %p155 = scmp.eq.s32.totalorder %s26, 0
      %p156 = por %p154, %p155
      %p157 = scmp.ne.s32.totalorder %s149, %s151
      %p158 = scmp.eq.s32.totalorder %s31, 1
      %p159 = por %p157, %p158
      %p160 = scmp.ne.s32.totalorder %s151, %s152
      %p161 = scmp.eq.s32.totalorder %s31, 0
      %p162 = por %p160, %p161
      %p163 = scmp.ne.s32.totalorder %s151, %s152
      %p164 = scmp.eq.s32.totalorder %s32, 1
      %p165 = por %p163, %p164
      %p167 = scmp.ne.s32.totalorder %s152, %s166
      %p168 = scmp.eq.s32.totalorder %s32, 0
      %p169 = por %p167, %p168
      %s171 = sadd.s32 %s170, 1
      %p174 = scmp.eq.s32.totalorder %s26, 1
      %p175 = scmp.ne.s32.totalorder %s170, %s172
      %p176 = scmp.eq.s32.totalorder %s26, 0
      %p177 = por %p175, %p176
      %p178 = scmp.ne.s32.totalorder %s170, %s172
      %p179 = scmp.eq.s32.totalorder %s31, 1
      %p180 = por %p178, %p179
      %p181 = scmp.ne.s32.totalorder %s172, %s173
      %p182 = scmp.eq.s32.totalorder %s31, 0
      %p183 = por %p181, %p182
      %p184 = scmp.ne.s32.totalorder %s172, %s173
      %p185 = scmp.eq.s32.totalorder %s32, 1
      %p186 = por %p184, %p185
      %p188 = scmp.ne.s32.totalorder %s173, %s187
      %p189 = scmp.eq.s32.totalorder %s32, 0
      %p190 = por %p188, %p189
      %s192 = sadd.s32 %s191, 1
      %p195 = scmp.eq.s32.totalorder %s26, 1
      %p196 = scmp.ne.s32.totalorder %s191, %s193
      %p197 = scmp.eq.s32.totalorder %s26, 0
      %p198 = por %p196, %p197
      %p199 = scmp.ne.s32.totalorder %s191, %s193
      %p200 = scmp.eq.s32.totalorder %s31, 1
      %p201 = por %p199, %p200
      %p202 = scmp.ne.s32.totalorder %s193, %s194
      %p203 = scmp.eq.s32.totalorder %s31, 0
      %p204 = por %p202, %p203
      %p205 = scmp.ne.s32.totalorder %s193, %s194
      %p206 = scmp.eq.s32.totalorder %s32, 1
      %p207 = por %p205, %p206
      %p209 = scmp.ne.s32.totalorder %s194, %s208
      %p210 = scmp.eq.s32.totalorder %s32, 0
      %p211 = por %p209, %p210
      %s213 = sadd.s32 %s212, 1
      %p216 = scmp.eq.s32.totalorder %s26, 1
      %p217 = scmp.ne.s32.totalorder %s212, %s214
      %p218 = scmp.eq.s32.totalorder %s26, 0
      %p219 = por %p217, %p218
      %p220 = scmp.ne.s32.totalorder %s212, %s214
      %p221 = scmp.eq.s32.totalorder %s31, 1
      %p222 = por %p220, %p221
      %p223 = scmp.ne.s32.totalorder %s214, %s215
      %p224 = scmp.eq.s32.totalorder %s31, 0
      %p225 = por %p223, %p224
      %p226 = scmp.ne.s32.totalorder %s214, %s215
      %p227 = scmp.eq.s32.totalorder %s32, 1
      %p228 = por %p226, %p227
      %p230 = scmp.ne.s32.totalorder %s215, %s229
      %p231 = scmp.eq.s32.totalorder %s32, 0
      %p232 = por %p230, %p231
      %s234 = sadd.s32 %s233, 1
      %p237 = scmp.eq.s32.totalorder %s26, 1
      %p238 = scmp.ne.s32.totalorder %s233, %s235
      %p239 = scmp.eq.s32.totalorder %s26, 0
      %p240 = por %p238, %p239
      %p241 = scmp.ne.s32.totalorder %s233, %s235
      %p242 = scmp.eq.s32.totalorder %s31, 1
      %p243 = por %p241, %p242
      %p244 = scmp.ne.s32.totalorder %s235, %s236
      %p245 = scmp.eq.s32.totalorder %s31, 0
      %p246 = por %p244, %p245
      %p247 = scmp.ne.s32.totalorder %s235, %s236
      %p248 = scmp.eq.s32.totalorder %s32, 1
      %p249 = por %p247, %p248
      %p251 = scmp.ne.s32.totalorder %s236, %s250
      %p252 = scmp.eq.s32.totalorder %s32, 0
      %p253 = por %p251, %p252
      %s255 = sadd.s32 %s254, 1
      %p258 = scmp.eq.s32.totalorder %s26, 1
      %p259 = scmp.ne.s32.totalorder %s254, %s256
      %p260 = scmp.eq.s32.totalorder %s26, 0
      %p261 = por %p259, %p260
      %p262 = scmp.ne.s32.totalorder %s254, %s256
      %p263 = scmp.eq.s32.totalorder %s31, 1
      %p264 = por %p262, %p263
      %p265 = scmp.ne.s32.totalorder %s256, %s257
      %p266 = scmp.eq.s32.totalorder %s31, 0
      %p267 = por %p265, %p266
      %p268 = scmp.ne.s32.totalorder %s256, %s257
      %p269 = scmp.eq.s32.totalorder %s32, 1
      %p270 = por %p268, %p269
      %p272 = scmp.ne.s32.totalorder %s257, %s271
      %p273 = scmp.eq.s32.totalorder %s32, 0
      %p274 = por %p272, %p273
      %s276 = sadd.s32 %s275, 1
      %p279 = scmp.eq.s32.totalorder %s26, 1
      %p280 = scmp.ne.s32.totalorder %s275, %s277
      %p281 = scmp.eq.s32.totalorder %s26, 0
      %p282 = por %p280, %p281
      %p283 = scmp.ne.s32.totalorder %s275, %s277
      %p284 = scmp.eq.s32.totalorder %s31, 1
      %p285 = por %p283, %p284
      %p286 = scmp.ne.s32.totalorder %s277, %s278
      %p287 = scmp.eq.s32.totalorder %s31, 0
      %p288 = por %p286, %p287
      %p289 = scmp.ne.s32.totalorder %s277, %s278
      %p290 = scmp.eq.s32.totalorder %s32, 1
      %p291 = por %p289, %p290
      %p293 = scmp.ne.s32.totalorder %s278, %s292
      %p294 = scmp.eq.s32.totalorder %s32, 0
      %p295 = por %p293, %p294
      %s296 = ssub.s32 %s26, %s33
      %p297 = scmp.eq.s32.totalorder %s296, 0
      %s299 = sadd.s32 %s298, 1
      %s300 = scalar_select %p297, %s298, %s299
      %p303 = pneg %p297
      %p304 = scmp.eq.s32.totalorder %s26, 1
      %p305 = por %p303, %p304
      %p306 = scmp.ne.s32.totalorder %s298, %s301
      %p307 = scmp.eq.s32.totalorder %s26, 0
      %p308 = por %p306, %p307
      %p309 = scmp.ne.s32.totalorder %s298, %s301
      %p310 = scmp.eq.s32.totalorder %s31, 1
      %p311 = por %p309, %p310
      %p312 = scmp.ne.s32.totalorder %s301, %s302
      %p313 = scmp.eq.s32.totalorder %s31, 0
      %p314 = por %p312, %p313
      %p315 = scmp.ne.s32.totalorder %s301, %s302
      %p316 = scmp.eq.s32.totalorder %s32, 1
      %p317 = por %p315, %p316
      %p319 = scmp.ne.s32.totalorder %s302, %s318
      %p320 = scmp.eq.s32.totalorder %s32, 0
      %p321 = por %p319, %p320
      %p322 = scmp.le.s32.totalorder 1, %s26
      %p323 = scmp.lt.s32.totalorder %s26, 3
      %p324 = pnand %p322, %p323
      %p325 = pneg %p324
      // Predicated region
      $region9: #{mace_forward.1} parent=5 // pred_check
        _
      $region10: #{mace_forward.1} parent=5 // pred_check_branch
        %327 = sbr.rel (%p324) target = $region12
      $region11: #{mace_forward.1} parent=5 // pred_region
        %s328 = ssub.s32 %s26, 1
        // Predicated region
        $region13: #{mace_forward.1} parent=11 // pred_check
          %p329 = pneg %p99
        $region14: #{mace_forward.1} parent=11 // pred_check_branch
          %331 = sbr.rel (%p329) target = $region16
        $region15: #{mace_forward.1} parent=11 // pred_region
          _
        $region16: #{mace_forward.1} parent=11 // pred_fallthru
          _
        // Predicated region
        $region17: #{mace_forward.1} parent=11 // pred_check
          %p332 = pneg %p120
        $region18: #{mace_forward.1} parent=11 // pred_check_branch
          %334 = sbr.rel (%p332) target = $region20
        $region19: #{mace_forward.1} parent=11 // pred_region
          %s336 = ssub.s32 32, 32
          %337 = vsyncadd [#allocation3], %s336
          %s339 = sshll.u32 [#allocation2], 4
          %s340 = int_to_ptr.vmem [resolvable:$true] %s339
          %342 = dma.hbm_to_vmem [thread:$0]  %s3, 32, %s340, [#allocation3]
        $region20: #{mace_forward.1} parent=11 // pred_fallthru
          _
        // Predicated region
        $region21: #{mace_forward.1} parent=11 // pred_check
          %p343 = pneg %p141
        $region22: #{mace_forward.1} parent=11 // pred_check_branch
          %345 = sbr.rel (%p343) target = $region24
        $region23: #{mace_forward.1} parent=11 // pred_region
          %s347 = ssub.s32 384, 384
          %348 = vsyncadd [#allocation6], %s347
          %s349 = sshll.u32 [#allocation5], 4
          %s350 = int_to_ptr.vmem [resolvable:$true] %s349
          %355 = dma.hbm_to_vmem [thread:$0]  %s4, 384, %s350, [#allocation6], 128, 128, 8
        $region24: #{mace_forward.1} parent=11 // pred_fallthru
          _
        // Predicated region
        $region25: #{mace_forward.1} parent=11 // pred_check
          %p356 = pneg %p162
        $region26: #{mace_forward.1} parent=11 // pred_check_branch
          %358 = sbr.rel (%p356) target = $region28
        $region27: #{mace_forward.1} parent=11 // pred_region
          %s360 = ssub.s32 48, 48
          %361 = vsyncadd [#allocation6], %s360
          %s362 = sshll.u32 [#allocation7], 4
          %s363 = int_to_ptr.vmem [resolvable:$true] %s362
          %368 = dma.hbm_to_vmem [thread:$0]  %s5, 48, %s363, [#allocation6], 16, 16, 1
        $region28: #{mace_forward.1} parent=11 // pred_fallthru
          _
        // Predicated region
        $region29: #{mace_forward.1} parent=11 // pred_check
          %p369 = pneg %p183
        $region30: #{mace_forward.1} parent=11 // pred_check_branch
          %371 = sbr.rel (%p369) target = $region32
        $region31: #{mace_forward.1} parent=11 // pred_region
          %s373 = ssub.s32 3072, 3072
          %374 = vsyncadd [#allocation9], %s373
          %s375 = sshll.u32 [#allocation8], 4
          %s376 = int_to_ptr.vmem [resolvable:$true] %s375
          %381 = dma.hbm_to_vmem [thread:$0]  %s6, 3072, %s376, [#allocation9], 256, 256, 16
        $region32: #{mace_forward.1} parent=11 // pred_fallthru
          _
        // Predicated region
        $region33: #{mace_forward.1} parent=11 // pred_check
          %p382 = pneg %p204
        $region34: #{mace_forward.1} parent=11 // pred_check_branch
          %384 = sbr.rel (%p382) target = $region36
        $region35: #{mace_forward.1} parent=11 // pred_region
          %s386 = ssub.s32 96, 96
          %387 = vsyncadd [#allocation9], %s386
          %s388 = sshll.u32 [#allocation10], 4
          %s389 = int_to_ptr.vmem [resolvable:$true] %s388
          %394 = dma.hbm_to_vmem [thread:$0]  %s7, 96, %s389, [#allocation9], 32, 32, 2
        $region36: #{mace_forward.1} parent=11 // pred_fallthru
          _
        // Predicated region
        $region37: #{mace_forward.1} parent=11 // pred_check
          %p395 = pneg %p225
        $region38: #{mace_forward.1} parent=11 // pred_check_branch
          %397 = sbr.rel (%p395) target = $region40
        $region39: #{mace_forward.1} parent=11 // pred_region
          %s399 = ssub.s32 7680, 7680
          %400 = vsyncadd [#allocation12], %s399
          %s401 = sshll.u32 [#allocation11], 4
          %s402 = int_to_ptr.vmem [resolvable:$true] %s401
          %407 = dma.hbm_to_vmem [thread:$0]  %s8, 7680, %s402, [#allocation12], 384, 384, 24
        $region40: #{mace_forward.1} parent=11 // pred_fallthru
          _
        // Predicated region
        $region41: #{mace_forward.1} parent=11 // pred_check
          %p408 = pneg %p246
        $region42: #{mace_forward.1} parent=11 // pred_check_branch
          %410 = sbr.rel (%p408) target = $region44
        $region43: #{mace_forward.1} parent=11 // pred_region
          %s412 = ssub.s32 7680, 7680
          %413 = vsyncadd [#allocation12], %s412
          %s414 = sshll.u32 [#allocation13], 4
          %s415 = int_to_ptr.vmem [resolvable:$true] %s414
          %420 = dma.hbm_to_vmem [thread:$0]  %s9, 7680, %s415, [#allocation12], 384, 384, 24
        $region44: #{mace_forward.1} parent=11 // pred_fallthru
          _
        // Predicated region
        $region45: #{mace_forward.1} parent=11 // pred_check
          %p421 = pneg %p267
        $region46: #{mace_forward.1} parent=11 // pred_check_branch
          %423 = sbr.rel (%p421) target = $region48
        $region47: #{mace_forward.1} parent=11 // pred_region
          %s425 = ssub.s32 1536, 1536
          %426 = vsyncadd [#allocation15], %s425
          %s427 = sshll.u32 [#allocation14], 4
          %s428 = int_to_ptr.vmem [resolvable:$true] %s427
          %433 = dma.hbm_to_vmem [thread:$0]  %s10, 1536, %s428, [#allocation15], 384, 384, 24
        $region48: #{mace_forward.1} parent=11 // pred_fallthru
          _
        // Predicated region
        $region49: #{mace_forward.1} parent=11 // pred_check
          %p434 = pneg %p288
        $region50: #{mace_forward.1} parent=11 // pred_check_branch
          %436 = sbr.rel (%p434) target = $region52
        $region51: #{mace_forward.1} parent=11 // pred_region
          %s438 = ssub.s32 41472, 41472
          %439 = vsyncadd [#allocation15], %s438
          %s440 = sshll.u32 [#allocation16], 4
          %s441 = int_to_ptr.vmem [resolvable:$true] %s440
          %446 = dma.hbm_to_vmem [thread:$0]  %s11, 41472, %s441, [#allocation15], 384, 384, 24
        $region52: #{mace_forward.1} parent=11 // pred_fallthru
          _
      $region12: #{mace_forward.1} parent=5 // pred_fallthru
        _
      %p447 = scmp.lt.s32.totalorder %s26, 2
      // Predicated region
      $region53: #{mace_forward.1} parent=5 // pred_check
        %p448 = pneg %p447
      $region54: #{mace_forward.1} parent=5 // pred_check_branch
        %450 = sbr.rel (%p448) target = $region56
      $region55: #{mace_forward.1} parent=5 // pred_region
        // Predicated region
        $region57: #{mace_forward.1} parent=55 // pred_check
          %p451 = pneg %p46
        $region58: #{mace_forward.1} parent=55 // pred_check_branch
          %453 = sbr.rel (%p451) target = $region60
        $region59: #{mace_forward.1} parent=55 // pred_region
          %p454 = scmp.lt.s32.totalorder %s26, 1
          %s455 = scalar_select %p454, %s26, 1
          %s456 = smul.addr %s455, 8
          %s457 = scalar_lea.vmem %s0, %s456
        $region60: #{mace_forward.1} parent=55 // pred_fallthru
          _
        // Predicated region
        $region61: #{mace_forward.1} parent=55 // pred_check
          %p458 = pneg %p72
        $region62: #{mace_forward.1} parent=55 // pred_check_branch
          %460 = sbr.rel (%p458) target = $region64
        $region63: #{mace_forward.1} parent=55 // pred_region
          %p461 = scmp.lt.s32.totalorder %s26, 1
          %s462 = scalar_select %p461, %s26, 1
          %s463 = smul.addr %s462, 3
          %s464 = smul.addr %s463, 8
          %s465 = scalar_lea.vmem %s1, %s464
        $region64: #{mace_forward.1} parent=55 // pred_fallthru
          _
      $region56: #{mace_forward.1} parent=5 // pred_fallthru
        _
      %p466 = scmp.le.s32.totalorder 1, %s26
      %p467 = scmp.lt.s32.totalorder %s26, 3
      %p468 = pnand %p466, %p467
      %p469 = pneg %p468
      // Predicated region
      $region65: #{mace_forward.1} parent=5 // pred_check
        _
      $region66: #{mace_forward.1} parent=5 // pred_check_branch
        %471 = sbr.rel (%p468) target = $region68
      $region67: #{mace_forward.1} parent=5 // pred_region
        %s472 = ssub.s32 %s26, 1
        // Predicated region
        $region69: #{mace_forward.1} parent=67 // pred_check
          %p473 = pneg %p120
        $region70: #{mace_forward.1} parent=67 // pred_check_branch
          %475 = sbr.rel (%p473) target = $region72
        $region71: #{mace_forward.1} parent=67 // pred_region
          %476 = dma.done [#allocation3], 32
        $region72: #{mace_forward.1} parent=67 // pred_fallthru
          _
        // Predicated region
        $region73: #{mace_forward.1} parent=67 // pred_check
          %p477 = pneg %p141
        $region74: #{mace_forward.1} parent=67 // pred_check_branch
          %479 = sbr.rel (%p477) target = $region76
        $region75: #{mace_forward.1} parent=67 // pred_region
          %480 = dma.done [#allocation6], 384
        $region76: #{mace_forward.1} parent=67 // pred_fallthru
          _
        // Predicated region
        $region77: #{mace_forward.1} parent=67 // pred_check
          %p481 = pneg %p162
        $region78: #{mace_forward.1} parent=67 // pred_check_branch
          %483 = sbr.rel (%p481) target = $region80
        $region79: #{mace_forward.1} parent=67 // pred_region
          %484 = dma.done [#allocation6], 48
        $region80: #{mace_forward.1} parent=67 // pred_fallthru
          _
        // Predicated region
        $region81: #{mace_forward.1} parent=67 // pred_check
          %p485 = pneg %p183
        $region82: #{mace_forward.1} parent=67 // pred_check_branch
          %487 = sbr.rel (%p485) target = $region84
        $region83: #{mace_forward.1} parent=67 // pred_region
          %488 = dma.done [#allocation9], 3072
        $region84: #{mace_forward.1} parent=67 // pred_fallthru
          _
        // Predicated region
        $region85: #{mace_forward.1} parent=67 // pred_check
          %p489 = pneg %p204
        $region86: #{mace_forward.1} parent=67 // pred_check_branch
          %491 = sbr.rel (%p489) target = $region88
        $region87: #{mace_forward.1} parent=67 // pred_region
          %492 = dma.done [#allocation9], 96
        $region88: #{mace_forward.1} parent=67 // pred_fallthru
          _
        // Predicated region
        $region89: #{mace_forward.1} parent=67 // pred_check
          %p493 = pneg %p225
        $region90: #{mace_forward.1} parent=67 // pred_check_branch
          %495 = sbr.rel (%p493) target = $region92
        $region91: #{mace_forward.1} parent=67 // pred_region
          %496 = dma.done [#allocation12], 7680
        $region92: #{mace_forward.1} parent=67 // pred_fallthru
          _
        // Predicated region
        $region93: #{mace_forward.1} parent=67 // pred_check
          %p497 = pneg %p246
        $region94: #{mace_forward.1} parent=67 // pred_check_branch
          %499 = sbr.rel (%p497) target = $region96
        $region95: #{mace_forward.1} parent=67 // pred_region
          %500 = dma.done [#allocation12], 7680
        $region96: #{mace_forward.1} parent=67 // pred_fallthru
          _
        // Predicated region
        $region97: #{mace_forward.1} parent=67 // pred_check
          %p501 = pneg %p267
        $region98: #{mace_forward.1} parent=67 // pred_check_branch
          %503 = sbr.rel (%p501) target = $region100
        $region99: #{mace_forward.1} parent=67 // pred_region
          %504 = dma.done [#allocation15], 1536
        $region100: #{mace_forward.1} parent=67 // pred_fallthru
          _
        // Predicated region
        $region101: #{mace_forward.1} parent=67 // pred_check
          %p505 = pneg %p288
        $region102: #{mace_forward.1} parent=67 // pred_check_branch
          %507 = sbr.rel (%p505) target = $region104
        $region103: #{mace_forward.1} parent=67 // pred_region
          %508 = dma.done [#allocation15], 41472
        $region104: #{mace_forward.1} parent=67 // pred_fallthru
          _
        %p509 = scmp.lt.s32.totalorder %s31, 1
        %s510 = scalar_select %p509, %s31, 1
        %s511 = smul.addr %s510, 8
        %s512 = scalar_lea.vmem %s0, %s511
        %p513 = pneg %p52
        %p514 = pneg %p49
        %p515 = scmp.lt.s32.totalorder %s31, 1
        %s516 = scalar_select %p515, %s31, 1
        %s517 = smul.addr %s516, 3
        %s518 = smul.addr %s517, 8
        %s519 = scalar_lea.vmem %s1, %s518
        %p520 = pneg %p78
        %p521 = pneg %p75
        %p522 = pneg %p99
        %p523 = pneg %p96
        %p524 = pneg %p120
        %p525 = pneg %p117
        %p526 = pneg %p141
        %p527 = pneg %p138
        %p528 = pneg %p162
        %p529 = pneg %p159
        %p530 = pneg %p183
        %p531 = pneg %p180
        %p532 = pneg %p204
        %p533 = pneg %p201
        %p534 = pneg %p225
        %p535 = pneg %p222
        %p536 = pneg %p246
        %p537 = pneg %p243
        %p538 = pneg %p267
        %p539 = pneg %p264
        %p540 = pneg %p288
        %p541 = pneg %p285
        %p542 = pneg %p314
        %p543 = pneg %p311
        %s544 = sand.u32 %s301, 1
        %s545 = scalar_lea.sflag [#allocation4], %s544
        %s546 = sand.u32 %s301, 1
        %s547 = smul.addr %s546, 8
        %s548 = scalar_lea.vmem [#allocation17], %s547
        %p549 = scmp.lt.s32.totalorder %s31, 1
        %s550 = scalar_select %p549, %s31, 1
        %s551 = smul.addr %s550, 8
        %s552 = scalar_lea.vmem %s0, %s551
        %p553 = scmp.lt.s32.totalorder %s31, 1
        %s554 = scalar_select %p553, %s31, 1
        %s555 = smul.addr %s554, 3
        %s556 = smul.addr %s555, 8
        %s557 = scalar_lea.vmem %s1, %s556
        %v558 = vld [vmem:[%s552] sm:$0xff]
        %v559 = vld [vmem:[%s557] sm:$0xff]
        %v560 = vld [vmem:[%s557 + $0x8] sm:$0xff]
        %v561 = vld [vmem:[%s557 + $0x10] sm:$0xff]
        %v562 = vld [vmem:[%s2] sm:$0xff]
        %v563 = vld [vmem:[%s2 + $0x8] sm:$0xff]
        %v564 = vlaneseq
        %v565 = vand.u32 %v564, 127
        %566 = vset.pattern.permute.xlu0 0
        %567 = vperm.xlu0 %566, %v562
        %v568 = vpop.permute.xlu0 %567
        %569 = vset.pattern.permute.xlu0 0
        %570 = vperm.xlu0 %569, %v563
        %v571 = vpop.permute.xlu0 %570
        %vm572 = vcmp.eq.s32.totalorder %v565, %v568
        %vm573 = vcmp.eq.s32.totalorder %v565, %v571
        %v574 = vsel %vm572, 1, 0
        %v575 = vsel %vm573, 1, 0
        %v576 = vcvt.s32.f32 %v574
        %v577 = vcvt.s32.f32 %v575
        %578 = vset.pattern.permute.xlu0 1
        %579 = vperm.xlu0 %578, %v562
        %v580 = vpop.permute.xlu0 %579
        %581 = vset.pattern.permute.xlu0 1
        %582 = vperm.xlu0 %581, %v563
        %v583 = vpop.permute.xlu0 %582
        %vm584 = vcmp.eq.s32.totalorder %v565, %v580
        %vm585 = vcmp.eq.s32.totalorder %v565, %v583
        %v586 = vsel %vm584, 1, 0
        %v587 = vsel %vm585, 1, 0
        %v588 = vcvt.s32.f32 %v586
        %v589 = vcvt.s32.f32 %v587
        %v590 = vlaneseq
        %v591 = vshrl.u32 %v590, 7
        %v592 = vld [vmem:[#allocation2] sm:$0x1]
        %v593 = vlaneseq
        %v594 = vshrl.u32 %v593, 7
        %v595 = vsub.s32 0, %v594
        %v596 = vrot.slane %v592, %v595
        %vm597 = vcmp.eq.s32.totalorder %v591, %v596
        %v598 = vsel %vm597, 1, 0
        %v599 = vcvt.s32.f32 %v598
        %v600 = vsub.f32 %v576, %v588
        %v601 = vsub.f32 %v577, %v589
        %vm602 = vcmask 64512
        %v604 = vsel %vm602, %v600, 0
        %v607 = vsel %vm602, %v601, 0
        %609 = vmatprep.subr.mxu0 0.0
        %610 = vmatpush1.msra.mxu0 %v558
        %611 = vmatprep.subr.mxu0 0.0
        %612 = vmatpush1.msra.mxu0 0.0
        %613 = vmatprep.subr.mxu0 0.0
        %614 = vmatpush1.msra.mxu0 0.0
        %615 = vmatprep.subr.mxu0 0.0
        %616 = vmatpush1.msra.mxu0 0.0
        %617 = vmatprep.subr.mxu0 0.0
        %618 = vmatpush1.msra.mxu0 0.0
        %619 = vmatprep.subr.mxu0 0.0
        %620 = vmatpush1.msra.mxu0 0.0
        %621 = vmatprep.subr.mxu0 0.0
        %622 = vmatpush1.msra.mxu0 0.0
        %623 = vmatprep.subr.mxu0 0.0
        %624 = vmatpush1.msra.mxu0 0.0
        %625 = vmatprep.subr.mxu0 0.0
        %626 = vmatpush1.msra.mxu0 0.0
        %627 = vmatprep.subr.mxu0 0.0
        %628 = vmatpush1.msra.mxu0 0.0
        %629 = vmatprep.subr.mxu0 0.0
        %630 = vmatpush1.msra.mxu0 0.0
        %631 = vmatprep.subr.mxu0 0.0
        %632 = vmatpush1.msra.mxu0 0.0
        %633 = vmatprep.subr.mxu0 0.0
        %634 = vmatpush1.msra.mxu0 0.0
        %635 = vmatprep.subr.mxu0 0.0
        %636 = vmatpush1.msra.mxu0 0.0
        %637 = vmatprep.subr.mxu0 0.0
        %638 = vmatpush1.msra.mxu0 0.0
        %639 = vmatprep.subr.mxu0 0.0
        %640 = vmatpush1.msra.mxu0 0.0
        %641 = vmatprep.subr.mxu0 0.0
        %642 = vmatpush1.msra.mxu0 0.0
        %643 = vmatprep.subr.mxu0 0.0
        %644 = vmatpush1.msra.mxu0 0.0
        %645 = vmatprep.subr.mxu0 0.0
        %646 = vmatpush1.msra.mxu0 0.0
        %647 = vmatprep.subr.mxu0 0.0
        %648 = vmatpush1.msra.mxu0 0.0
        %649 = vmatprep.subr.mxu0 0.0
        %650 = vmatpush1.msra.mxu0 0.0
        %651 = vmatprep.subr.mxu0 0.0
        %652 = vmatpush1.msra.mxu0 0.0
        %653 = vmatprep.subr.mxu0 0.0
        %654 = vmatpush1.msra.mxu0 0.0
        %655 = vmatprep.subr.mxu0 0.0
        %656 = vmatpush1.msra.mxu0 0.0
        %657 = vmatprep.subr.mxu0 0.0
        %658 = vmatpush1.msra.mxu0 0.0
        %659 = vmatprep.subr.mxu0 0.0
        %660 = vmatpush1.msra.mxu0 0.0
        %661 = vmatprep.subr.mxu0 0.0
        %662 = vmatpush1.msra.mxu0 0.0
        %663 = vmatprep.subr.mxu0 0.0
        %664 = vmatpush1.msra.mxu0 0.0
        %665 = vmatprep.subr.mxu0 0.0
        %666 = vmatpush1.msra.mxu0 0.0
        %667 = vmatprep.subr.mxu0 0.0
        %668 = vmatpush1.msra.mxu0 0.0
        %669 = vmatprep.subr.mxu0 0.0
        %670 = vmatpush1.msra.mxu0 0.0
        %671 = vmatprep.subr.mxu0 0.0
        %672 = vmatpush1.msra.mxu0 0.0
        %673 = vmatprep.mubr.f32.mxu0 0.0
        %674 = vmatmul.mubr.f32.gmra.mrb[0].mxu0 %v604
        %v675 = vpop.f32.mrb[0].mxu0
        %v676 = vadd.f32 0.0, %v675
        %v677 = vpop.f32.mrb[0].mxu0
        %678 = vmatprep.mubr.f32.mxu0 0.0
        %679 = vmatmul.mubr.f32.gmra.mrb[0].mxu0 %v607
        %v680 = vpop.f32.mrb[0].mxu0
        %v681 = vadd.f32 0.0, %v680
        %v682 = vpop.f32.mrb[0].mxu0
        %683 = vdwg.mxu0
        %v684 = vmul.f32 %v676, %v676
        %v685 = vmul.f32 %v681, %v681
        %688 = vrot.lane.b32.xlu0 %v684, 127
        %v689 = vpop.permute.xlu0 %688
        %690 = vrot.lane.b32.xlu0 %v685, 127
        %v691 = vpop.permute.xlu0 %690
        %v694 = vadd.f32 %v684, %v689
        %v695 = vadd.f32 %v685, %v691
        %696 = vrot.lane.b32.xlu0 %v684, 126
        %v697 = vpop.permute.xlu0 %696
        %698 = vrot.lane.b32.xlu0 %v685, 126
        %v699 = vpop.permute.xlu0 %698
        %v702 = vadd.f32 %v694, %v697
        %v703 = vadd.f32 %v695, %v699
        %v704 = vrsqrt.pop %v702
        %v705 = vmul.f32 %v702, %v704
        %vm706 = vcmp.eq.f32.partialorder %v702, inf
        %v707 = vsel %vm706, %v702, %v705
        %vm708 = vcmp.eq.f32.partialorder %v702, 0.0
        %v709 = vand.u32 %v702, 2147483648
        %v710 = vsel %vm708, %v709, %v707
        %v711 = vrsqrt.pop %v703
        %v712 = vmul.f32 %v703, %v711
        %vm713 = vcmp.eq.f32.partialorder %v703, inf
        %v714 = vsel %vm713, %v703, %v712
        %vm715 = vcmp.eq.f32.partialorder %v703, 0.0
        %v716 = vand.u32 %v703, 2147483648
        %v717 = vsel %vm715, %v716, %v714
        %v718 = vmax.f32 %v710, 1e-09
        %v719 = vmax.f32 %v717, 1e-09
        %v720 = vrcp.pop %v718
        %v721 = vmul.f32 1.0, %v720
        %v722 = vrcp.pop %v719
        %v723 = vmul.f32 1.0, %v722
        %v724 = vmul.f32 %v676, %v721
        %v725 = vmul.f32 %v681, %v723
        %728 = vrot.lane.b32.xlu0 %v721, 1
        %v729 = vpop.permute.xlu0 %728
        %730 = vrot.lane.b32.xlu0 %v723, 1
        %v731 = vpop.permute.xlu0 %730
        %v734 = vmul.f32 %v676, %v729
        %v735 = vmul.f32 %v681, %v731
        %736 = vrot.lane.b32.xlu0 %v721, 2
        %v737 = vpop.permute.xlu0 %736
        %738 = vrot.lane.b32.xlu0 %v723, 2
        %v739 = vpop.permute.xlu0 %738
        %v742 = vmul.f32 %v676, %v737
        %v743 = vmul.f32 %v681, %v739
        %v744 = vadd.s32 %v565, 128
        %v745 = vadd.s32 %v565, 256
        %vm746 = vcmp.ge.s32.totalorder %v565, 0
        %vm747 = vcmp.ge.s32.totalorder %v744, 0
        %vm748 = vcmp.ge.s32.totalorder %v745, 0
        %vm749 = vcmp.lt.s32.totalorder %v565, 32
        %vm750 = vcmp.lt.s32.totalorder %v744, 32
        %vm751 = vcmp.lt.s32.totalorder %v745, 32
        %vm752 = vmand %vm746, %vm749
        %vm753 = vmand %vm747, %vm750
        %vm754 = vmand %vm748, %vm751
        %v755 = vsel %vm752, 1, 0
        %v756 = vsel %vm753, 1, 0
        %v757 = vsel %vm754, 1, 0
        %v758 = vcvt.s32.f32 %v755
        %v759 = vcvt.s32.f32 %v756
        %v760 = vcvt.s32.f32 %v757
        %vm761 = vcmp.ge.s32.totalorder %v565, 32
        %vm762 = vcmp.ge.s32.totalorder %v744, 32
        %vm763 = vcmp.ge.s32.totalorder %v745, 32
        %vm764 = vcmp.lt.s32.totalorder %v565, 64
        %vm765 = vcmp.lt.s32.totalorder %v744, 64
        %vm766 = vcmp.lt.s32.totalorder %v745, 64
        %vm767 = vmand %vm761, %vm764
        %vm768 = vmand %vm762, %vm765
        %vm769 = vmand %vm763, %vm766
        %v770 = vsel %vm767, 1, 0
        %v771 = vsel %vm768, 1, 0
        %v772 = vsel %vm769, 1, 0
        %v773 = vcvt.s32.f32 %v770
        %v774 = vcvt.s32.f32 %v771
        %v775 = vcvt.s32.f32 %v772
        %v776 = vmul.f32 %v734, 1.7320508
        %v777 = vmul.f32 %v735, 1.7320508
        %779 = vset.pattern.permute.xlu0 1
        %780 = vperm.xlu0 %779, %v776
        %v781 = vpop.permute.xlu0 %780
        %784 = vset.pattern.permute.xlu0 1
        %785 = vperm.xlu0 %784, %v777
        %v786 = vpop.permute.xlu0 %785
        %v788 = vmul.f32 %v773, %v781
        %v789 = vmul.f32 %v774, %v781
        %v790 = vmul.f32 %v775, %v781
        %v791 = vmul.f32 %v773, %v786
        %v792 = vmul.f32 %v774, %v786
        %v793 = vmul.f32 %v775, %v786
        %v794 = vadd.f32 %v758, %v788
        %v795 = vadd.f32 %v759, %v789
        %v796 = vadd.f32 %v760, %v790
        %v797 = vadd.f32 %v758, %v791
        %v798 = vadd.f32 %v759, %v792
        %v799 = vadd.f32 %v760, %v793
        %vm800 = vcmp.ge.s32.totalorder %v565, 64
        %vm801 = vcmp.ge.s32.totalorder %v744, 64
        %vm802 = vcmp.ge.s32.totalorder %v745, 64
        %vm803 = vcmp.lt.s32.totalorder %v565, 96
        %vm804 = vcmp.lt.s32.totalorder %v744, 96
        %vm805 = vcmp.lt.s32.totalorder %v745, 96
        %vm806 = vmand %vm800, %vm803
        %vm807 = vmand %vm801, %vm804
        %vm808 = vmand %vm802, %vm805
        %v809 = vsel %vm806, 1, 0
        %v810 = vsel %vm807, 1, 0
        %v811 = vsel %vm808, 1, 0
        %v812 = vcvt.s32.f32 %v809
        %v813 = vcvt.s32.f32 %v810
        %v814 = vcvt.s32.f32 %v811
        %v815 = vmul.f32 %v742, 1.7320508
        %v816 = vmul.f32 %v743, 1.7320508
        %818 = vset.pattern.permute.xlu0 2
        %819 = vperm.xlu0 %818, %v815
        %v820 = vpop.permute.xlu0 %819
        %823 = vset.pattern.permute.xlu0 2
        %824 = vperm.xlu0 %823, %v816
        %v825 = vpop.permute.xlu0 %824
        %v827 = vmul.f32 %v812, %v820
        %v828 = vmul.f32 %v813, %v820
        %v829 = vmul.f32 %v814, %v820
        %v830 = vmul.f32 %v812, %v825
        %v831 = vmul.f32 %v813, %v825
        %v832 = vmul.f32 %v814, %v825
        %v833 = vadd.f32 %v794, %v827
        %v834 = vadd.f32 %v795, %v828
        %v835 = vadd.f32 %v796, %v829
        %v836 = vadd.f32 %v797, %v830
        %v837 = vadd.f32 %v798, %v831
        %v838 = vadd.f32 %v799, %v832
        %vm839 = vcmp.ge.s32.totalorder %v565, 96
        %vm840 = vcmp.ge.s32.totalorder %v744, 96
        %vm841 = vcmp.ge.s32.totalorder %v745, 96
        %vm842 = vcmp.lt.s32.totalorder %v565, 128
        %vm843 = vcmp.lt.s32.totalorder %v744, 128
        %vm844 = vcmp.lt.s32.totalorder %v745, 128
        %vm845 = vmand %vm839, %vm842
        %vm846 = vmand %vm840, %vm843
        %vm847 = vmand %vm841, %vm844
        %v848 = vsel %vm845, 1, 0
        %v849 = vsel %vm846, 1, 0
        %v850 = vsel %vm847, 1, 0
        %v851 = vcvt.s32.f32 %v848
        %v852 = vcvt.s32.f32 %v849
        %v853 = vcvt.s32.f32 %v850
        %v854 = vmul.f32 %v724, 1.7320508
        %v855 = vmul.f32 %v725, 1.7320508
        %857 = vset.pattern.permute.xlu0 0
        %858 = vperm.xlu0 %857, %v854
        %v859 = vpop.permute.xlu0 %858
        %862 = vset.pattern.permute.xlu0 0
        %863 = vperm.xlu0 %862, %v855
        %v864 = vpop.permute.xlu0 %863
        %v866 = vmul.f32 %v851, %v859
        %v867 = vmul.f32 %v852, %v859
        %v868 = vmul.f32 %v853, %v859
        %v869 = vmul.f32 %v851, %v864
        %v870 = vmul.f32 %v852, %v864
        %v871 = vmul.f32 %v853, %v864
        %v872 = vadd.f32 %v833, %v866
        %v873 = vadd.f32 %v834, %v867
        %v874 = vadd.f32 %v835, %v868
        %v875 = vadd.f32 %v836, %v869
        %v876 = vadd.f32 %v837, %v870
        %v877 = vadd.f32 %v838, %v871
        %vm878 = vcmp.ge.s32.totalorder %v565, 128
        %vm879 = vcmp.ge.s32.totalorder %v744, 128
        %vm880 = vcmp.ge.s32.totalorder %v745, 128
        %vm881 = vcmp.lt.s32.totalorder %v565, 160
        %vm882 = vcmp.lt.s32.totalorder %v744, 160
        %vm883 = vcmp.lt.s32.totalorder %v745, 160
        %vm884 = vmand %vm878, %vm881
        %vm885 = vmand %vm879, %vm882
        %vm886 = vmand %vm880, %vm883
        %v887 = vsel %vm884, 1, 0
        %v888 = vsel %vm885, 1, 0
        %v889 = vsel %vm886, 1, 0
        %v890 = vcvt.s32.f32 %v887
        %v891 = vcvt.s32.f32 %v888
        %v892 = vcvt.s32.f32 %v889
        %v893 = vmul.f32 %v724, 3.8729835
        %v894 = vmul.f32 %v725, 3.8729835
        %897 = vrot.lane.b32.xlu0 %v734, 127
        %v898 = vpop.permute.xlu0 %897
        %899 = vrot.lane.b32.xlu0 %v735, 127
        %v900 = vpop.permute.xlu0 %899
        %v903 = vmul.f32 %v893, %v898
        %v904 = vmul.f32 %v894, %v900
        %906 = vset.pattern.permute.xlu0 0
        %907 = vperm.xlu0 %906, %v903
        %v908 = vpop.permute.xlu0 %907
        %911 = vset.pattern.permute.xlu0 0
        %912 = vperm.xlu0 %911, %v904
        %v913 = vpop.permute.xlu0 %912
        %v915 = vmul.f32 %v890, %v908
        %v916 = vmul.f32 %v891, %v908
        %v917 = vmul.f32 %v892, %v908
        %v918 = vmul.f32 %v890, %v913
        %v919 = vmul.f32 %v891, %v913
        %v920 = vmul.f32 %v892, %v913
        %v921 = vadd.f32 %v872, %v915
        %v922 = vadd.f32 %v873, %v916
        %v923 = vadd.f32 %v874, %v917
        %v924 = vadd.f32 %v875, %v918
        %v925 = vadd.f32 %v876, %v919
        %v926 = vadd.f32 %v877, %v920
        %vm927 = vcmp.ge.s32.totalorder %v565, 160
        %vm928 = vcmp.ge.s32.totalorder %v744, 160
        %vm929 = vcmp.ge.s32.totalorder %v745, 160
        %vm930 = vcmp.lt.s32.totalorder %v565, 192
        %vm931 = vcmp.lt.s32.totalorder %v744, 192
        %vm932 = vcmp.lt.s32.totalorder %v745, 192
        %vm933 = vmand %vm927, %vm930
        %vm934 = vmand %vm928, %vm931
        %vm935 = vmand %vm929, %vm932
        %v936 = vsel %vm933, 1, 0
        %v937 = vsel %vm934, 1, 0
        %v938 = vsel %vm935, 1, 0
        %v939 = vcvt.s32.f32 %v936
        %v940 = vcvt.s32.f32 %v937
        %v941 = vcvt.s32.f32 %v938
        %v942 = vmul.f32 %v734, 3.8729835
        %v943 = vmul.f32 %v735, 3.8729835
        %946 = vrot.lane.b32.xlu0 %v742, 127
        %v947 = vpop.permute.xlu0 %946
        %948 = vrot.lane.b32.xlu0 %v743, 127
        %v949 = vpop.permute.xlu0 %948
        %v952 = vmul.f32 %v942, %v947
        %v953 = vmul.f32 %v943, %v949
        %955 = vset.pattern.permute.xlu0 1
        %956 = vperm.xlu0 %955, %v952
        %v957 = vpop.permute.xlu0 %956
        %960 = vset.pattern.permute.xlu0 1
        %961 = vperm.xlu0 %960, %v953
        %v962 = vpop.permute.xlu0 %961
        %v964 = vmul.f32 %v939, %v957
        %v965 = vmul.f32 %v940, %v957
        %v966 = vmul.f32 %v941, %v957
        %v967 = vmul.f32 %v939, %v962
        %v968 = vmul.f32 %v940, %v962
        %v969 = vmul.f32 %v941, %v962
        %v970 = vadd.f32 %v921, %v964
        %v971 = vadd.f32 %v922, %v965
        %v972 = vadd.f32 %v923, %v966
        %v973 = vadd.f32 %v924, %v967
        %v974 = vadd.f32 %v925, %v968
        %v975 = vadd.f32 %v926, %v969
        %vm976 = vcmp.ge.s32.totalorder %v565, 192
        %vm977 = vcmp.ge.s32.totalorder %v744, 192
        %vm978 = vcmp.ge.s32.totalorder %v745, 192
        %vm979 = vcmp.lt.s32.totalorder %v565, 224
        %vm980 = vcmp.lt.s32.totalorder %v744, 224
        %vm981 = vcmp.lt.s32.totalorder %v745, 224
        %vm982 = vmand %vm976, %vm979
        %vm983 = vmand %vm977, %vm980
        %vm984 = vmand %vm978, %vm981
        %v985 = vsel %vm982, 1, 0
        %v986 = vsel %vm983, 1, 0
        %v987 = vsel %vm984, 1, 0
        %v988 = vcvt.s32.f32 %v985
        %v989 = vcvt.s32.f32 %v986
        %v990 = vcvt.s32.f32 %v987
        %v991 = vmul.f32 %v742, 3.0
        %v992 = vmul.f32 %v743, 3.0
        %v993 = vmul.f32 %v991, %v742
        %v994 = vmul.f32 %v992, %v743
        %v995 = vsub.f32 %v993, 1.0
        %v996 = vsub.f32 %v994, 1.0
        %v997 = vmul.f32 %v995, 1.118034
        %v998 = vmul.f32 %v996, 1.118034
        %1000 = vset.pattern.permute.xlu0 2
        %1001 = vperm.xlu0 %1000, %v997
        %v1002 = vpop.permute.xlu0 %1001
        %1005 = vset.pattern.permute.xlu0 2
        %1006 = vperm.xlu0 %1005, %v998
        %v1007 = vpop.permute.xlu0 %1006
        %v1009 = vmul.f32 %v988, %v1002
        %v1010 = vmul.f32 %v989, %v1002
        %v1011 = vmul.f32 %v990, %v1002
        %v1012 = vmul.f32 %v988, %v1007
        %v1013 = vmul.f32 %v989, %v1007
        %v1014 = vmul.f32 %v990, %v1007
        %v1015 = vadd.f32 %v970, %v1009
        %v1016 = vadd.f32 %v971, %v1010
        %v1017 = vadd.f32 %v972, %v1011
        %v1018 = vadd.f32 %v973, %v1012
        %v1019 = vadd.f32 %v974, %v1013
        %v1020 = vadd.f32 %v975, %v1014
        %vm1021 = vcmp.ge.s32.totalorder %v565, 224
        %vm1022 = vcmp.ge.s32.totalorder %v744, 224
        %vm1023 = vcmp.ge.s32.totalorder %v745, 224
        %vm1024 = vcmp.lt.s32.totalorder %v565, 256
        %vm1025 = vcmp.lt.s32.totalorder %v744, 256
        %vm1026 = vcmp.lt.s32.totalorder %v745, 256
        %vm1027 = vmand %vm1021, %vm1024
        %vm1028 = vmand %vm1022, %vm1025
        %vm1029 = vmand %vm1023, %vm1026
        %v1030 = vsel %vm1027, 1, 0
        %v1031 = vsel %vm1028, 1, 0
        %v1032 = vsel %vm1029, 1, 0
        %v1033 = vcvt.s32.f32 %v1030
        %v1034 = vcvt.s32.f32 %v1031
        %v1035 = vcvt.s32.f32 %v1032
        %1036 = vrot.lane.b32.xlu0 %v742, 126
        %v1037 = vpop.permute.xlu0 %1036
        %1038 = vrot.lane.b32.xlu0 %v743, 126
        %v1039 = vpop.permute.xlu0 %1038
        %v1042 = vmul.f32 %v893, %v1037
        %v1043 = vmul.f32 %v894, %v1039
        %1045 = vset.pattern.permute.xlu0 0
        %1046 = vperm.xlu0 %1045, %v1042
        %v1047 = vpop.permute.xlu0 %1046
        %1050 = vset.pattern.permute.xlu0 0
        %1051 = vperm.xlu0 %1050, %v1043
        %v1052 = vpop.permute.xlu0 %1051
        %v1054 = vmul.f32 %v1033, %v1047
        %v1055 = vmul.f32 %v1034, %v1047
        %v1056 = vmul.f32 %v1035, %v1047
        %v1057 = vmul.f32 %v1033, %v1052
        %v1058 = vmul.f32 %v1034, %v1052
        %v1059 = vmul.f32 %v1035, %v1052
        %v1060 = vadd.f32 %v1015, %v1054
        %v1061 = vadd.f32 %v1016, %v1055
        %v1062 = vadd.f32 %v1017, %v1056
        %v1063 = vadd.f32 %v1018, %v1057
        %v1064 = vadd.f32 %v1019, %v1058
        %v1065 = vadd.f32 %v1020, %v1059
        %vm1066 = vcmp.ge.s32.totalorder %v565, 256
        %vm1067 = vcmp.ge.s32.totalorder %v744, 256
        %vm1068 = vcmp.ge.s32.totalorder %v745, 256
        %vm1069 = vcmp.lt.s32.totalorder %v565, 288
        %vm1070 = vcmp.lt.s32.totalorder %v744, 288
        %vm1071 = vcmp.lt.s32.totalorder %v745, 288
        %vm1072 = vmand %vm1066, %vm1069
        %vm1073 = vmand %vm1067, %vm1070
        %vm1074 = vmand %vm1068, %vm1071
        %v1075 = vsel %vm1072, 1, 0
        %v1076 = vsel %vm1073, 1, 0
        %v1077 = vsel %vm1074, 1, 0
        %v1078 = vcvt.s32.f32 %v1075
        %v1079 = vcvt.s32.f32 %v1076
        %v1080 = vcvt.s32.f32 %v1077
        %v1081 = vmul.f32 %v724, %v724
        %v1082 = vmul.f32 %v725, %v725
        %v1083 = vmul.f32 %v734, %v734
        %v1084 = vmul.f32 %v735, %v735
        %1087 = vrot.lane.b32.xlu0 %v1083, 127
        %v1088 = vpop.permute.xlu0 %1087
        %1089 = vrot.lane.b32.xlu0 %v1084, 127
        %v1090 = vpop.permute.xlu0 %1089
        %v1093 = vsub.f32 %v1081, %v1088
        %v1094 = vsub.f32 %v1082, %v1090
        %v1095 = vmul.f32 %v1093, 1.9364917
        %v1096 = vmul.f32 %v1094, 1.9364917
        %1098 = vset.pattern.permute.xlu0 0
        %1099 = vperm.xlu0 %1098, %v1095
        %v1100 = vpop.permute.xlu0 %1099
        %1103 = vset.pattern.permute.xlu0 0
        %1104 = vperm.xlu0 %1103, %v1096
        %v1105 = vpop.permute.xlu0 %1104
        %v1107 = vmul.f32 %v1078, %v1100
        %v1108 = vmul.f32 %v1079, %v1100
        %v1109 = vmul.f32 %v1080, %v1100
        %v1110 = vmul.f32 %v1078, %v1105
        %v1111 = vmul.f32 %v1079, %v1105
        %v1112 = vmul.f32 %v1080, %v1105
        %v1113 = vadd.f32 %v1060, %v1107
        %v1114 = vadd.f32 %v1061, %v1108
        %v1115 = vadd.f32 %v1062, %v1109
        %v1116 = vadd.f32 %v1063, %v1110
        %v1117 = vadd.f32 %v1064, %v1111
        %v1118 = vadd.f32 %v1065, %v1112
        %v1119 = vcvt.s32.f32 %v565
        %v1120 = vadd.f32 %v1119, 1.0
        %v1121 = vmul.f32 %v710, 0.62831855
        %v1122 = vmul.f32 %v717, 0.62831855
        %1124 = vset.pattern.permute.xlu0 0
        %1125 = vperm.xlu0 %1124, %v1121
        %v1126 = vpop.permute.xlu0 %1125
        %1129 = vset.pattern.permute.xlu0 0
        %1130 = vperm.xlu0 %1129, %v1122
        %v1131 = vpop.permute.xlu0 %1130
        %v1133 = vmul.f32 %v1126, %v1120
        %v1134 = vmul.f32 %v1131, %v1120
        %v1135 = vand.u32 2147483647, %v1133
        %vm1136 = vcmp.le.f32.partialorder %v1135, 0.7853982
        %vm1137 = vcmp.lt.s32.totalorder %v1133, 0
        %v1138 = vand.u32 %v1133, 2139095040
        %v1139 = vshrl.u32 %v1138, 23
        %v1140 = vsub.s32 %v1139, 127
        %v1141 = vand.u32 2147483647, %v1133
        %v1142 = vand.u32 %v1141, 8388607
        %v1143 = vor.u32 %v1142, 8388608
        %v1144 = vsub.s32 0, %v1143
        %v1145 = vadd.s32 %v1140, 1
        %vm1146 = vcmp.gt.s32.totalorder %v1145, 0
        %v1147 = vsel %vm1146, %v1145, 0
        %v1148 = vshrl.u32 %v1147, 5
        %v1149 = vand.u32 %v1147, 31
        %v1150 = vsub.s32 32, %v1149
        %v1151 = vshrl.u32 683565275, %v1150
        %v1152 = vshll.u32 683565275, %v1149
        %v1153 = vshrl.u32 2475754826, %v1150
        %v1154 = vor.u32 %v1152, %v1153
        %v1155 = vshll.u32 2475754826, %v1149
        %v1156 = vshrl.u32 2131351028, %v1150
        %v1157 = vor.u32 %v1155, %v1156
        %v1158 = vshll.u32 2131351028, %v1149
        %v1159 = vshrl.u32 2102212464, %v1150
        %v1160 = vor.u32 %v1158, %v1159
        %v1161 = vshll.u32 2102212464, %v1149
        %v1162 = vshrl.u32 920167782, %v1150
        %v1163 = vor.u32 %v1161, %v1162
        %v1164 = vshll.u32 920167782, %v1149
        %v1165 = vshrl.u32 1326507024, %v1150
        %v1166 = vor.u32 %v1164, %v1165
        %vm1167 = vcmp.lt.s32.totalorder %v1148, 1
        %vm1168 = vcmp.lt.s32.totalorder %v1148, 2
        %vm1169 = vcmp.lt.s32.totalorder %v1148, 3
        %vm1170 = vcmp.lt.s32.totalorder %v1148, 4
        %v1171 = vsel %vm1167, %v1151, %v1154
        %v1172 = vsel %vm1170, %v1160, 2102212464
        %v1173 = vsel %vm1169, %v1157, %v1172
        %v1174 = vsel %vm1168, %v1171, %v1173
        %v1175 = vsel %vm1167, %v1154, %v1157
        %v1176 = vsel %vm1170, %v1163, 920167782
        %v1177 = vsel %vm1169, %v1160, %v1176
        %v1178 = vsel %vm1168, %v1175, %v1177
        %v1179 = vsel %vm1167, %v1157, %v1160
        %v1180 = vsel %vm1170, %v1166, 1326507024
        %v1181 = vsel %vm1169, %v1163, %v1180
        %v1182 = vsel %vm1168, %v1179, %v1181
        %v1183 = vshll.u32 %v1143, 8
        %v1184 = vmul.u32.u64.compose %v1183, %v1182
        %v1185 = vextract.low.u32 %v1184
        %v1186 = vextract.high.u32 %v1184
        %v1187 = vmul.u32.u64.compose %v1183, %v1178
        %v1188 = vextract.low.u32 %v1187
        %v1189 = vextract.high.u32 %v1187
        %v1190 = vmul.u32 %v1183, %v1174
        %v1191 = vadd.s32 %v1186, %v1188
        %vm1192 = vc.u32 %v1186, %v1188
        %v1193 = vadd.s32 %v1189, 1
        %v1194 = vsel %vm1192, %v1193, %v1189
        %v1195 = vadd.s32 %v1190, %v1194
        %v1196 = vadd.s32 %v1195, 536870912
        %v1197 = vshrl.u32 %v1196, 30
        %v1198 = vshll.u32 %v1197, 30
        %v1199 = vsub.s32 %v1195, %v1198
        %vm1200 = vcmp.lt.s32.totalorder %v1199, 0
        %v1201 = vsub.s32 0, %v1199
        %v1202 = vsel %vm1200, %v1201, %v1199
        %v1203 = vclz %v1202
        %v1204 = vsub.s32 %v1203, 2
        %vm1205 = vcmp.gt.s32.totalorder 0, %v1204
        %v1206 = vsel %vm1205, 0, %v1204
        %v1207 = vsub.s32 32, %v1206
        %v1208 = vshll.u32 %v1199, %v1206
        %v1209 = vshrl.u32 %v1191, %v1207
        %v1210 = vor.u32 %v1208, %v1209
        %v1211 = vsub.s32 4294967266, %v1206
        %v1212 = vadd.s32 %v1211, 127
        %v1213 = vshll.u32 %v1212, 23
        %v1214 = vor.u32 4788187, %v1213
        %v1215 = vand.u32 2147483647, %v1214
        %v1217 = vcvt.s32.f32 %v1210
        %v1218 = vmul.f32 %v1217, %v1215
        %v1219 = vxor.u32 %v1218, 2147483648
        %v1220 = vsel %vm1137, %v1219, %v1218
        %v1221 = vsub.s32 4, %v1197
        %v1222 = vsel %vm1137, %v1221, %v1197
        %v1223 = vsel %vm1136, %v1133, %v1220
        %v1224 = vsel %vm1136, 0, %v1222
        %v1225 = vcosq.f32.pop %v1223
        %v1226 = vsinq.f32.pop %v1223
        %vm1227 = vweird.f32 %v1133
        %v1228 = vadd.s32 %v1224, 3
        %v1229 = vand.u32 %v1228, 3
        %vm1230 = vcmp.lt.s32.totalorder %v1229, 2
        %vm1231 = vcmp.eq.s32.totalorder %v1229, 0
        %v1232 = vxor.u32 %v1226, 2147483648
        %v1233 = vsel %vm1231, %v1225, %v1232
        %vm1234 = vcmp.eq.s32.totalorder %v1229, 2
        %v1235 = vxor.u32 %v1225, 2147483648
        %v1236 = vsel %vm1234, %v1235, %v1226
        %v1237 = vsel %vm1230, %v1233, %v1236
        %v1238 = vsel %vm1227, nan, %v1237
        %v1239 = vand.u32 2147483647, %v1134
        %vm1240 = vcmp.le.f32.partialorder %v1239, 0.7853982
        %vm1241 = vcmp.lt.s32.totalorder %v1134, 0
        %v1242 = vand.u32 %v1134, 2139095040
        %v1243 = vshrl.u32 %v1242, 23
        %v1244 = vsub.s32 %v1243, 127
        %v1245 = vand.u32 2147483647, %v1134
        %v1246 = vand.u32 %v1245, 8388607
        %v1247 = vor.u32 %v1246, 8388608
        %v1248 = vsub.s32 0, %v1247
        %v1249 = vadd.s32 %v1244, 1
        %vm1250 = vcmp.gt.s32.totalorder %v1249, 0
        %v1251 = vsel %vm1250, %v1249, 0
        %v1252 = vshrl.u32 %v1251, 5
        %v1253 = vand.u32 %v1251, 31
        %v1254 = vsub.s32 32, %v1253
        %v1255 = vshrl.u32 683565275, %v1254
        %v1256 = vshll.u32 683565275, %v1253
        %v1257 = vshrl.u32 2475754826, %v1254
        %v1258 = vor.u32 %v1256, %v1257
        %v1259 = vshll.u32 2475754826, %v1253
        %v1260 = vshrl.u32 2131351028, %v1254
        %v1261 = vor.u32 %v1259, %v1260
        %v1262 = vshll.u32 2131351028, %v1253
        %v1263 = vshrl.u32 2102212464, %v1254
        %v1264 = vor.u32 %v1262, %v1263
        %v1265 = vshll.u32 2102212464, %v1253
        %v1266 = vshrl.u32 920167782, %v1254
        %v1267 = vor.u32 %v1265, %v1266
        %v1268 = vshll.u32 920167782, %v1253
        %v1269 = vshrl.u32 1326507024, %v1254
        %v1270 = vor.u32 %v1268, %v1269
        %vm1271 = vcmp.lt.s32.totalorder %v1252, 1
        %vm1272 = vcmp.lt.s32.totalorder %v1252, 2
        %vm1273 = vcmp.lt.s32.totalorder %v1252, 3
        %vm1274 = vcmp.lt.s32.totalorder %v1252, 4
        %v1275 = vsel %vm1271, %v1255, %v1258
        %v1276 = vsel %vm1274, %v1264, 2102212464
        %v1277 = vsel %vm1273, %v1261, %v1276
        %v1278 = vsel %vm1272, %v1275, %v1277
        %v1279 = vsel %vm1271, %v1258, %v1261
        %v1280 = vsel %vm1274, %v1267, 920167782
        %v1281 = vsel %vm1273, %v1264, %v1280
        %v1282 = vsel %vm1272, %v1279, %v1281
        %v1283 = vsel %vm1271, %v1261, %v1264
        %v1284 = vsel %vm1274, %v1270, 1326507024
        %v1285 = vsel %vm1273, %v1267, %v1284
        %v1286 = vsel %vm1272, %v1283, %v1285
        %v1287 = vshll.u32 %v1247, 8
        %v1288 = vmul.u32.u64.compose %v1287, %v1286
        %v1289 = vextract.low.u32 %v1288
        %v1290 = vextract.high.u32 %v1288
        %v1291 = vmul.u32.u64.compose %v1287, %v1282
        %v1292 = vextract.low.u32 %v1291
        %v1293 = vextract.high.u32 %v1291
        %v1294 = vmul.u32 %v1287, %v1278
        %v1295 = vadd.s32 %v1290, %v1292
        %vm1296 = vc.u32 %v1290, %v1292
        %v1297 = vadd.s32 %v1293, 1
        %v1298 = vsel %vm1296, %v1297, %v1293
        %v1299 = vadd.s32 %v1294, %v1298
        %v1300 = vadd.s32 %v1299, 536870912
        %v1301 = vshrl.u32 %v1300, 30
        %v1302 = vshll.u32 %v1301, 30
        %v1303 = vsub.s32 %v1299, %v1302
        %vm1304 = vcmp.lt.s32.totalorder %v1303, 0
        %v1305 = vsub.s32 0, %v1303
        %v1306 = vsel %vm1304, %v1305, %v1303
        %v1307 = vclz %v1306
        %v1308 = vsub.s32 %v1307, 2
        %vm1309 = vcmp.gt.s32.totalorder 0, %v1308
        %v1310 = vsel %vm1309, 0, %v1308
        %v1311 = vsub.s32 32, %v1310
        %v1312 = vshll.u32 %v1303, %v1310
        %v1313 = vshrl.u32 %v1295, %v1311
        %v1314 = vor.u32 %v1312, %v1313
        %v1315 = vsub.s32 4294967266, %v1310
        %v1316 = vadd.s32 %v1315, 127
        %v1317 = vshll.u32 %v1316, 23
        %v1318 = vor.u32 4788187, %v1317
        %v1319 = vand.u32 2147483647, %v1318
        %v1321 = vcvt.s32.f32 %v1314
        %v1322 = vmul.f32 %v1321, %v1319
        %v1323 = vxor.u32 %v1322, 2147483648
        %v1324 = vsel %vm1241, %v1323, %v1322
        %v1325 = vsub.s32 4, %v1301
        %v1326 = vsel %vm1241, %v1325, %v1301
        %v1327 = vsel %vm1240, %v1134, %v1324
        %v1328 = vsel %vm1240, 0, %v1326
        %v1329 = vcosq.f32.pop %v1327
        %v1330 = vsinq.f32.pop %v1327
        %vm1331 = vweird.f32 %v1134
        %v1332 = vadd.s32 %v1328, 3
        %v1333 = vand.u32 %v1332, 3
        %vm1334 = vcmp.lt.s32.totalorder %v1333, 2
        %vm1335 = vcmp.eq.s32.totalorder %v1333, 0
        %v1336 = vxor.u32 %v1330, 2147483648
        %v1337 = vsel %vm1335, %v1329, %v1336
        %vm1338 = vcmp.eq.s32.totalorder %v1333, 2
        %v1339 = vxor.u32 %v1329, 2147483648
        %v1340 = vsel %vm1338, %v1339, %v1330
        %v1341 = vsel %vm1334, %v1337, %v1340
        %v1342 = vsel %vm1331, nan, %v1341
        %v1343 = vmul.f32 %v1238, 0.6324555
        %v1344 = vmul.f32 %v1342, 0.6324555
        %1345 = vset.pattern.permute.xlu0 0
        %1346 = vperm.xlu0 %1345, %v721
        %v1347 = vpop.permute.xlu0 %1346
        %1349 = vset.pattern.permute.xlu0 0
        %1350 = vperm.xlu0 %1349, %v723
        %v1351 = vpop.permute.xlu0 %1350
        %v1353 = vmul.f32 %v1343, %v1347
        %v1354 = vmul.f32 %v1344, %v1351
        %v1355 = vrcp.pop 5.0
        %v1356 = vmul.f32 %v710, %v1355
        %v1357 = vmul.f32 %v717, %v1355
        %v1358 = vmul.f32 %v1356, %v1356
        %v1359 = vmul.f32 %v1357, %v1357
        %v1360 = vmul.f32 %v1358, %v1358
        %v1361 = vmul.f32 %v1359, %v1359
        %v1362 = vmul.f32 %v1360, %v1356
        %v1363 = vmul.f32 %v1361, %v1357
        %v1364 = vmul.f32 %v1362, %v1356
        %v1365 = vmul.f32 %v1363, %v1357
        %v1366 = vmul.f32 %v1364, %v1356
        %v1367 = vmul.f32 %v1365, %v1357
        %v1368 = vmul.f32 %v1362, 21.0
        %v1369 = vmul.f32 %v1363, 21.0
        %v1370 = vsub.f32 1.0, %v1368
        %v1371 = vsub.f32 1.0, %v1369
        %v1372 = vmul.f32 %v1364, 35.0
        %v1373 = vmul.f32 %v1365, 35.0
        %v1374 = vadd.f32 %v1370, %v1372
        %v1375 = vadd.f32 %v1371, %v1373
        %v1376 = vmul.f32 %v1366, 15.0
        %v1377 = vmul.f32 %v1367, 15.0
        %v1378 = vsub.f32 %v1374, %v1376
        %v1379 = vsub.f32 %v1375, %v1377
        %vm1380 = vcmp.lt.f32.partialorder %v710, 5.0
        %vm1381 = vcmp.lt.f32.partialorder %v717, 5.0
        %v1382 = vsel %vm1380, %v1378, 0.0
        %v1383 = vsel %vm1381, %v1379, 0.0
        %1385 = vset.pattern.permute.xlu0 0
        %1386 = vperm.xlu0 %1385, %v1382
        %v1387 = vpop.permute.xlu0 %1386
        %1390 = vset.pattern.permute.xlu0 0
        %1391 = vperm.xlu0 %1390, %v1383
        %v1392 = vpop.permute.xlu0 %1391
        %v1394 = vmul.f32 %v1353, %v1387
        %v1395 = vmul.f32 %v1354, %v1392
        %v1397 = vsel %vm602, %v588, 0
        %v1400 = vsel %vm602, %v589, 0
        %1402 = vmatprep.subr.mxu0 %v560
        %1403 = vmatpush1.msra.mxu0 %v559
        %1404 = vmatprep.subr.mxu0 0.0
        %1405 = vmatpush1.msra.mxu0 0.0
        %1406 = vmatprep.subr.mxu0 0.0
        %1407 = vmatpush1.msra.mxu0 0.0
        %1408 = vmatprep.subr.mxu0 0.0
        %1409 = vmatpush1.msra.mxu0 0.0
        %1410 = vmatprep.subr.mxu0 0.0
        %1411 = vmatpush1.msra.mxu0 0.0
        %1412 = vmatprep.subr.mxu0 0.0
        %1413 = vmatpush1.msra.mxu0 0.0
        %1414 = vmatprep.subr.mxu0 0.0
        %1415 = vmatpush1.msra.mxu0 0.0
        %1416 = vmatprep.subr.mxu0 0.0
        %1417 = vmatpush1.msra.mxu0 0.0
        %1418 = vmatprep.subr.mxu0 0.0
        %1419 = vmatpush1.msra.mxu0 0.0
        %1420 = vmatprep.subr.mxu0 0.0
        %1421 = vmatpush1.msra.mxu0 0.0
        %1422 = vmatprep.subr.mxu0 0.0
        %1423 = vmatpush1.msra.mxu0 0.0
        %1424 = vmatprep.subr.mxu0 0.0
        %1425 = vmatpush1.msra.mxu0 0.0
        %1426 = vmatprep.subr.mxu0 0.0
        %1427 = vmatpush1.msra.mxu0 0.0
        %1428 = vmatprep.subr.mxu0 0.0
        %1429 = vmatpush1.msra.mxu0 0.0
        %1430 = vmatprep.subr.mxu0 0.0
        %1431 = vmatpush1.msra.mxu0 0.0
        %1432 = vmatprep.subr.mxu0 0.0
        %1433 = vmatpush1.msra.mxu0 0.0
        %1434 = vmatprep.subr.mxu0 0.0
        %1435 = vmatpush1.msra.mxu0 0.0
        %1436 = vmatprep.subr.mxu0 0.0
        %1437 = vmatpush1.msra.mxu0 0.0
        %1438 = vmatprep.subr.mxu0 0.0
        %1439 = vmatpush1.msra.mxu0 0.0
        %1440 = vmatprep.subr.mxu0 0.0
        %1441 = vmatpush1.msra.mxu0 0.0
        %1442 = vmatprep.subr.mxu0 0.0
        %1443 = vmatpush1.msra.mxu0 0.0
        %1444 = vmatprep.subr.mxu0 0.0
        %1445 = vmatpush1.msra.mxu0 0.0
        %1446 = vmatprep.subr.mxu0 0.0
        %1447 = vmatpush1.msra.mxu0 0.0
        %1448 = vmatprep.subr.mxu0 0.0
        %1449 = vmatpush1.msra.mxu0 0.0
        %1450 = vmatprep.subr.mxu0 0.0
        %1451 = vmatpush1.msra.mxu0 0.0
        %1452 = vmatprep.subr.mxu0 0.0
        %1453 = vmatpush1.msra.mxu0 0.0
        %1454 = vmatprep.subr.mxu0 0.0
        %1455 = vmatpush1.msra.mxu0 0.0
        %1456 = vmatprep.subr.mxu0 0.0
        %1457 = vmatpush1.msra.mxu0 0.0
        %1458 = vmatprep.subr.mxu0 0.0
        %1459 = vmatpush1.msra.mxu0 0.0
        %1460 = vmatprep.subr.mxu0 0.0
        %1461 = vmatpush1.msra.mxu0 0.0
        %1462 = vmatprep.subr.mxu0 0.0
        %1463 = vmatpush1.msra.mxu0 0.0
        %1464 = vmatprep.subr.mxu0 0.0
        %1465 = vmatpush1.msra.mxu0 0.0
        %1466 = vmatprep.mubr.f32.mxu0 0.0
        %1467 = vmatmul.mubr.f32.gmra.mrb[0].mxu0 %v1397
        %v1468 = vpop.f32.mrb[0].mxu0
        %v1469 = vadd.f32 0.0, %v1468
        %v1470 = vpop.f32.mrb[0].mxu0
        %v1471 = vadd.f32 0.0, %v1470
        %1472 = vmatprep.mubr.f32.mxu0 0.0
        %1473 = vmatmul.mubr.f32.gmra.mrb[0].mxu0 %v1400
        %v1474 = vpop.f32.mrb[0].mxu0
        %v1475 = vadd.f32 0.0, %v1474
        %v1476 = vpop.f32.mrb[0].mxu0
        %v1477 = vadd.f32 0.0, %v1476
        %1478 = vdwg.mxu0
        %1479 = vmatprep.subr.mxu0 0.0
        %1480 = vmatpush1.msra.mxu0 %v561
        %1481 = vmatprep.subr.mxu0 0.0
        %1482 = vmatpush1.msra.mxu0 0.0
        %1483 = vmatprep.subr.mxu0 0.0
        %1484 = vmatpush1.msra.mxu0 0.0
        %1485 = vmatprep.subr.mxu0 0.0
        %1486 = vmatpush1.msra.mxu0 0.0
        %1487 = vmatprep.subr.mxu0 0.0
        %1488 = vmatpush1.msra.mxu0 0.0
        %1489 = vmatprep.subr.mxu0 0.0
        %1490 = vmatpush1.msra.mxu0 0.0
        %1491 = vmatprep.subr.mxu0 0.0
        %1492 = vmatpush1.msra.mxu0 0.0
        %1493 = vmatprep.subr.mxu0 0.0
        %1494 = vmatpush1.msra.mxu0 0.0
        %1495 = vmatprep.subr.mxu0 0.0
        %1496 = vmatpush1.msra.mxu0 0.0
        %1497 = vmatprep.subr.mxu0 0.0
        %1498 = vmatpush1.msra.mxu0 0.0
        %1499 = vmatprep.subr.mxu0 0.0
        %1500 = vmatpush1.msra.mxu0 0.0
        %1501 = vmatprep.subr.mxu0 0.0
        %1502 = vmatpush1.msra.mxu0 0.0
        %1503 = vmatprep.subr.mxu0 0.0
        %1504 = vmatpush1.msra.mxu0 0.0
        %1505 = vmatprep.subr.mxu0 0.0
        %1506 = vmatpush1.msra.mxu0 0.0
        %1507 = vmatprep.subr.mxu0 0.0
        %1508 = vmatpush1.msra.mxu0 0.0
        %1509 = vmatprep.subr.mxu0 0.0
        %1510 = vmatpush1.msra.mxu0 0.0
        %1511 = vmatprep.subr.mxu0 0.0
        %1512 = vmatpush1.msra.mxu0 0.0
        %1513 = vmatprep.subr.mxu0 0.0
        %1514 = vmatpush1.msra.mxu0 0.0
        %1515 = vmatprep.subr.mxu0 0.0
        %1516 = vmatpush1.msra.mxu0 0.0
        %1517 = vmatprep.subr.mxu0 0.0
        %1518 = vmatpush1.msra.mxu0 0.0
        %1519 = vmatprep.subr.mxu0 0.0
        %1520 = vmatpush1.msra.mxu0 0.0
        %1521 = vmatprep.subr.mxu0 0.0
        %1522 = vmatpush1.msra.mxu0 0.0
        %1523 = vmatprep.subr.mxu0 0.0
        %1524 = vmatpush1.msra.mxu0 0.0
        %1525 = vmatprep.subr.mxu0 0.0
        %1526 = vmatpush1.msra.mxu0 0.0
        %1527 = vmatprep.subr.mxu0 0.0
        %1528 = vmatpush1.msra.mxu0 0.0
        %1529 = vmatprep.subr.mxu0 0.0
        %1530 = vmatpush1.msra.mxu0 0.0
        %1531 = vmatprep.subr.mxu0 0.0
        %1532 = vmatpush1.msra.mxu0 0.0
        %1533 = vmatprep.subr.mxu0 0.0
        %1534 = vmatpush1.msra.mxu0 0.0
        %1535 = vmatprep.subr.mxu0 0.0
        %1536 = vmatpush1.msra.mxu0 0.0
        %1537 = vmatprep.subr.mxu0 0.0
        %1538 = vmatpush1.msra.mxu0 0.0
        %1539 = vmatprep.subr.mxu0 0.0
        %1540 = vmatpush1.msra.mxu0 0.0
        %1541 = vmatprep.subr.mxu0 0.0
        %1542 = vmatpush1.msra.mxu0 0.0
        %1543 = vmatprep.mubr.f32.mxu0 0.0
        %1544 = vmatmul.mubr.f32.gmra.mrb[0].mxu0 %v1397
        %v1545 = vpop.f32.mrb[0].mxu0
        %v1546 = vadd.f32 0.0, %v1545
        %v1547 = vpop.f32.mrb[0].mxu0
        %1548 = vmatprep.mubr.f32.mxu0 0.0
        %1549 = vmatmul.mubr.f32.gmra.mrb[0].mxu0 %v1400
        %v1550 = vpop.f32.mrb[0].mxu0
        %v1551 = vadd.f32 0.0, %v1550
        %v1552 = vpop.f32.mrb[0].mxu0
        %1553 = vdwg.mxu0
        %v1554 = vld [vmem:[#allocation5] sm:$0xff]
        %v1555 = vld [vmem:[#allocation7] sm:$0x1]
        %v1557 = vlaneseq
        %v1558 = vshrl.u32 %v1557, 7
        %v1559 = vsub.s32 0, %v1558
        %v1560 = vrot.slane %v1555, %v1559
        %v1563 = vsel %vm602, %v1394, 0
        %v1566 = vsel %vm602, %v1395, 0
        %1568 = vmatprep.subr.mxu0 0.0
        %1569 = vmatpush1.msra.mxu0 %v1554
        %1570 = vmatprep.subr.mxu0 0.0
        %1571 = vmatpush1.msra.mxu0 0.0
        %1572 = vmatprep.subr.mxu0 0.0
        %1573 = vmatpush1.msra.mxu0 0.0
        %1574 = vmatprep.subr.mxu0 0.0
        %1575 = vmatpush1.msra.mxu0 0.0
        %1576 = vmatprep.subr.mxu0 0.0
        %1577 = vmatpush1.msra.mxu0 0.0
        %1578 = vmatprep.subr.mxu0 0.0
        %1579 = vmatpush1.msra.mxu0 0.0
        %1580 = vmatprep.subr.mxu0 0.0
        %1581 = vmatpush1.msra.mxu0 0.0
        %1582 = vmatprep.subr.mxu0 0.0
        %1583 = vmatpush1.msra.mxu0 0.0
        %1584 = vmatprep.subr.mxu0 0.0
        %1585 = vmatpush1.msra.mxu0 0.0
        %1586 = vmatprep.subr.mxu0 0.0
        %1587 = vmatpush1.msra.mxu0 0.0
        %1588 = vmatprep.subr.mxu0 0.0
        %1589 = vmatpush1.msra.mxu0 0.0
        %1590 = vmatprep.subr.mxu0 0.0
        %1591 = vmatpush1.msra.mxu0 0.0
        %1592 = vmatprep.subr.mxu0 0.0
        %1593 = vmatpush1.msra.mxu0 0.0
        %1594 = vmatprep.subr.mxu0 0.0
        %1595 = vmatpush1.msra.mxu0 0.0
        %1596 = vmatprep.subr.mxu0 0.0
        %1597 = vmatpush1.msra.mxu0 0.0
        %1598 = vmatprep.subr.mxu0 0.0
        %1599 = vmatpush1.msra.mxu0 0.0
        %1600 = vmatprep.subr.mxu0 0.0
        %1601 = vmatpush1.msra.mxu0 0.0
        %1602 = vmatprep.subr.mxu0 0.0
        %1603 = vmatpush1.msra.mxu0 0.0
        %1604 = vmatprep.subr.mxu0 0.0
        %1605 = vmatpush1.msra.mxu0 0.0
        %1606 = vmatprep.subr.mxu0 0.0
        %1607 = vmatpush1.msra.mxu0 0.0
        %1608 = vmatprep.subr.mxu0 0.0
        %1609 = vmatpush1.msra.mxu0 0.0
        %1610 = vmatprep.subr.mxu0 0.0
        %1611 = vmatpush1.msra.mxu0 0.0
        %1612 = vmatprep.subr.mxu0 0.0
        %1613 = vmatpush1.msra.mxu0 0.0
        %1614 = vmatprep.subr.mxu0 0.0
        %1615 = vmatpush1.msra.mxu0 0.0
        %1616 = vmatprep.subr.mxu0 0.0
        %1617 = vmatpush1.msra.mxu0 0.0
        %1618 = vmatprep.subr.mxu0 0.0
        %1619 = vmatpush1.msra.mxu0 0.0
        %1620 = vmatprep.subr.mxu0 0.0
        %1621 = vmatpush1.msra.mxu0 0.0
        %1622 = vmatprep.subr.mxu0 0.0
        %1623 = vmatpush1.msra.mxu0 0.0
        %1624 = vmatprep.subr.mxu0 0.0
        %1625 = vmatpush1.msra.mxu0 0.0
        %1626 = vmatprep.subr.mxu0 0.0
        %1627 = vmatpush1.msra.mxu0 0.0
        %1628 = vmatprep.subr.mxu0 0.0
        %1629 = vmatpush1.msra.mxu0 0.0
        %1630 = vmatprep.subr.mxu0 0.0
        %1631 = vmatpush1.msra.mxu0 0.0
        %1632 = vmatprep.mubr.f32.mxu0 0.0
        %1633 = vmatmul.mubr.f32.gmra.mrb[0].mxu0 %v1563
        %v1634 = vpop.f32.mrb[0].mxu0
        %v1635 = vadd.f32 %v1560, %v1634
        %v1636 = vpop.f32.mrb[0].mxu0
        %1637 = vmatprep.mubr.f32.mxu0 0.0
        %1638 = vmatmul.mubr.f32.gmra.mrb[0].mxu0 %v1566
        %v1639 = vpop.f32.mrb[0].mxu0
        %v1640 = vadd.f32 %v1560, %v1639
        %v1641 = vpop.f32.mrb[0].mxu0
        %1642 = vdwg.mxu0
        %v1643 = vmax.f32 %v1635, 0.0
        %v1644 = vmax.f32 %v1640, 0.0
        %v1645 = vld [vmem:[#allocation8] sm:$0xff]
        %v1646 = vld [vmem:[#allocation8 + $0x8] sm:$0xff]
        %v1647 = vld [vmem:[#allocation8 + $0x10] sm:$0xff]
        %v1648 = vld [vmem:[#allocation8 + $0x18] sm:$0xff]
        %v1649 = vld [vmem:[#allocation8 + $0x20] sm:$0xff]
        %v1650 = vld [vmem:[#allocation8 + $0x28] sm:$0xff]
        %v1651 = vld [vmem:[#allocation8 + $0x30] sm:$0xff]
        %v1652 = vld [vmem:[#allocation8 + $0x38] sm:$0xff]
        %v1653 = vld [vmem:[#allocation10] sm:$0x3]
        %v1655 = vlaneseq
        %v1656 = vshrl.u32 %v1655, 7
        %v1657 = vsub.s32 0, %v1656
        %v1658 = vrot.slane %v1653, %v1657
        %v1659 = vlaneseq
        %v1660 = vshrl.u32 %v1659, 7
        %v1661 = vsub.s32 1, %v1660
        %v1662 = vrot.slane %v1653, %v1661
        %vm1665 = vcmask 261120
        %v1667 = vsel %vm1665, %v1643, 0
        %v1670 = vsel %vm1665, %v1644, 0
        %1672 = vmatprep.subr.mxu0 %v1646
        %1673 = vmatpush1.msra.mxu0 %v1645
        %1674 = vmatprep.subr.mxu0 %v1648
        %1675 = vmatpush1.msra.mxu0 %v1647
        %1676 = vmatprep.subr.mxu0 %v1650
        %1677 = vmatpush1.msra.mxu0 %v1649
        %1678 = vmatprep.subr.mxu0 %v1652
        %1679 = vmatpush1.msra.mxu0 %v1651
        %1680 = vmatprep.subr.mxu0 0.0
        %1681 = vmatpush1.msra.mxu0 0.0
        %1682 = vmatprep.subr.mxu0 0.0
        %1683 = vmatpush1.msra.mxu0 0.0
        %1684 = vmatprep.subr.mxu0 0.0
        %1685 = vmatpush1.msra.mxu0 0.0
        %1686 = vmatprep.subr.mxu0 0.0
        %1687 = vmatpush1.msra.mxu0 0.0
        %1688 = vmatprep.subr.mxu0 0.0
        %1689 = vmatpush1.msra.mxu0 0.0
        %1690 = vmatprep.subr.mxu0 0.0
        %1691 = vmatpush1.msra.mxu0 0.0
        %1692 = vmatprep.subr.mxu0 0.0
        %1693 = vmatpush1.msra.mxu0 0.0
        %1694 = vmatprep.subr.mxu0 0.0
        %1695 = vmatpush1.msra.mxu0 0.0
        %1696 = vmatprep.subr.mxu0 0.0
        %1697 = vmatpush1.msra.mxu0 0.0
        %1698 = vmatprep.subr.mxu0 0.0
        %1699 = vmatpush1.msra.mxu0 0.0
        %1700 = vmatprep.subr.mxu0 0.0
        %1701 = vmatpush1.msra.mxu0 0.0
        %1702 = vmatprep.subr.mxu0 0.0
        %1703 = vmatpush1.msra.mxu0 0.0
        %1704 = vmatprep.subr.mxu0 0.0
        %1705 = vmatpush1.msra.mxu0 0.0
        %1706 = vmatprep.subr.mxu0 0.0
        %1707 = vmatpush1.msra.mxu0 0.0
        %1708 = vmatprep.subr.mxu0 0.0
        %1709 = vmatpush1.msra.mxu0 0.0
        %1710 = vmatprep.subr.mxu0 0.0
        %1711 = vmatpush1.msra.mxu0 0.0
        %1712 = vmatprep.subr.mxu0 0.0
        %1713 = vmatpush1.msra.mxu0 0.0
        %1714 = vmatprep.subr.mxu0 0.0
        %1715 = vmatpush1.msra.mxu0 0.0
        %1716 = vmatprep.subr.mxu0 0.0
        %1717 = vmatpush1.msra.mxu0 0.0
        %1718 = vmatprep.subr.mxu0 0.0
        %1719 = vmatpush1.msra.mxu0 0.0
        %1720 = vmatprep.subr.mxu0 0.0
        %1721 = vmatpush1.msra.mxu0 0.0
        %1722 = vmatprep.subr.mxu0 0.0
        %1723 = vmatpush1.msra.mxu0 0.0
        %1724 = vmatprep.subr.mxu0 0.0
        %1725 = vmatpush1.msra.mxu0 0.0
        %1726 = vmatprep.subr.mxu0 0.0
        %1727 = vmatpush1.msra.mxu0 0.0
        %1728 = vmatprep.subr.mxu0 0.0
        %1729 = vmatpush1.msra.mxu0 0.0
        %1730 = vmatprep.subr.mxu0 0.0
        %1731 = vmatpush1.msra.mxu0 0.0
        %1732 = vmatprep.subr.mxu0 0.0
        %1733 = vmatpush1.msra.mxu0 0.0
        %1734 = vmatprep.subr.mxu0 0.0
        %1735 = vmatpush1.msra.mxu0 0.0
        %1736 = vmatprep.mubr.f32.mxu0 0.0
        %1737 = vmatmul.mubr.f32.gmra.mrb[0].mxu0 %v1667
        %v1738 = vpop.f32.mrb[0].mxu0
        %v1739 = vadd.f32 %v1658, %v1738
        %v1740 = vpop.f32.mrb[0].mxu0
        %v1741 = vadd.f32 %v1662, %v1740
        %1742 = vmatprep.mubr.f32.mxu0 0.0
        %1743 = vmatmul.mubr.f32.gmra.mrb[0].mxu0 %v1670
        %v1744 = vpop.f32.mrb[0].mxu0
        %v1745 = vadd.f32 %v1658, %v1744
        %v1746 = vpop.f32.mrb[0].mxu0
        %v1747 = vadd.f32 %v1662, %v1746
        %1748 = vdwg.mxu0
        %v1749 = vld [vmem:[#allocation11] sm:$0xff]
        %v1750 = vld [vmem:[#allocation11 + $0x8] sm:$0xff]
        %v1751 = vld [vmem:[#allocation11 + $0x10] sm:$0xff]
        %v1752 = vld [vmem:[#allocation11 + $0x18] sm:$0xff]
        %v1753 = vld [vmem:[#allocation11 + $0x20] sm:$0xff]
        %v1754 = vld [vmem:[#allocation11 + $0x28] sm:$0xff]
        %v1755 = vld [vmem:[#allocation11 + $0x30] sm:$0xff]
        %v1756 = vld [vmem:[#allocation11 + $0x38] sm:$0xff]
        %v1757 = vld [vmem:[#allocation11 + $0x40] sm:$0xff]
        %v1758 = vld [vmem:[#allocation11 + $0x48] sm:$0xff]
        %v1759 = vld [vmem:[#allocation11 + $0x50] sm:$0xff]
        %v1760 = vld [vmem:[#allocation11 + $0x58] sm:$0xff]
        %v1761 = vld [vmem:[#allocation11 + $0x60] sm:$0xff]
        %v1762 = vld [vmem:[#allocation11 + $0x68] sm:$0xff]
        %v1763 = vld [vmem:[#allocation11 + $0x70] sm:$0xff]
        %v1764 = vld [vmem:[#allocation11 + $0x78] sm:$0xff]
        %v1765 = vld [vmem:[#allocation11 + $0x80] sm:$0xff]
        %v1766 = vld [vmem:[#allocation11 + $0x88] sm:$0xff]
        %v1767 = vld [vmem:[#allocation11 + $0x90] sm:$0xff]
        %v1768 = vld [vmem:[#allocation11 + $0x98] sm:$0xff]
        %v1769 = vld [vmem:[#allocation11 + $0xa0] sm:$0xff]
        %v1770 = vld [vmem:[#allocation11 + $0xa8] sm:$0xff]
        %v1771 = vld [vmem:[#allocation11 + $0xb0] sm:$0xff]
        %v1772 = vld [vmem:[#allocation11 + $0xb8] sm:$0xff]
        %v1773 = vld [vmem:[#allocation11 + $0xc0] sm:$0xff]
        %v1774 = vld [vmem:[#allocation11 + $0xc8] sm:$0xff]
        %v1775 = vld [vmem:[#allocation11 + $0xd0] sm:$0xff]
        %v1776 = vld [vmem:[#allocation11 + $0xd8] sm:$0xff]
        %v1777 = vld [vmem:[#allocation11 + $0xe0] sm:$0xff]
        %v1778 = vld [vmem:[#allocation11 + $0xe8] sm:$0xff]
        %v1779 = vld [vmem:[#allocation11 + $0xf0] sm:$0xff]
        %v1780 = vld [vmem:[#allocation11 + $0xf8] sm:$0xff]
        %v1781 = vld [vmem:[#allocation11 + $0x100] sm:$0xff]
        %v1782 = vld [vmem:[#allocation11 + $0x108] sm:$0xff]
        %v1783 = vld [vmem:[#allocation11 + $0x110] sm:$0xff]
        %v1784 = vld [vmem:[#allocation11 + $0x118] sm:$0xff]
        %v1785 = vld [vmem:[#allocation11 + $0x120] sm:$0xff]
        %v1786 = vld [vmem:[#allocation11 + $0x128] sm:$0xff]
        %v1787 = vld [vmem:[#allocation11 + $0x130] sm:$0xff]
        %v1788 = vld [vmem:[#allocation11 + $0x138] sm:$0xff]
        %v1789 = vld [vmem:[#allocation11 + $0x140] sm:$0xff]
        %v1790 = vld [vmem:[#allocation11 + $0x148] sm:$0xff]
        %v1791 = vld [vmem:[#allocation11 + $0x150] sm:$0xff]
        %v1792 = vld [vmem:[#allocation11 + $0x158] sm:$0xff]
        %v1793 = vld [vmem:[#allocation11 + $0x160] sm:$0xff]
        %v1794 = vld [vmem:[#allocation11 + $0x168] sm:$0xff]
        %v1795 = vld [vmem:[#allocation11 + $0x170] sm:$0xff]
        %v1796 = vld [vmem:[#allocation11 + $0x178] sm:$0xff]
        %v1797 = vld [vmem:[#allocation11 + $0x180] sm:$0xff]
        %v1798 = vld [vmem:[#allocation11 + $0x188] sm:$0xff]
        %v1799 = vld [vmem:[#allocation11 + $0x190] sm:$0xff]
        %v1800 = vld [vmem:[#allocation11 + $0x198] sm:$0xff]
        %v1801 = vld [vmem:[#allocation11 + $0x1a0] sm:$0xff]
        %v1802 = vld [vmem:[#allocation11 + $0x1a8] sm:$0xff]
        %v1803 = vld [vmem:[#allocation11 + $0x1b0] sm:$0xff]
        %v1804 = vld [vmem:[#allocation11 + $0x1b8] sm:$0xff]
        %v1805 = vld [vmem:[#allocation11 + $0x1c0] sm:$0xff]
        %v1806 = vld [vmem:[#allocation11 + $0x1c8] sm:$0xff]
        %v1807 = vld [vmem:[#allocation11 + $0x1d0] sm:$0xff]
        %v1808 = vld [vmem:[#allocation11 + $0x1d8] sm:$0xff]
        %v1810 = vsel %vm1665, %v1741, 0
        %v1813 = vsel %vm1665, %v1747, 0
        %1815 = vmatprep.subr.mxu0 %v1750
        %1816 = vmatpush1.msra.mxu0 %v1749
        %1817 = vmatprep.subr.mxu0 %v1753
        %1818 = vmatpush1.msra.mxu0 %v1752
        %1819 = vmatprep.subr.mxu0 %v1756
        %1820 = vmatpush1.msra.mxu0 %v1755
        %1821 = vmatprep.subr.mxu0 %v1759
        %1822 = vmatpush1.msra.mxu0 %v1758
        %1823 = vmatprep.subr.mxu0 %v1762
        %1824 = vmatpush1.msra.mxu0 %v1761
        %1825 = vmatprep.subr.mxu0 %v1765
        %1826 = vmatpush1.msra.mxu0 %v1764
        %1827 = vmatprep.subr.mxu0 %v1768
        %1828 = vmatpush1.msra.mxu0 %v1767
        %1829 = vmatprep.subr.mxu0 %v1771
        %1830 = vmatpush1.msra.mxu0 %v1770
        %1831 = vmatprep.subr.mxu0 %v1774
        %1832 = vmatpush1.msra.mxu0 %v1773
        %1833 = vmatprep.subr.mxu0 %v1777
        %1834 = vmatpush1.msra.mxu0 %v1776
        %1835 = vmatprep.subr.mxu0 %v1780
        %1836 = vmatpush1.msra.mxu0 %v1779
        %1837 = vmatprep.subr.mxu0 %v1783
        %1838 = vmatpush1.msra.mxu0 %v1782
        %1839 = vmatprep.subr.mxu0 %v1786
        %1840 = vmatpush1.msra.mxu0 %v1785
        %1841 = vmatprep.subr.mxu0 %v1789
        %1842 = vmatpush1.msra.mxu0 %v1788
        %1843 = vmatprep.subr.mxu0 %v1792
        %1844 = vmatpush1.msra.mxu0 %v1791
        %1845 = vmatprep.subr.mxu0 %v1795
        %1846 = vmatpush1.msra.mxu0 %v1794
        %1847 = vmatprep.subr.mxu0 %v1798
        %1848 = vmatpush1.msra.mxu0 %v1797
        %1849 = vmatprep.subr.mxu0 %v1801
        %1850 = vmatpush1.msra.mxu0 %v1800
        %1851 = vmatprep.subr.mxu0 %v1804
        %1852 = vmatpush1.msra.mxu0 %v1803
        %1853 = vmatprep.subr.mxu0 %v1807
        %1854 = vmatpush1.msra.mxu0 %v1806
        %1855 = vmatprep.subr.mxu0 0.0
        %1856 = vmatpush1.msra.mxu0 0.0
        %1857 = vmatprep.subr.mxu0 0.0
        %1858 = vmatpush1.msra.mxu0 0.0
        %1859 = vmatprep.subr.mxu0 0.0
        %1860 = vmatpush1.msra.mxu0 0.0
        %1861 = vmatprep.subr.mxu0 0.0
        %1862 = vmatpush1.msra.mxu0 0.0
        %1863 = vmatprep.subr.mxu0 0.0
        %1864 = vmatpush1.msra.mxu0 0.0
        %1865 = vmatprep.subr.mxu0 0.0
        %1866 = vmatpush1.msra.mxu0 0.0
        %1867 = vmatprep.subr.mxu0 0.0
        %1868 = vmatpush1.msra.mxu0 0.0
        %1869 = vmatprep.subr.mxu0 0.0
        %1870 = vmatpush1.msra.mxu0 0.0
        %1871 = vmatprep.subr.mxu0 0.0
        %1872 = vmatpush1.msra.mxu0 0.0
        %1873 = vmatprep.subr.mxu0 0.0
        %1874 = vmatpush1.msra.mxu0 0.0
        %1875 = vmatprep.subr.mxu0 0.0
        %1876 = vmatpush1.msra.mxu0 0.0
        %1877 = vmatprep.subr.mxu0 0.0
        %1878 = vmatpush1.msra.mxu0 0.0
        %1879 = vmatprep.mubr.f32.mxu0 %v1810
        %1880 = vmatmul.mubr.f32.gmra.mrb[0].mxu0 %v1739
        %v1881 = vpop.f32.mrb[0].mxu0
        %v1882 = vadd.f32 0.0, %v1881
        %v1883 = vpop.f32.mrb[0].mxu0
        %v1884 = vadd.f32 0.0, %v1883
        %1885 = vmatprep.mubr.f32.mxu0 %v1813
        %1886 = vmatmul.mubr.f32.gmra.mrb[0].mxu0 %v1745
        %v1887 = vpop.f32.mrb[0].mxu0
        %v1888 = vadd.f32 0.0, %v1887
        %v1889 = vpop.f32.mrb[0].mxu0
        %v1890 = vadd.f32 0.0, %v1889
        %1891 = vdwg.mxu0
        %1892 = vmatprep.subr.mxu0 0.0
        %1893 = vmatpush1.msra.mxu0 %v1751
        %1894 = vmatprep.subr.mxu0 0.0
        %1895 = vmatpush1.msra.mxu0 %v1754
        %1896 = vmatprep.subr.mxu0 0.0
        %1897 = vmatpush1.msra.mxu0 %v1757
        %1898 = vmatprep.subr.mxu0 0.0
        %1899 = vmatpush1.msra.mxu0 %v1760
        %1900 = vmatprep.subr.mxu0 0.0
        %1901 = vmatpush1.msra.mxu0 %v1763
        %1902 = vmatprep.subr.mxu0 0.0
        %1903 = vmatpush1.msra.mxu0 %v1766
        %1904 = vmatprep.subr.mxu0 0.0
        %1905 = vmatpush1.msra.mxu0 %v1769
        %1906 = vmatprep.subr.mxu0 0.0
        %1907 = vmatpush1.msra.mxu0 %v1772
        %1908 = vmatprep.subr.mxu0 0.0
        %1909 = vmatpush1.msra.mxu0 %v1775
        %1910 = vmatprep.subr.mxu0 0.0
        %1911 = vmatpush1.msra.mxu0 %v1778
        %1912 = vmatprep.subr.mxu0 0.0
        %1913 = vmatpush1.msra.mxu0 %v1781
        %1914 = vmatprep.subr.mxu0 0.0
        %1915 = vmatpush1.msra.mxu0 %v1784
        %1916 = vmatprep.subr.mxu0 0.0
        %1917 = vmatpush1.msra.mxu0 %v1787
        %1918 = vmatprep.subr.mxu0 0.0
        %1919 = vmatpush1.msra.mxu0 %v1790
        %1920 = vmatprep.subr.mxu0 0.0
        %1921 = vmatpush1.msra.mxu0 %v1793
        %1922 = vmatprep.subr.mxu0 0.0
        %1923 = vmatpush1.msra.mxu0 %v1796
        %1924 = vmatprep.subr.mxu0 0.0
        %1925 = vmatpush1.msra.mxu0 %v1799
        %1926 = vmatprep.subr.mxu0 0.0
        %1927 = vmatpush1.msra.mxu0 %v1802
        %1928 = vmatprep.subr.mxu0 0.0
        %1929 = vmatpush1.msra.mxu0 %v1805
        %1930 = vmatprep.subr.mxu0 0.0
        %1931 = vmatpush1.msra.mxu0 %v1808
        %1932 = vmatprep.subr.mxu0 0.0
        %1933 = vmatpush1.msra.mxu0 0.0
        %1934 = vmatprep.subr.mxu0 0.0
        %1935 = vmatpush1.msra.mxu0 0.0
        %1936 = vmatprep.subr.mxu0 0.0
        %1937 = vmatpush1.msra.mxu0 0.0
        %1938 = vmatprep.subr.mxu0 0.0
        %1939 = vmatpush1.msra.mxu0 0.0
        %1940 = vmatprep.subr.mxu0 0.0
        %1941 = vmatpush1.msra.mxu0 0.0
        %1942 = vmatprep.subr.mxu0 0.0
        %1943 = vmatpush1.msra.mxu0 0.0
        %1944 = vmatprep.subr.mxu0 0.0
        %1945 = vmatpush1.msra.mxu0 0.0
        %1946 = vmatprep.subr.mxu0 0.0
        %1947 = vmatpush1.msra.mxu0 0.0
        %1948 = vmatprep.subr.mxu0 0.0
        %1949 = vmatpush1.msra.mxu0 0.0
        %1950 = vmatprep.subr.mxu0 0.0
        %1951 = vmatpush1.msra.mxu0 0.0
        %1952 = vmatprep.subr.mxu0 0.0
        %1953 = vmatpush1.msra.mxu0 0.0
        %1954 = vmatprep.subr.mxu0 0.0
        %1955 = vmatpush1.msra.mxu0 0.0
        %1956 = vmatprep.mubr.f32.mxu0 %v1810
        %1957 = vmatmul.mubr.f32.gmra.mrb[0].mxu0 %v1739
        %v1958 = vpop.f32.mrb[0].mxu0
        %v1959 = vadd.f32 0.0, %v1958
        %v1960 = vpop.f32.mrb[0].mxu0
        %1961 = vmatprep.mubr.f32.mxu0 %v1813
        %1962 = vmatmul.mubr.f32.gmra.mrb[0].mxu0 %v1745
        %v1963 = vpop.f32.mrb[0].mxu0
        %v1964 = vadd.f32 0.0, %v1963
        %v1965 = vpop.f32.mrb[0].mxu0
        %1966 = vdwg.mxu0
        %v1967 = vld [vmem:[#allocation13] sm:$0xff]
        %v1968 = vld [vmem:[#allocation13 + $0x8] sm:$0xff]
        %v1969 = vld [vmem:[#allocation13 + $0x10] sm:$0xff]
        %v1970 = vld [vmem:[#allocation13 + $0x18] sm:$0xff]
        %v1971 = vld [vmem:[#allocation13 + $0x20] sm:$0xff]
        %v1972 = vld [vmem:[#allocation13 + $0x28] sm:$0xff]
        %v1973 = vld [vmem:[#allocation13 + $0x30] sm:$0xff]
        %v1974 = vld [vmem:[#allocation13 + $0x38] sm:$0xff]
        %v1975 = vld [vmem:[#allocation13 + $0x40] sm:$0xff]
        %v1976 = vld [vmem:[#allocation13 + $0x48] sm:$0xff]
        %v1977 = vld [vmem:[#allocation13 + $0x50] sm:$0xff]
        %v1978 = vld [vmem:[#allocation13 + $0x58] sm:$0xff]
        %v1979 = vld [vmem:[#allocation13 + $0x60] sm:$0xff]
        %v1980 = vld [vmem:[#allocation13 + $0x68] sm:$0xff]
        %v1981 = vld [vmem:[#allocation13 + $0x70] sm:$0xff]
        %v1982 = vld [vmem:[#allocation13 + $0x78] sm:$0xff]
        %v1983 = vld [vmem:[#allocation13 + $0x80] sm:$0xff]
        %v1984 = vld [vmem:[#allocation13 + $0x88] sm:$0xff]
        %v1985 = vld [vmem:[#allocation13 + $0x90] sm:$0xff]
        %v1986 = vld [vmem:[#allocation13 + $0x98] sm:$0xff]
        %v1987 = vld [vmem:[#allocation13 + $0xa0] sm:$0xff]
        %v1988 = vld [vmem:[#allocation13 + $0xa8] sm:$0xff]
        %v1989 = vld [vmem:[#allocation13 + $0xb0] sm:$0xff]
        %v1990 = vld [vmem:[#allocation13 + $0xb8] sm:$0xff]
        %v1991 = vld [vmem:[#allocation13 + $0xc0] sm:$0xff]
        %v1992 = vld [vmem:[#allocation13 + $0xc8] sm:$0xff]
        %v1993 = vld [vmem:[#allocation13 + $0xd0] sm:$0xff]
        %v1994 = vld [vmem:[#allocation13 + $0xd8] sm:$0xff]
        %v1995 = vld [vmem:[#allocation13 + $0xe0] sm:$0xff]
        %v1996 = vld [vmem:[#allocation13 + $0xe8] sm:$0xff]
        %v1997 = vld [vmem:[#allocation13 + $0xf0] sm:$0xff]
        %v1998 = vld [vmem:[#allocation13 + $0xf8] sm:$0xff]
        %v1999 = vld [vmem:[#allocation13 + $0x100] sm:$0xff]
        %v2000 = vld [vmem:[#allocation13 + $0x108] sm:$0xff]
        %v2001 = vld [vmem:[#allocation13 + $0x110] sm:$0xff]
        %v2002 = vld [vmem:[#allocation13 + $0x118] sm:$0xff]
        %v2003 = vld [vmem:[#allocation13 + $0x120] sm:$0xff]
        %v2004 = vld [vmem:[#allocation13 + $0x128] sm:$0xff]
        %v2005 = vld [vmem:[#allocation13 + $0x130] sm:$0xff]
        %v2006 = vld [vmem:[#allocation13 + $0x138] sm:$0xff]
        %v2007 = vld [vmem:[#allocation13 + $0x140] sm:$0xff]
        %v2008 = vld [vmem:[#allocation13 + $0x148] sm:$0xff]
        %v2009 = vld [vmem:[#allocation13 + $0x150] sm:$0xff]
        %v2010 = vld [vmem:[#allocation13 + $0x158] sm:$0xff]
        %v2011 = vld [vmem:[#allocation13 + $0x160] sm:$0xff]
        %v2012 = vld [vmem:[#allocation13 + $0x168] sm:$0xff]
        %v2013 = vld [vmem:[#allocation13 + $0x170] sm:$0xff]
        %v2014 = vld [vmem:[#allocation13 + $0x178] sm:$0xff]
        %v2015 = vld [vmem:[#allocation13 + $0x180] sm:$0xff]
        %v2016 = vld [vmem:[#allocation13 + $0x188] sm:$0xff]
        %v2017 = vld [vmem:[#allocation13 + $0x190] sm:$0xff]
        %v2018 = vld [vmem:[#allocation13 + $0x198] sm:$0xff]
        %v2019 = vld [vmem:[#allocation13 + $0x1a0] sm:$0xff]
        %v2020 = vld [vmem:[#allocation13 + $0x1a8] sm:$0xff]
        %v2021 = vld [vmem:[#allocation13 + $0x1b0] sm:$0xff]
        %v2022 = vld [vmem:[#allocation13 + $0x1b8] sm:$0xff]
        %v2023 = vld [vmem:[#allocation13 + $0x1c0] sm:$0xff]
        %v2024 = vld [vmem:[#allocation13 + $0x1c8] sm:$0xff]
        %v2025 = vld [vmem:[#allocation13 + $0x1d0] sm:$0xff]
        %v2026 = vld [vmem:[#allocation13 + $0x1d8] sm:$0xff]
        %2027 = vmatprep.subr.mxu0 %v1968
        %2028 = vmatpush1.msra.mxu0 %v1967
        %2029 = vmatprep.subr.mxu0 %v1971
        %2030 = vmatpush1.msra.mxu0 %v1970
        %2031 = vmatprep.subr.mxu0 %v1974
        %2032 = vmatpush1.msra.mxu0 %v1973
        %2033 = vmatprep.subr.mxu0 %v1977
        %2034 = vmatpush1.msra.mxu0 %v1976
        %2035 = vmatprep.subr.mxu0 %v1980
        %2036 = vmatpush1.msra.mxu0 %v1979
        %2037 = vmatprep.subr.mxu0 %v1983
        %2038 = vmatpush1.msra.mxu0 %v1982
        %2039 = vmatprep.subr.mxu0 %v1986
        %2040 = vmatpush1.msra.mxu0 %v1985
        %2041 = vmatprep.subr.mxu0 %v1989
        %2042 = vmatpush1.msra.mxu0 %v1988
        %2043 = vmatprep.subr.mxu0 %v1992
        %2044 = vmatpush1.msra.mxu0 %v1991
        %2045 = vmatprep.subr.mxu0 %v1995
        %2046 = vmatpush1.msra.mxu0 %v1994
        %2047 = vmatprep.subr.mxu0 %v1998
        %2048 = vmatpush1.msra.mxu0 %v1997
        %2049 = vmatprep.subr.mxu0 %v2001
        %2050 = vmatpush1.msra.mxu0 %v2000
        %2051 = vmatprep.subr.mxu0 %v2004
        %2052 = vmatpush1.msra.mxu0 %v2003
        %2053 = vmatprep.subr.mxu0 %v2007
        %2054 = vmatpush1.msra.mxu0 %v2006
        %2055 = vmatprep.subr.mxu0 %v2010
        %2056 = vmatpush1.msra.mxu0 %v2009
        %2057 = vmatprep.subr.mxu0 %v2013
        %2058 = vmatpush1.msra.mxu0 %v2012
        %2059 = vmatprep.subr.mxu0 %v2016
        %2060 = vmatpush1.msra.mxu0 %v2015
        %2061 = vmatprep.subr.mxu0 %v2019
        %2062 = vmatpush1.msra.mxu0 %v2018
        %2063 = vmatprep.subr.mxu0 %v2022
        %2064 = vmatpush1.msra.mxu0 %v2021
        %2065 = vmatprep.subr.mxu0 %v2025
        %2066 = vmatpush1.msra.mxu0 %v2024
        %2067 = vmatprep.subr.mxu0 0.0
        %2068 = vmatpush1.msra.mxu0 0.0
        %2069 = vmatprep.subr.mxu0 0.0
        %2070 = vmatpush1.msra.mxu0 0.0
        %2071 = vmatprep.subr.mxu0 0.0
        %2072 = vmatpush1.msra.mxu0 0.0
        %2073 = vmatprep.subr.mxu0 0.0
        %2074 = vmatpush1.msra.mxu0 0.0
        %2075 = vmatprep.subr.mxu0 0.0
        %2076 = vmatpush1.msra.mxu0 0.0
        %2077 = vmatprep.subr.mxu0 0.0
        %2078 = vmatpush1.msra.mxu0 0.0
        %2079 = vmatprep.subr.mxu0 0.0
        %2080 = vmatpush1.msra.mxu0 0.0
        %2081 = vmatprep.subr.mxu0 0.0
        %2082 = vmatpush1.msra.mxu0 0.0
        %2083 = vmatprep.subr.mxu0 0.0
        %2084 = vmatpush1.msra.mxu0 0.0
        %2085 = vmatprep.subr.mxu0 0.0
        %2086 = vmatpush1.msra.mxu0 0.0
        %2087 = vmatprep.subr.mxu0 0.0
        %2088 = vmatpush1.msra.mxu0 0.0
        %2089 = vmatprep.subr.mxu0 0.0
        %2090 = vmatpush1.msra.mxu0 0.0
        %2091 = vmatprep.mubr.f32.mxu0 %v1810
        %2092 = vmatmul.mubr.f32.gmra.mrb[0].mxu0 %v1739
        %v2093 = vpop.f32.mrb[0].mxu0
        %v2094 = vadd.f32 0.0, %v2093
        %v2095 = vpop.f32.mrb[0].mxu0
        %v2096 = vadd.f32 0.0, %v2095
        %2097 = vmatprep.mubr.f32.mxu0 %v1813
        %2098 = vmatmul.mubr.f32.gmra.mrb[0].mxu0 %v1745
        %v2099 = vpop.f32.mrb[0].mxu0
        %v2100 = vadd.f32 0.0, %v2099
        %v2101 = vpop.f32.mrb[0].mxu0
        %v2102 = vadd.f32 0.0, %v2101
        %2103 = vdwg.mxu0
        %2104 = vmatprep.subr.mxu0 0.0
        %2105 = vmatpush1.msra.mxu0 %v1969
        %2106 = vmatprep.subr.mxu0 0.0
        %2107 = vmatpush1.msra.mxu0 %v1972
        %2108 = vmatprep.subr.mxu0 0.0
        %2109 = vmatpush1.msra.mxu0 %v1975
        %2110 = vmatprep.subr.mxu0 0.0
        %2111 = vmatpush1.msra.mxu0 %v1978
        %2112 = vmatprep.subr.mxu0 0.0
        %2113 = vmatpush1.msra.mxu0 %v1981
        %2114 = vmatprep.subr.mxu0 0.0
        %2115 = vmatpush1.msra.mxu0 %v1984
        %2116 = vmatprep.subr.mxu0 0.0
        %2117 = vmatpush1.msra.mxu0 %v1987
        %2118 = vmatprep.subr.mxu0 0.0
        %2119 = vmatpush1.msra.mxu0 %v1990
        %2120 = vmatprep.subr.mxu0 0.0
        %2121 = vmatpush1.msra.mxu0 %v1993
        %2122 = vmatprep.subr.mxu0 0.0
        %2123 = vmatpush1.msra.mxu0 %v1996
        %2124 = vmatprep.subr.mxu0 0.0
        %2125 = vmatpush1.msra.mxu0 %v1999
        %2126 = vmatprep.subr.mxu0 0.0
        %2127 = vmatpush1.msra.mxu0 %v2002
        %2128 = vmatprep.subr.mxu0 0.0
        %2129 = vmatpush1.msra.mxu0 %v2005
        %2130 = vmatprep.subr.mxu0 0.0
        %2131 = vmatpush1.msra.mxu0 %v2008
        %2132 = vmatprep.subr.mxu0 0.0
        %2133 = vmatpush1.msra.mxu0 %v2011
        %2134 = vmatprep.subr.mxu0 0.0
        %2135 = vmatpush1.msra.mxu0 %v2014
        %2136 = vmatprep.subr.mxu0 0.0
        %2137 = vmatpush1.msra.mxu0 %v2017
        %2138 = vmatprep.subr.mxu0 0.0
        %2139 = vmatpush1.msra.mxu0 %v2020
        %2140 = vmatprep.subr.mxu0 0.0
        %2141 = vmatpush1.msra.mxu0 %v2023
        %2142 = vmatprep.subr.mxu0 0.0
        %2143 = vmatpush1.msra.mxu0 %v2026
        %2144 = vmatprep.subr.mxu0 0.0
        %2145 = vmatpush1.msra.mxu0 0.0
        %2146 = vmatprep.subr.mxu0 0.0
        %2147 = vmatpush1.msra.mxu0 0.0
        %2148 = vmatprep.subr.mxu0 0.0
        %2149 = vmatpush1.msra.mxu0 0.0
        %2150 = vmatprep.subr.mxu0 0.0
        %2151 = vmatpush1.msra.mxu0 0.0
        %2152 = vmatprep.subr.mxu0 0.0
        %2153 = vmatpush1.msra.mxu0 0.0
        %2154 = vmatprep.subr.mxu0 0.0
        %2155 = vmatpush1.msra.mxu0 0.0
        %2156 = vmatprep.subr.mxu0 0.0
        %2157 = vmatpush1.msra.mxu0 0.0
        %2158 = vmatprep.subr.mxu0 0.0
        %2159 = vmatpush1.msra.mxu0 0.0
        %2160 = vmatprep.subr.mxu0 0.0
        %2161 = vmatpush1.msra.mxu0 0.0
        %2162 = vmatprep.subr.mxu0 0.0
        %2163 = vmatpush1.msra.mxu0 0.0
        %2164 = vmatprep.subr.mxu0 0.0
        %2165 = vmatpush1.msra.mxu0 0.0
        %2166 = vmatprep.subr.mxu0 0.0
        %2167 = vmatpush1.msra.mxu0 0.0
        %2168 = vmatprep.mubr.f32.mxu0 %v1810
        %2169 = vmatmul.mubr.f32.gmra.mrb[0].mxu0 %v1739
        %v2170 = vpop.f32.mrb[0].mxu0
        %v2171 = vadd.f32 0.0, %v2170
        %v2172 = vpop.f32.mrb[0].mxu0
        %2173 = vmatprep.mubr.f32.mxu0 %v1813
        %2174 = vmatmul.mubr.f32.gmra.mrb[0].mxu0 %v1745
        %v2175 = vpop.f32.mrb[0].mxu0
        %v2176 = vadd.f32 0.0, %v2175
        %v2177 = vpop.f32.mrb[0].mxu0
        %2178 = vdwg.mxu0
        %v2179 = vld [vmem:[#allocation14] sm:$0xff]
        %v2180 = vld [vmem:[#allocation14 + $0x8] sm:$0xff]
        %v2181 = vld [vmem:[#allocation14 + $0x10] sm:$0xff]
        %v2182 = vld [vmem:[#allocation14 + $0x18] sm:$0xff]
        %v2183 = vld [vmem:[#allocation14 + $0x20] sm:$0xff]
        %v2184 = vld [vmem:[#allocation14 + $0x28] sm:$0xff]
        %v2185 = vld [vmem:[#allocation14 + $0x30] sm:$0xff]
        %v2186 = vld [vmem:[#allocation14 + $0x38] sm:$0xff]
        %v2187 = vld [vmem:[#allocation14 + $0x40] sm:$0xff]
        %v2188 = vld [vmem:[#allocation14 + $0x48] sm:$0xff]
        %v2189 = vld [vmem:[#allocation14 + $0x50] sm:$0xff]
        %v2190 = vld [vmem:[#allocation14 + $0x58] sm:$0xff]
        %v2192 = vsel %vm1665, %v1469, 0
        %v2195 = vsel %vm1665, %v1475, 0
        %2197 = vmatprep.subr.mxu0 %v2180
        %2198 = vmatpush1.msra.mxu0 %v2179
        %2199 = vmatprep.subr.mxu0 %v2183
        %2200 = vmatpush1.msra.mxu0 %v2182
        %2201 = vmatprep.subr.mxu0 %v2186
        %2202 = vmatpush1.msra.mxu0 %v2185
        %2203 = vmatprep.subr.mxu0 %v2189
        %2204 = vmatpush1.msra.mxu0 %v2188
        %2205 = vmatprep.subr.mxu0 0.0
        %2206 = vmatpush1.msra.mxu0 0.0
        %2207 = vmatprep.subr.mxu0 0.0
        %2208 = vmatpush1.msra.mxu0 0.0
        %2209 = vmatprep.subr.mxu0 0.0
        %2210 = vmatpush1.msra.mxu0 0.0
        %2211 = vmatprep.subr.mxu0 0.0
        %2212 = vmatpush1.msra.mxu0 0.0
        %2213 = vmatprep.subr.mxu0 0.0
        %2214 = vmatpush1.msra.mxu0 0.0
        %2215 = vmatprep.subr.mxu0 0.0
        %2216 = vmatpush1.msra.mxu0 0.0
        %2217 = vmatprep.subr.mxu0 0.0
        %2218 = vmatpush1.msra.mxu0 0.0
        %2219 = vmatprep.subr.mxu0 0.0
        %2220 = vmatpush1.msra.mxu0 0.0
        %2221 = vmatprep.subr.mxu0 0.0
        %2222 = vmatpush1.msra.mxu0 0.0
        %2223 = vmatprep.subr.mxu0 0.0
        %2224 = vmatpush1.msra.mxu0 0.0
        %2225 = vmatprep.subr.mxu0 0.0
        %2226 = vmatpush1.msra.mxu0 0.0
        %2227 = vmatprep.subr.mxu0 0.0
        %2228 = vmatpush1.msra.mxu0 0.0
        %2229 = vmatprep.subr.mxu0 0.0
        %2230 = vmatpush1.msra.mxu0 0.0
        %2231 = vmatprep.subr.mxu0 0.0
        %2232 = vmatpush1.msra.mxu0 0.0
        %2233 = vmatprep.subr.mxu0 0.0
        %2234 = vmatpush1.msra.mxu0 0.0
        %2235 = vmatprep.subr.mxu0 0.0
        %2236 = vmatpush1.msra.mxu0 0.0
        %2237 = vmatprep.subr.mxu0 0.0
        %2238 = vmatpush1.msra.mxu0 0.0
        %2239 = vmatprep.subr.mxu0 0.0
        %2240 = vmatpush1.msra.mxu0 0.0
        %2241 = vmatprep.subr.mxu0 0.0
        %2242 = vmatpush1.msra.mxu0 0.0
        %2243 = vmatprep.subr.mxu0 0.0
        %2244 = vmatpush1.msra.mxu0 0.0
        %2245 = vmatprep.subr.mxu0 0.0
        %2246 = vmatpush1.msra.mxu0 0.0
        %2247 = vmatprep.subr.mxu0 0.0
        %2248 = vmatpush1.msra.mxu0 0.0
        %2249 = vmatprep.subr.mxu0 0.0
        %2250 = vmatpush1.msra.mxu0 0.0
        %2251 = vmatprep.subr.mxu0 0.0
        %2252 = vmatpush1.msra.mxu0 0.0
        %2253 = vmatprep.subr.mxu0 0.0
        %2254 = vmatpush1.msra.mxu0 0.0
        %2255 = vmatprep.subr.mxu0 0.0
        %2256 = vmatpush1.msra.mxu0 0.0
        %2257 = vmatprep.subr.mxu0 0.0
        %2258 = vmatpush1.msra.mxu0 0.0
        %2259 = vmatprep.subr.mxu0 0.0
        %2260 = vmatpush1.msra.mxu0 0.0
        %2261 = vmatprep.mubr.f32.mxu0 0.0
        %2262 = vmatmul.mubr.f32.gmra.mrb[0].mxu0 %v2192
        %v2263 = vpop.f32.mrb[0].mxu0
        %v2264 = vadd.f32 0.0, %v2263
        %v2265 = vpop.f32.mrb[0].mxu0
        %v2266 = vadd.f32 0.0, %v2265
        %2267 = vmatprep.mubr.f32.mxu0 0.0
        %2268 = vmatmul.mubr.f32.gmra.mrb[0].mxu0 %v2195
        %v2269 = vpop.f32.mrb[0].mxu0
        %v2270 = vadd.f32 0.0, %v2269
        %v2271 = vpop.f32.mrb[0].mxu0
        %v2272 = vadd.f32 0.0, %v2271
        %2273 = vdwg.mxu0
        %2274 = vmatprep.subr.mxu0 0.0
        %2275 = vmatpush1.msra.mxu0 %v2181
        %2276 = vmatprep.subr.mxu0 0.0
        %2277 = vmatpush1.msra.mxu0 %v2184
        %2278 = vmatprep.subr.mxu0 0.0
        %2279 = vmatpush1.msra.mxu0 %v2187
        %2280 = vmatprep.subr.mxu0 0.0
        %2281 = vmatpush1.msra.mxu0 %v2190
        %2282 = vmatprep.subr.mxu0 0.0
        %2283 = vmatpush1.msra.mxu0 0.0
        %2284 = vmatprep.subr.mxu0 0.0
        %2285 = vmatpush1.msra.mxu0 0.0
        %2286 = vmatprep.subr.mxu0 0.0
        %2287 = vmatpush1.msra.mxu0 0.0
        %2288 = vmatprep.subr.mxu0 0.0
        %2289 = vmatpush1.msra.mxu0 0.0
        %2290 = vmatprep.subr.mxu0 0.0
        %2291 = vmatpush1.msra.mxu0 0.0
        %2292 = vmatprep.subr.mxu0 0.0
        %2293 = vmatpush1.msra.mxu0 0.0
        %2294 = vmatprep.subr.mxu0 0.0
        %2295 = vmatpush1.msra.mxu0 0.0
        %2296 = vmatprep.subr.mxu0 0.0
        %2297 = vmatpush1.msra.mxu0 0.0
        %2298 = vmatprep.subr.mxu0 0.0
        %2299 = vmatpush1.msra.mxu0 0.0
        %2300 = vmatprep.subr.mxu0 0.0
        %2301 = vmatpush1.msra.mxu0 0.0
        %2302 = vmatprep.subr.mxu0 0.0
        %2303 = vmatpush1.msra.mxu0 0.0
        %2304 = vmatprep.subr.mxu0 0.0
        %2305 = vmatpush1.msra.mxu0 0.0
        %2306 = vmatprep.subr.mxu0 0.0
        %2307 = vmatpush1.msra.mxu0 0.0
        %2308 = vmatprep.subr.mxu0 0.0
        %2309 = vmatpush1.msra.mxu0 0.0
        %2310 = vmatprep.subr.mxu0 0.0
        %2311 = vmatpush1.msra.mxu0 0.0
        %2312 = vmatprep.subr.mxu0 0.0
        %2313 = vmatpush1.msra.mxu0 0.0
        %2314 = vmatprep.subr.mxu0 0.0
        %2315 = vmatpush1.msra.mxu0 0.0
        %2316 = vmatprep.subr.mxu0 0.0
        %2317 = vmatpush1.msra.mxu0 0.0
        %2318 = vmatprep.subr.mxu0 0.0
        %2319 = vmatpush1.msra.mxu0 0.0
        %2320 = vmatprep.subr.mxu0 0.0
        %2321 = vmatpush1.msra.mxu0 0.0
        %2322 = vmatprep.subr.mxu0 0.0
        %2323 = vmatpush1.msra.mxu0 0.0
        %2324 = vmatprep.subr.mxu0 0.0
        %2325 = vmatpush1.msra.mxu0 0.0
        %2326 = vmatprep.subr.mxu0 0.0
        %2327 = vmatpush1.msra.mxu0 0.0
        %2328 = vmatprep.subr.mxu0 0.0
        %2329 = vmatpush1.msra.mxu0 0.0
        %2330 = vmatprep.subr.mxu0 0.0
        %2331 = vmatpush1.msra.mxu0 0.0
        %2332 = vmatprep.subr.mxu0 0.0
        %2333 = vmatpush1.msra.mxu0 0.0
        %2334 = vmatprep.subr.mxu0 0.0
        %2335 = vmatpush1.msra.mxu0 0.0
        %2336 = vmatprep.subr.mxu0 0.0
        %2337 = vmatpush1.msra.mxu0 0.0
        %2338 = vmatprep.mubr.f32.mxu0 0.0
        %2339 = vmatmul.mubr.f32.gmra.mrb[0].mxu0 %v2192
        %v2340 = vpop.f32.mrb[0].mxu0
        %v2341 = vadd.f32 0.0, %v2340
        %v2342 = vpop.f32.mrb[0].mxu0
        %2343 = vmatprep.mubr.f32.mxu0 0.0
        %2344 = vmatmul.mubr.f32.gmra.mrb[0].mxu0 %v2195
        %v2345 = vpop.f32.mrb[0].mxu0
        %v2346 = vadd.f32 0.0, %v2345
        %v2347 = vpop.f32.mrb[0].mxu0
        %2348 = vdwg.mxu0
        %v2349 = vmul.f32 %v1882, %v1113
        %v2350 = vmul.f32 %v1884, %v1114
        %v2351 = vmul.f32 %v1959, %v1115
        %v2352 = vmul.f32 %v1888, %v1116
        %v2353 = vmul.f32 %v1890, %v1117
        %v2354 = vmul.f32 %v1964, %v1118
        %v2355 = vmul.f32 %v2349, %v2264
        %v2356 = vmul.f32 %v2350, %v2266
        %v2357 = vmul.f32 %v2351, %v2341
        %v2358 = vmul.f32 %v2352, %v2270
        %v2359 = vmul.f32 %v2353, %v2272
        %v2360 = vmul.f32 %v2354, %v2346
        %v2361 = vmul.f32 %v2094, %v1469
        %v2362 = vmul.f32 %v2096, %v1471
        %v2363 = vmul.f32 %v2171, %v1546
        %v2364 = vmul.f32 %v2100, %v1475
        %v2365 = vmul.f32 %v2102, %v1477
        %v2366 = vmul.f32 %v2176, %v1551
        %v2367 = vadd.f32 %v2355, %v2361
        %v2368 = vadd.f32 %v2356, %v2362
        %v2369 = vadd.f32 %v2357, %v2363
        %v2370 = vadd.f32 %v2358, %v2364
        %v2371 = vadd.f32 %v2359, %v2365
        %v2372 = vadd.f32 %v2360, %v2366
        %vm2373 = vcmask 130048
        %v2375 = vsel %vm2373, %v599, 0
        %2377 = vmatprep.subr.mxu0 %v2368
        %2378 = vmatpush1.msra.mxu0 %v2367
        %2379 = vmatprep.subr.mxu0 %v2371
        %2380 = vmatpush1.msra.mxu0 %v2370
        %2381 = vmatprep.subr.mxu0 0.0
        %2382 = vmatpush1.msra.mxu0 0.0
        %2383 = vmatprep.subr.mxu0 0.0
        %2384 = vmatpush1.msra.mxu0 0.0
        %2385 = vmatprep.subr.mxu0 0.0
        %2386 = vmatpush1.msra.mxu0 0.0
        %2387 = vmatprep.subr.mxu0 0.0
        %2388 = vmatpush1.msra.mxu0 0.0
        %2389 = vmatprep.subr.mxu0 0.0
        %2390 = vmatpush1.msra.mxu0 0.0
        %2391 = vmatprep.subr.mxu0 0.0
        %2392 = vmatpush1.msra.mxu0 0.0
        %2393 = vmatprep.subr.mxu0 0.0
        %2394 = vmatpush1.msra.mxu0 0.0
        %2395 = vmatprep.subr.mxu0 0.0
        %2396 = vmatpush1.msra.mxu0 0.0
        %2397 = vmatprep.subr.mxu0 0.0
        %2398 = vmatpush1.msra.mxu0 0.0
        %2399 = vmatprep.subr.mxu0 0.0
        %2400 = vmatpush1.msra.mxu0 0.0
        %2401 = vmatprep.subr.mxu0 0.0
        %2402 = vmatpush1.msra.mxu0 0.0
        %2403 = vmatprep.subr.mxu0 0.0
        %2404 = vmatpush1.msra.mxu0 0.0
        %2405 = vmatprep.subr.mxu0 0.0
        %2406 = vmatpush1.msra.mxu0 0.0
        %2407 = vmatprep.subr.mxu0 0.0
        %2408 = vmatpush1.msra.mxu0 0.0
        %2409 = vmatprep.subr.mxu0 0.0
        %2410 = vmatpush1.msra.mxu0 0.0
        %2411 = vmatprep.subr.mxu0 0.0
        %2412 = vmatpush1.msra.mxu0 0.0
        %2413 = vmatprep.subr.mxu0 0.0
        %2414 = vmatpush1.msra.mxu0 0.0
        %2415 = vmatprep.subr.mxu0 0.0
        %2416 = vmatpush1.msra.mxu0 0.0
        %2417 = vmatprep.subr.mxu0 0.0
        %2418 = vmatpush1.msra.mxu0 0.0
        %2419 = vmatprep.subr.mxu0 0.0
        %2420 = vmatpush1.msra.mxu0 0.0
        %2421 = vmatprep.subr.mxu0 0.0
        %2422 = vmatpush1.msra.mxu0 0.0
        %2423 = vmatprep.subr.mxu0 0.0
        %2424 = vmatpush1.msra.mxu0 0.0
        %2425 = vmatprep.subr.mxu0 0.0
        %2426 = vmatpush1.msra.mxu0 0.0
        %2427 = vmatprep.subr.mxu0 0.0
        %2428 = vmatpush1.msra.mxu0 0.0
        %2429 = vmatprep.subr.mxu0 0.0
        %2430 = vmatpush1.msra.mxu0 0.0
        %2431 = vmatprep.subr.mxu0 0.0
        %2432 = vmatpush1.msra.mxu0 0.0
        %2433 = vmatprep.subr.mxu0 0.0
        %2434 = vmatpush1.msra.mxu0 0.0
        %2435 = vmatprep.subr.mxu0 0.0
        %2436 = vmatpush1.msra.mxu0 0.0
        %2437 = vmatprep.subr.mxu0 0.0
        %2438 = vmatpush1.msra.mxu0 0.0
        %2439 = vmatprep.subr.mxu0 0.0
        %2440 = vmatpush1.msra.mxu0 0.0
        %2441 = vmatprep.mubr.f32.mxu0 0.0
        %2442 = vmatmul.mubr.f32.gmra.mrb[0].mxu0 %v2375
        %v2443 = vpop.f32.mrb[0].mxu0
        %v2444 = vadd.f32 0.0, %v2443
        %v2445 = vpop.f32.mrb[0].mxu0
        %v2446 = vadd.f32 0.0, %v2445
        %2447 = vdwg.mxu0
        %2448 = vmatprep.subr.mxu0 0.0
        %2449 = vmatpush1.msra.mxu0 %v2369
        %2450 = vmatprep.subr.mxu0 0.0
        %2451 = vmatpush1.msra.mxu0 %v2372
        %2452 = vmatprep.subr.mxu0 0.0
        %2453 = vmatpush1.msra.mxu0 0.0
        %2454 = vmatprep.subr.mxu0 0.0
        %2455 = vmatpush1.msra.mxu0 0.0
        %2456 = vmatprep.subr.mxu0 0.0
        %2457 = vmatpush1.msra.mxu0 0.0
        %2458 = vmatprep.subr.mxu0 0.0
        %2459 = vmatpush1.msra.mxu0 0.0
        %2460 = vmatprep.subr.mxu0 0.0
        %2461 = vmatpush1.msra.mxu0 0.0
        %2462 = vmatprep.subr.mxu0 0.0
        %2463 = vmatpush1.msra.mxu0 0.0
        %2464 = vmatprep.subr.mxu0 0.0
        %2465 = vmatpush1.msra.mxu0 0.0
        %2466 = vmatprep.subr.mxu0 0.0
        %2467 = vmatpush1.msra.mxu0 0.0
        %2468 = vmatprep.subr.mxu0 0.0
        %2469 = vmatpush1.msra.mxu0 0.0
        %2470 = vmatprep.subr.mxu0 0.0
        %2471 = vmatpush1.msra.mxu0 0.0
        %2472 = vmatprep.subr.mxu0 0.0
        %2473 = vmatpush1.msra.mxu0 0.0
        %2474 = vmatprep.subr.mxu0 0.0
        %2475 = vmatpush1.msra.mxu0 0.0
        %2476 = vmatprep.subr.mxu0 0.0
        %2477 = vmatpush1.msra.mxu0 0.0
        %2478 = vmatprep.subr.mxu0 0.0
        %2479 = vmatpush1.msra.mxu0 0.0
        %2480 = vmatprep.subr.mxu0 0.0
        %2481 = vmatpush1.msra.mxu0 0.0
        %2482 = vmatprep.subr.mxu0 0.0
        %2483 = vmatpush1.msra.mxu0 0.0
        %2484 = vmatprep.subr.mxu0 0.0
        %2485 = vmatpush1.msra.mxu0 0.0
        %2486 = vmatprep.subr.mxu0 0.0
        %2487 = vmatpush1.msra.mxu0 0.0
        %2488 = vmatprep.subr.mxu0 0.0
        %2489 = vmatpush1.msra.mxu0 0.0
        %2490 = vmatprep.subr.mxu0 0.0
        %2491 = vmatpush1.msra.mxu0 0.0
        %2492 = vmatprep.subr.mxu0 0.0
        %2493 = vmatpush1.msra.mxu0 0.0
        %2494 = vmatprep.subr.mxu0 0.0
        %2495 = vmatpush1.msra.mxu0 0.0
        %2496 = vmatprep.subr.mxu0 0.0
        %2497 = vmatpush1.msra.mxu0 0.0
        %2498 = vmatprep.subr.mxu0 0.0
        %2499 = vmatpush1.msra.mxu0 0.0
        %2500 = vmatprep.subr.mxu0 0.0
        %2501 = vmatpush1.msra.mxu0 0.0
        %2502 = vmatprep.subr.mxu0 0.0
        %2503 = vmatpush1.msra.mxu0 0.0
        %2504 = vmatprep.subr.mxu0 0.0
        %2505 = vmatpush1.msra.mxu0 0.0
        %2506 = vmatprep.subr.mxu0 0.0
        %2507 = vmatpush1.msra.mxu0 0.0
        %2508 = vmatprep.subr.mxu0 0.0
        %2509 = vmatpush1.msra.mxu0 0.0
        %2510 = vmatprep.subr.mxu0 0.0
        %2511 = vmatpush1.msra.mxu0 0.0
        %2512 = vmatprep.mubr.f32.mxu0 0.0
        %2513 = vmatmul.mubr.f32.gmra.mrb[0].mxu0 %v2375
        %v2514 = vpop.f32.mrb[0].mxu0
        %v2515 = vadd.f32 0.0, %v2514
        %v2516 = vpop.f32.mrb[0].mxu0
        %2517 = vdwg.mxu0
        %v2518 = vld [vmem:[#allocation16] sm:$0xff]
        %v2519 = vld [vmem:[#allocation16 + $0x8] sm:$0xff]
        %v2520 = vld [vmem:[#allocation16 + $0x10] sm:$0xff]
        %v2521 = vld [vmem:[#allocation16 + $0x18] sm:$0xff]
        %v2522 = vld [vmem:[#allocation16 + $0x20] sm:$0xff]
        %v2523 = vld [vmem:[#allocation16 + $0x28] sm:$0xff]
        %v2524 = vld [vmem:[#allocation16 + $0x30] sm:$0xff]
        %v2525 = vld [vmem:[#allocation16 + $0x38] sm:$0xff]
        %v2526 = vld [vmem:[#allocation16 + $0x40] sm:$0xff]
        %v2527 = vld [vmem:[#allocation16 + $0x48] sm:$0xff]
        %v2528 = vld [vmem:[#allocation16 + $0x50] sm:$0xff]
        %v2529 = vld [vmem:[#allocation16 + $0x58] sm:$0xff]
        %v2530 = vld [vmem:[#allocation16 + $0x60] sm:$0xff]
        %v2531 = vld [vmem:[#allocation16 + $0x68] sm:$0xff]
        %v2532 = vld [vmem:[#allocation16 + $0x70] sm:$0xff]
        %v2533 = vld [vmem:[#allocation16 + $0x78] sm:$0xff]
        %v2534 = vld [vmem:[#allocation16 + $0x80] sm:$0xff]
        %v2535 = vld [vmem:[#allocation16 + $0x88] sm:$0xff]
        %v2536 = vld [vmem:[#allocation16 + $0x90] sm:$0xff]
        %v2537 = vld [vmem:[#allocation16 + $0x98] sm:$0xff]
        %v2538 = vld [vmem:[#allocation16 + $0xa0] sm:$0xff]
        %v2539 = vld [vmem:[#allocation16 + $0xa8] sm:$0xff]
        %v2540 = vld [vmem:[#allocation16 + $0xb0] sm:$0xff]
        %v2541 = vld [vmem:[#allocation16 + $0xb8] sm:$0xff]
        %v2542 = vld [vmem:[#allocation16 + $0xc0] sm:$0xff]
        %v2543 = vld [vmem:[#allocation16 + $0xc8] sm:$0xff]
        %v2544 = vld [vmem:[#allocation16 + $0xd0] sm:$0xff]
        %v2545 = vld [vmem:[#allocation16 + $0xd8] sm:$0xff]
        %v2546 = vld [vmem:[#allocation16 + $0xe0] sm:$0xff]
        %v2547 = vld [vmem:[#allocation16 + $0xe8] sm:$0xff]
        %v2548 = vld [vmem:[#allocation16 + $0xf0] sm:$0xff]
        %v2549 = vld [vmem:[#allocation16 + $0xf8] sm:$0xff]
        %v2550 = vld [vmem:[#allocation16 + $0x100] sm:$0xff]
        %v2551 = vld [vmem:[#allocation16 + $0x108] sm:$0xff]
        %v2552 = vld [vmem:[#allocation16 + $0x110] sm:$0xff]
        %v2553 = vld [vmem:[#allocation16 + $0x118] sm:$0xff]
        %v2554 = vld [vmem:[#allocation16 + $0x120] sm:$0xff]
        %v2555 = vld [vmem:[#allocation16 + $0x128] sm:$0xff]
        %v2556 = vld [vmem:[#allocation16 + $0x130] sm:$0xff]
        %v2557 = vld [vmem:[#allocation16 + $0x138] sm:$0xff]
        %v2558 = vld [vmem:[#allocation16 + $0x140] sm:$0xff]
        %v2559 = vld [vmem:[#allocation16 + $0x148] sm:$0xff]
        %v2560 = vld [vmem:[#allocation16 + $0x150] sm:$0xff]
        %v2561 = vld [vmem:[#allocation16 + $0x158] sm:$0xff]
        %v2562 = vld [vmem:[#allocation16 + $0x160] sm:$0xff]
        %v2563 = vld [vmem:[#allocation16 + $0x168] sm:$0xff]
        %v2564 = vld [vmem:[#allocation16 + $0x170] sm:$0xff]
        %v2565 = vld [vmem:[#allocation16 + $0x178] sm:$0xff]
        %v2566 = vld [vmem:[#allocation16 + $0x180] sm:$0xff]
        %v2567 = vld [vmem:[#allocation16 + $0x188] sm:$0xff]
        %v2568 = vld [vmem:[#allocation16 + $0x190] sm:$0xff]
        %v2569 = vld [vmem:[#allocation16 + $0x198] sm:$0xff]
        %v2570 = vld [vmem:[#allocation16 + $0x1a0] sm:$0xff]
        %v2571 = vld [vmem:[#allocation16 + $0x1a8] sm:$0xff]
        %v2572 = vld [vmem:[#allocation16 + $0x1b0] sm:$0xff]
        %v2573 = vld [vmem:[#allocation16 + $0x1b8] sm:$0xff]
        %v2574 = vld [vmem:[#allocation16 + $0x1c0] sm:$0xff]
        %v2575 = vld [vmem:[#allocation16 + $0x1c8] sm:$0xff]
        %v2576 = vld [vmem:[#allocation16 + $0x1d0] sm:$0xff]
        %v2577 = vld [vmem:[#allocation16 + $0x1d8] sm:$0xff]
        %v2578 = vld [vmem:[#allocation16 + $0x1e0] sm:$0xff]
        %v2579 = vld [vmem:[#allocation16 + $0x1e8] sm:$0xff]
        %v2580 = vld [vmem:[#allocation16 + $0x1f0] sm:$0xff]
        %v2581 = vld [vmem:[#allocation16 + $0x1f8] sm:$0xff]
        %v2582 = vld [vmem:[#allocation16 + $0x200] sm:$0xff]
        %v2583 = vld [vmem:[#allocation16 + $0x208] sm:$0xff]
        %v2584 = vld [vmem:[#allocation16 + $0x210] sm:$0xff]
        %v2585 = vld [vmem:[#allocation16 + $0x218] sm:$0xff]
        %v2586 = vld [vmem:[#allocation16 + $0x220] sm:$0xff]
        %v2587 = vld [vmem:[#allocation16 + $0x228] sm:$0xff]
        %v2588 = vld [vmem:[#allocation16 + $0x230] sm:$0xff]
        %v2589 = vld [vmem:[#allocation16 + $0x238] sm:$0xff]
        %v2590 = vld [vmem:[#allocation16 + $0x240] sm:$0xff]
        %v2591 = vld [vmem:[#allocation16 + $0x248] sm:$0xff]
        %v2592 = vld [vmem:[#allocation16 + $0x250] sm:$0xff]
        %v2593 = vld [vmem:[#allocation16 + $0x258] sm:$0xff]
        %v2594 = vld [vmem:[#allocation16 + $0x260] sm:$0xff]
        %v2595 = vld [vmem:[#allocation16 + $0x268] sm:$0xff]
        %v2596 = vld [vmem:[#allocation16 + $0x270] sm:$0xff]
        %v2597 = vld [vmem:[#allocation16 + $0x278] sm:$0xff]
        %v2598 = vld [vmem:[#allocation16 + $0x280] sm:$0xff]
        %v2599 = vld [vmem:[#allocation16 + $0x288] sm:$0xff]
        %v2600 = vld [vmem:[#allocation16 + $0x290] sm:$0xff]
        %v2601 = vld [vmem:[#allocation16 + $0x298] sm:$0xff]
        %v2602 = vld [vmem:[#allocation16 + $0x2a0] sm:$0xff]
        %v2603 = vld [vmem:[#allocation16 + $0x2a8] sm:$0xff]
        %v2604 = vld [vmem:[#allocation16 + $0x2b0] sm:$0xff]
        %v2605 = vld [vmem:[#allocation16 + $0x2b8] sm:$0xff]
        %v2606 = vld [vmem:[#allocation16 + $0x2c0] sm:$0xff]
        %v2607 = vld [vmem:[#allocation16 + $0x2c8] sm:$0xff]
        %v2608 = vld [vmem:[#allocation16 + $0x2d0] sm:$0xff]
        %v2609 = vld [vmem:[#allocation16 + $0x2d8] sm:$0xff]
        %v2610 = vld [vmem:[#allocation16 + $0x2e0] sm:$0xff]
        %v2611 = vld [vmem:[#allocation16 + $0x2e8] sm:$0xff]
        %v2612 = vld [vmem:[#allocation16 + $0x2f0] sm:$0xff]
        %v2613 = vld [vmem:[#allocation16 + $0x2f8] sm:$0xff]
        %v2614 = vld [vmem:[#allocation16 + $0x300] sm:$0xff]
        %v2615 = vld [vmem:[#allocation16 + $0x308] sm:$0xff]
        %v2616 = vld [vmem:[#allocation16 + $0x310] sm:$0xff]
        %v2617 = vld [vmem:[#allocation16 + $0x318] sm:$0xff]
        %v2618 = vld [vmem:[#allocation16 + $0x320] sm:$0xff]
        %v2619 = vld [vmem:[#allocation16 + $0x328] sm:$0xff]
        %v2620 = vld [vmem:[#allocation16 + $0x330] sm:$0xff]
        %v2621 = vld [vmem:[#allocation16 + $0x338] sm:$0xff]
        %v2622 = vld [vmem:[#allocation16 + $0x340] sm:$0xff]
        %v2623 = vld [vmem:[#allocation16 + $0x348] sm:$0xff]
        %v2624 = vld [vmem:[#allocation16 + $0x350] sm:$0xff]
        %v2625 = vld [vmem:[#allocation16 + $0x358] sm:$0xff]
        %v2627 = vsel %vm1665, %v2515, 0
        %2629 = vmatprep.subr.mxu0 %v2519
        %2630 = vmatpush1.msra.mxu0 %v2518
        %2631 = vmatprep.subr.mxu0 %v2522
        %2632 = vmatpush1.msra.mxu0 %v2521
        %2633 = vmatprep.subr.mxu0 %v2525
        %2634 = vmatpush1.msra.mxu0 %v2524
        %2635 = vmatprep.subr.mxu0 %v2528
        %2636 = vmatpush1.msra.mxu0 %v2527
        %2637 = vmatprep.subr.mxu0 %v2531
        %2638 = vmatpush1.msra.mxu0 %v2530
        %2639 = vmatprep.subr.mxu0 %v2534
        %2640 = vmatpush1.msra.mxu0 %v2533
        %2641 = vmatprep.subr.mxu0 %v2537
        %2642 = vmatpush1.msra.mxu0 %v2536
        %2643 = vmatprep.subr.mxu0 %v2540
        %2644 = vmatpush1.msra.mxu0 %v2539
        %2645 = vmatprep.subr.mxu0 %v2543
        %2646 = vmatpush1.msra.mxu0 %v2542
        %2647 = vmatprep.subr.mxu0 %v2546
        %2648 = vmatpush1.msra.mxu0 %v2545
        %2649 = vmatprep.subr.mxu0 %v2549
        %2650 = vmatpush1.msra.mxu0 %v2548
        %2651 = vmatprep.subr.mxu0 %v2552
        %2652 = vmatpush1.msra.mxu0 %v2551
        %2653 = vmatprep.subr.mxu0 %v2555
        %2654 = vmatpush1.msra.mxu0 %v2554
        %2655 = vmatprep.subr.mxu0 %v2558
        %2656 = vmatpush1.msra.mxu0 %v2557
        %2657 = vmatprep.subr.mxu0 %v2561
        %2658 = vmatpush1.msra.mxu0 %v2560
        %2659 = vmatprep.subr.mxu0 %v2564
        %2660 = vmatpush1.msra.mxu0 %v2563
        %2661 = vmatprep.subr.mxu0 %v2567
        %2662 = vmatpush1.msra.mxu0 %v2566
        %2663 = vmatprep.subr.mxu0 %v2570
        %2664 = vmatpush1.msra.mxu0 %v2569
        %2665 = vmatprep.subr.mxu0 %v2573
        %2666 = vmatpush1.msra.mxu0 %v2572
        %2667 = vmatprep.subr.mxu0 %v2576
        %2668 = vmatpush1.msra.mxu0 %v2575
        %2669 = vmatprep.subr.mxu0 %v2579
        %2670 = vmatpush1.msra.mxu0 %v2578
        %2671 = vmatprep.subr.mxu0 %v2582
        %2672 = vmatpush1.msra.mxu0 %v2581
        %2673 = vmatprep.subr.mxu0 %v2585
        %2674 = vmatpush1.msra.mxu0 %v2584
        %2675 = vmatprep.subr.mxu0 %v2588
        %2676 = vmatpush1.msra.mxu0 %v2587
        %2677 = vmatprep.subr.mxu0 %v2591
        %2678 = vmatpush1.msra.mxu0 %v2590
        %2679 = vmatprep.subr.mxu0 %v2594
        %2680 = vmatpush1.msra.mxu0 %v2593
        %2681 = vmatprep.subr.mxu0 %v2597
        %2682 = vmatpush1.msra.mxu0 %v2596
        %2683 = vmatprep.subr.mxu0 %v2600
        %2684 = vmatpush1.msra.mxu0 %v2599
        %2685 = vmatprep.subr.mxu0 %v2603
        %2686 = vmatpush1.msra.mxu0 %v2602
        %2687 = vmatprep.subr.mxu0 %v2606
        %2688 = vmatpush1.msra.mxu0 %v2605
        %2689 = vmatprep.subr.mxu0 %v2609
        %2690 = vmatpush1.msra.mxu0 %v2608
        %2691 = vmatprep.subr.mxu0 %v2612
        %2692 = vmatpush1.msra.mxu0 %v2611
        %2693 = vmatprep.mubr.f32.mxu0 %v2446
        %2694 = vmatmul.mubr.f32.gmra.mrb[0].mxu0 %v2444
        %v2695 = vpop.f32.mrb[0].mxu0
        %v2696 = vadd.f32 %v559, %v2695
        %v2697 = vpop.f32.mrb[0].mxu0
        %v2698 = vadd.f32 %v560, %v2697
        %2699 = vdwg.mxu0
        %2700 = vmatprep.subr.mxu0 %v2615
        %2701 = vmatpush1.msra.mxu0 %v2614
        %2702 = vmatprep.subr.mxu0 %v2618
        %2703 = vmatpush1.msra.mxu0 %v2617
        %2704 = vmatprep.subr.mxu0 %v2621
        %2705 = vmatpush1.msra.mxu0 %v2620
        %2706 = vmatprep.subr.mxu0 %v2624
        %2707 = vmatpush1.msra.mxu0 %v2623
        %2708 = vmatprep.subr.mxu0 0.0
        %2709 = vmatpush1.msra.mxu0 0.0
        %2710 = vmatprep.subr.mxu0 0.0
        %2711 = vmatpush1.msra.mxu0 0.0
        %2712 = vmatprep.subr.mxu0 0.0
        %2713 = vmatpush1.msra.mxu0 0.0
        %2714 = vmatprep.subr.mxu0 0.0
        %2715 = vmatpush1.msra.mxu0 0.0
        %2716 = vmatprep.subr.mxu0 0.0
        %2717 = vmatpush1.msra.mxu0 0.0
        %2718 = vmatprep.subr.mxu0 0.0
        %2719 = vmatpush1.msra.mxu0 0.0
        %2720 = vmatprep.subr.mxu0 0.0
        %2721 = vmatpush1.msra.mxu0 0.0
        %2722 = vmatprep.subr.mxu0 0.0
        %2723 = vmatpush1.msra.mxu0 0.0
        %2724 = vmatprep.subr.mxu0 0.0
        %2725 = vmatpush1.msra.mxu0 0.0
        %2726 = vmatprep.subr.mxu0 0.0
        %2727 = vmatpush1.msra.mxu0 0.0
        %2728 = vmatprep.subr.mxu0 0.0
        %2729 = vmatpush1.msra.mxu0 0.0
        %2730 = vmatprep.subr.mxu0 0.0
        %2731 = vmatpush1.msra.mxu0 0.0
        %2732 = vmatprep.subr.mxu0 0.0
        %2733 = vmatpush1.msra.mxu0 0.0
        %2734 = vmatprep.subr.mxu0 0.0
        %2735 = vmatpush1.msra.mxu0 0.0
        %2736 = vmatprep.subr.mxu0 0.0
        %2737 = vmatpush1.msra.mxu0 0.0
        %2738 = vmatprep.subr.mxu0 0.0
        %2739 = vmatpush1.msra.mxu0 0.0
        %2740 = vmatprep.subr.mxu0 0.0
        %2741 = vmatpush1.msra.mxu0 0.0
        %2742 = vmatprep.subr.mxu0 0.0
        %2743 = vmatpush1.msra.mxu0 0.0
        %2744 = vmatprep.subr.mxu0 0.0
        %2745 = vmatpush1.msra.mxu0 0.0
        %2746 = vmatprep.subr.mxu0 0.0
        %2747 = vmatpush1.msra.mxu0 0.0
        %2748 = vmatprep.subr.mxu0 0.0
        %2749 = vmatpush1.msra.mxu0 0.0
        %2750 = vmatprep.subr.mxu0 0.0
        %2751 = vmatpush1.msra.mxu0 0.0
        %2752 = vmatprep.subr.mxu0 0.0
        %2753 = vmatpush1.msra.mxu0 0.0
        %2754 = vmatprep.subr.mxu0 0.0
        %2755 = vmatpush1.msra.mxu0 0.0
        %2756 = vmatprep.subr.mxu0 0.0
        %2757 = vmatpush1.msra.mxu0 0.0
        %2758 = vmatprep.subr.mxu0 0.0
        %2759 = vmatpush1.msra.mxu0 0.0
        %2760 = vmatprep.subr.mxu0 0.0
        %2761 = vmatpush1.msra.mxu0 0.0
        %2762 = vmatprep.subr.mxu0 0.0
        %2763 = vmatpush1.msra.mxu0 0.0
        %2764 = vmatprep.mubr.f32.mxu0 0.0
        %2765 = vmatmul.mubr.f32.gmra.mrb[0].mxu0 %v2627
        %v2766 = vpop.f32.mrb[0].mxu0
        %v2767 = vadd.f32 %v2696, %v2766
        %v2768 = vpop.f32.mrb[0].mxu0
        %v2769 = vadd.f32 %v2698, %v2768
        %2770 = vdwg.mxu0
        %2771 = vmatprep.subr.mxu0 0.0
        %2772 = vmatpush1.msra.mxu0 %v2520
        %2773 = vmatprep.subr.mxu0 0.0
        %2774 = vmatpush1.msra.mxu0 %v2523
        %2775 = vmatprep.subr.mxu0 0.0
        %2776 = vmatpush1.msra.mxu0 %v2526
        %2777 = vmatprep.subr.mxu0 0.0
        %2778 = vmatpush1.msra.mxu0 %v2529
        %2779 = vmatprep.subr.mxu0 0.0
        %2780 = vmatpush1.msra.mxu0 %v2532
        %2781 = vmatprep.subr.mxu0 0.0
        %2782 = vmatpush1.msra.mxu0 %v2535
        %2783 = vmatprep.subr.mxu0 0.0
        %2784 = vmatpush1.msra.mxu0 %v2538
        %2785 = vmatprep.subr.mxu0 0.0
        %2786 = vmatpush1.msra.mxu0 %v2541
        %2787 = vmatprep.subr.mxu0 0.0
        %2788 = vmatpush1.msra.mxu0 %v2544
        %2789 = vmatprep.subr.mxu0 0.0
        %2790 = vmatpush1.msra.mxu0 %v2547
        %2791 = vmatprep.subr.mxu0 0.0
        %2792 = vmatpush1.msra.mxu0 %v2550
        %2793 = vmatprep.subr.mxu0 0.0
        %2794 = vmatpush1.msra.mxu0 %v2553
        %2795 = vmatprep.subr.mxu0 0.0
        %2796 = vmatpush1.msra.mxu0 %v2556
        %2797 = vmatprep.subr.mxu0 0.0
        %2798 = vmatpush1.msra.mxu0 %v2559
        %2799 = vmatprep.subr.mxu0 0.0
        %2800 = vmatpush1.msra.mxu0 %v2562
        %2801 = vmatprep.subr.mxu0 0.0
        %2802 = vmatpush1.msra.mxu0 %v2565
        %2803 = vmatprep.subr.mxu0 0.0
        %2804 = vmatpush1.msra.mxu0 %v2568
        %2805 = vmatprep.subr.mxu0 0.0
        %2806 = vmatpush1.msra.mxu0 %v2571
        %2807 = vmatprep.subr.mxu0 0.0
        %2808 = vmatpush1.msra.mxu0 %v2574
        %2809 = vmatprep.subr.mxu0 0.0
        %2810 = vmatpush1.msra.mxu0 %v2577
        %2811 = vmatprep.subr.mxu0 0.0
        %2812 = vmatpush1.msra.mxu0 %v2580
        %2813 = vmatprep.subr.mxu0 0.0
        %2814 = vmatpush1.msra.mxu0 %v2583
        %2815 = vmatprep.subr.mxu0 0.0
        %2816 = vmatpush1.msra.mxu0 %v2586
        %2817 = vmatprep.subr.mxu0 0.0
        %2818 = vmatpush1.msra.mxu0 %v2589
        %2819 = vmatprep.subr.mxu0 0.0
        %2820 = vmatpush1.msra.mxu0 %v2592
        %2821 = vmatprep.subr.mxu0 0.0
        %2822 = vmatpush1.msra.mxu0 %v2595
        %2823 = vmatprep.subr.mxu0 0.0
        %2824 = vmatpush1.msra.mxu0 %v2598
        %2825 = vmatprep.subr.mxu0 0.0
        %2826 = vmatpush1.msra.mxu0 %v2601
        %2827 = vmatprep.subr.mxu0 0.0
        %2828 = vmatpush1.msra.mxu0 %v2604
        %2829 = vmatprep.subr.mxu0 0.0
        %2830 = vmatpush1.msra.mxu0 %v2607
        %2831 = vmatprep.subr.mxu0 0.0
        %2832 = vmatpush1.msra.mxu0 %v2610
        %2833 = vmatprep.subr.mxu0 0.0
        %2834 = vmatpush1.msra.mxu0 %v2613
        %2835 = vmatprep.mubr.f32.mxu0 %v2446
        %2836 = vmatmul.mubr.f32.gmra.mrb[0].mxu0 %v2444
        %v2837 = vpop.f32.mrb[0].mxu0
        %v2838 = vadd.f32 %v561, %v2837
        %v2839 = vpop.f32.mrb[0].mxu0
        %2840 = vdwg.mxu0
        %2841 = vmatprep.subr.mxu0 0.0
        %2842 = vmatpush1.msra.mxu0 %v2616
        %2843 = vmatprep.subr.mxu0 0.0
        %2844 = vmatpush1.msra.mxu0 %v2619
        %2845 = vmatprep.subr.mxu0 0.0
        %2846 = vmatpush1.msra.mxu0 %v2622
        %2847 = vmatprep.subr.mxu0 0.0
        %2848 = vmatpush1.msra.mxu0 %v2625
        %2849 = vmatprep.subr.mxu0 0.0
        %2850 = vmatpush1.msra.mxu0 0.0
        %2851 = vmatprep.subr.mxu0 0.0
        %2852 = vmatpush1.msra.mxu0 0.0
        %2853 = vmatprep.subr.mxu0 0.0
        %2854 = vmatpush1.msra.mxu0 0.0
        %2855 = vmatprep.subr.mxu0 0.0
        %2856 = vmatpush1.msra.mxu0 0.0
        %2857 = vmatprep.subr.mxu0 0.0
        %2858 = vmatpush1.msra.mxu0 0.0
        %2859 = vmatprep.subr.mxu0 0.0
        %2860 = vmatpush1.msra.mxu0 0.0
        %2861 = vmatprep.subr.mxu0 0.0
        %2862 = vmatpush1.msra.mxu0 0.0
        %2863 = vmatprep.subr.mxu0 0.0
        %2864 = vmatpush1.msra.mxu0 0.0
        %2865 = vmatprep.subr.mxu0 0.0
        %2866 = vmatpush1.msra.mxu0 0.0
        %2867 = vmatprep.subr.mxu0 0.0
        %2868 = vmatpush1.msra.mxu0 0.0
        %2869 = vmatprep.subr.mxu0 0.0
        %2870 = vmatpush1.msra.mxu0 0.0
        %2871 = vmatprep.subr.mxu0 0.0
        %2872 = vmatpush1.msra.mxu0 0.0
        %2873 = vmatprep.subr.mxu0 0.0
        %2874 = vmatpush1.msra.mxu0 0.0
        %2875 = vmatprep.subr.mxu0 0.0
        %2876 = vmatpush1.msra.mxu0 0.0
        %2877 = vmatprep.subr.mxu0 0.0
        %2878 = vmatpush1.msra.mxu0 0.0
        %2879 = vmatprep.subr.mxu0 0.0
        %2880 = vmatpush1.msra.mxu0 0.0
        %2881 = vmatprep.subr.mxu0 0.0
        %2882 = vmatpush1.msra.mxu0 0.0
        %2883 = vmatprep.subr.mxu0 0.0
        %2884 = vmatpush1.msra.mxu0 0.0
        %2885 = vmatprep.subr.mxu0 0.0
        %2886 = vmatpush1.msra.mxu0 0.0
        %2887 = vmatprep.subr.mxu0 0.0
        %2888 = vmatpush1.msra.mxu0 0.0
        %2889 = vmatprep.subr.mxu0 0.0
        %2890 = vmatpush1.msra.mxu0 0.0
        %2891 = vmatprep.subr.mxu0 0.0
        %2892 = vmatpush1.msra.mxu0 0.0
        %2893 = vmatprep.subr.mxu0 0.0
        %2894 = vmatpush1.msra.mxu0 0.0
        %2895 = vmatprep.subr.mxu0 0.0
        %2896 = vmatpush1.msra.mxu0 0.0
        %2897 = vmatprep.subr.mxu0 0.0
        %2898 = vmatpush1.msra.mxu0 0.0
        %2899 = vmatprep.subr.mxu0 0.0
        %2900 = vmatpush1.msra.mxu0 0.0
        %2901 = vmatprep.subr.mxu0 0.0
        %2902 = vmatpush1.msra.mxu0 0.0
        %2903 = vmatprep.subr.mxu0 0.0
        %2904 = vmatpush1.msra.mxu0 0.0
        %2905 = vmatprep.mubr.f32.mxu0 0.0
        %2906 = vmatmul.mubr.f32.gmra.mrb[0].mxu0 %v2627
        %v2907 = vpop.f32.mrb[0].mxu0
        %v2908 = vadd.f32 %v2838, %v2907
        %v2909 = vpop.f32.mrb[0].mxu0
        %2910 = vdwg.mxu0
        %2911 = vmatprep.subr.mxu0 %v2769
        %2912 = vmatpush1.msra.mxu0 %v2767
        %2913 = vmatprep.subr.mxu0 0.0
        %2914 = vmatpush1.msra.mxu0 0.0
        %2915 = vmatprep.subr.mxu0 0.0
        %2916 = vmatpush1.msra.mxu0 0.0
        %2917 = vmatprep.subr.mxu0 0.0
        %2918 = vmatpush1.msra.mxu0 0.0
        %2919 = vmatprep.subr.mxu0 0.0
        %2920 = vmatpush1.msra.mxu0 0.0
        %2921 = vmatprep.subr.mxu0 0.0
        %2922 = vmatpush1.msra.mxu0 0.0
        %2923 = vmatprep.subr.mxu0 0.0
        %2924 = vmatpush1.msra.mxu0 0.0
        %2925 = vmatprep.subr.mxu0 0.0
        %2926 = vmatpush1.msra.mxu0 0.0
        %2927 = vmatprep.subr.mxu0 0.0
        %2928 = vmatpush1.msra.mxu0 0.0
        %2929 = vmatprep.subr.mxu0 0.0
        %2930 = vmatpush1.msra.mxu0 0.0
        %2931 = vmatprep.subr.mxu0 0.0
        %2932 = vmatpush1.msra.mxu0 0.0
        %2933 = vmatprep.subr.mxu0 0.0
        %2934 = vmatpush1.msra.mxu0 0.0
        %2935 = vmatprep.subr.mxu0 0.0
        %2936 = vmatpush1.msra.mxu0 0.0
        %2937 = vmatprep.subr.mxu0 0.0
        %2938 = vmatpush1.msra.mxu0 0.0
        %2939 = vmatprep.subr.mxu0 0.0
        %2940 = vmatpush1.msra.mxu0 0.0
        %2941 = vmatprep.subr.mxu0 0.0
        %2942 = vmatpush1.msra.mxu0 0.0
        %2943 = vmatprep.subr.mxu0 0.0
        %2944 = vmatpush1.msra.mxu0 0.0
        %2945 = vmatprep.subr.mxu0 0.0
        %2946 = vmatpush1.msra.mxu0 0.0
        %2947 = vmatprep.subr.mxu0 0.0
        %2948 = vmatpush1.msra.mxu0 0.0
        %2949 = vmatprep.subr.mxu0 0.0
        %2950 = vmatpush1.msra.mxu0 0.0
        %2951 = vmatprep.subr.mxu0 0.0
        %2952 = vmatpush1.msra.mxu0 0.0
        %2953 = vmatprep.subr.mxu0 0.0
        %2954 = vmatpush1.msra.mxu0 0.0
        %2955 = vmatprep.subr.mxu0 0.0
        %2956 = vmatpush1.msra.mxu0 0.0
        %2957 = vmatprep.subr.mxu0 0.0
        %2958 = vmatpush1.msra.mxu0 0.0
        %2959 = vmatprep.subr.mxu0 0.0
        %2960 = vmatpush1.msra.mxu0 0.0
        %2961 = vmatprep.subr.mxu0 0.0
        %2962 = vmatpush1.msra.mxu0 0.0
        %2963 = vmatprep.subr.mxu0 0.0
        %2964 = vmatpush1.msra.mxu0 0.0
        %2965 = vmatprep.subr.mxu0 0.0
        %2966 = vmatpush1.msra.mxu0 0.0
        %2967 = vmatprep.subr.mxu0 0.0
        %2968 = vmatpush1.msra.mxu0 0.0
        %2969 = vmatprep.subr.mxu0 0.0
        %2970 = vmatpush1.msra.mxu0 0.0
        %2971 = vmatprep.subr.mxu0 0.0
        %2972 = vmatpush1.msra.mxu0 0.0
        %2973 = vmatprep.subr.mxu0 0.0
        %2974 = vmatpush1.msra.mxu0 0.0
        %2975 = vmatprep.mubr.f32.mxu0 0.0
        %2976 = vmatmul.mubr.f32.gmra.mrb[0].mxu0 %v1397
        %v2977 = vpop.f32.mrb[0].mxu0
        %v2978 = vadd.f32 0.0, %v2977
        %v2979 = vpop.f32.mrb[0].mxu0
        %v2980 = vadd.f32 0.0, %v2979
        %2981 = vmatprep.mubr.f32.mxu0 0.0
        %2982 = vmatmul.mubr.f32.gmra.mrb[0].mxu0 %v1400
        %v2983 = vpop.f32.mrb[0].mxu0
        %v2984 = vadd.f32 0.0, %v2983
        %v2985 = vpop.f32.mrb[0].mxu0
        %v2986 = vadd.f32 0.0, %v2985
        %2987 = vdwg.mxu0
        %2988 = vmatprep.subr.mxu0 0.0
        %2989 = vmatpush1.msra.mxu0 %v2908
        %2990 = vmatprep.subr.mxu0 0.0
        %2991 = vmatpush1.msra.mxu0 0.0
        %2992 = vmatprep.subr.mxu0 0.0
        %2993 = vmatpush1.msra.mxu0 0.0
        %2994 = vmatprep.subr.mxu0 0.0
        %2995 = vmatpush1.msra.mxu0 0.0
        %2996 = vmatprep.subr.mxu0 0.0
        %2997 = vmatpush1.msra.mxu0 0.0
        %2998 = vmatprep.subr.mxu0 0.0
        %2999 = vmatpush1.msra.mxu0 0.0
        %3000 = vmatprep.subr.mxu0 0.0
        %3001 = vmatpush1.msra.mxu0 0.0
        %3002 = vmatprep.subr.mxu0 0.0
        %3003 = vmatpush1.msra.mxu0 0.0
        %3004 = vmatprep.subr.mxu0 0.0
        %3005 = vmatpush1.msra.mxu0 0.0
        %3006 = vmatprep.subr.mxu0 0.0
        %3007 = vmatpush1.msra.mxu0 0.0
        %3008 = vmatprep.subr.mxu0 0.0
        %3009 = vmatpush1.msra.mxu0 0.0
        %3010 = vmatprep.subr.mxu0 0.0
        %3011 = vmatpush1.msra.mxu0 0.0
        %3012 = vmatprep.subr.mxu0 0.0
        %3013 = vmatpush1.msra.mxu0 0.0
        %3014 = vmatprep.subr.mxu0 0.0
        %3015 = vmatpush1.msra.mxu0 0.0
        %3016 = vmatprep.subr.mxu0 0.0
        %3017 = vmatpush1.msra.mxu0 0.0
        %3018 = vmatprep.subr.mxu0 0.0
        %3019 = vmatpush1.msra.mxu0 0.0
        %3020 = vmatprep.subr.mxu0 0.0
        %3021 = vmatpush1.msra.mxu0 0.0
        %3022 = vmatprep.subr.mxu0 0.0
        %3023 = vmatpush1.msra.mxu0 0.0
        %3024 = vmatprep.subr.mxu0 0.0
        %3025 = vmatpush1.msra.mxu0 0.0
        %3026 = vmatprep.subr.mxu0 0.0
        %3027 = vmatpush1.msra.mxu0 0.0
        %3028 = vmatprep.subr.mxu0 0.0
        %3029 = vmatpush1.msra.mxu0 0.0
        %3030 = vmatprep.subr.mxu0 0.0
        %3031 = vmatpush1.msra.mxu0 0.0
        %3032 = vmatprep.subr.mxu0 0.0
        %3033 = vmatpush1.msra.mxu0 0.0
        %3034 = vmatprep.subr.mxu0 0.0
        %3035 = vmatpush1.msra.mxu0 0.0
        %3036 = vmatprep.subr.mxu0 0.0
        %3037 = vmatpush1.msra.mxu0 0.0
        %3038 = vmatprep.subr.mxu0 0.0
        %3039 = vmatpush1.msra.mxu0 0.0
        %3040 = vmatprep.subr.mxu0 0.0
        %3041 = vmatpush1.msra.mxu0 0.0
        %3042 = vmatprep.subr.mxu0 0.0
        %3043 = vmatpush1.msra.mxu0 0.0
        %3044 = vmatprep.subr.mxu0 0.0
        %3045 = vmatpush1.msra.mxu0 0.0
        %3046 = vmatprep.subr.mxu0 0.0
        %3047 = vmatpush1.msra.mxu0 0.0
        %3048 = vmatprep.subr.mxu0 0.0
        %3049 = vmatpush1.msra.mxu0 0.0
        %3050 = vmatprep.subr.mxu0 0.0
        %3051 = vmatpush1.msra.mxu0 0.0
        %3052 = vmatprep.mubr.f32.mxu0 0.0
        %3053 = vmatmul.mubr.f32.gmra.mrb[0].mxu0 %v1397
        %v3054 = vpop.f32.mrb[0].mxu0
        %v3055 = vadd.f32 0.0, %v3054
        %v3056 = vpop.f32.mrb[0].mxu0
        %3057 = vmatprep.mubr.f32.mxu0 0.0
        %3058 = vmatmul.mubr.f32.gmra.mrb[0].mxu0 %v1400
        %v3059 = vpop.f32.mrb[0].mxu0
        %v3060 = vadd.f32 0.0, %v3059
        %v3061 = vpop.f32.mrb[0].mxu0
        %3062 = vdwg.mxu0
        %s3063 = scalar_lea.vmem [#allocation5], 8
        %v3064 = vld [vmem:[%s3063] sm:$0xff]
        %s3065 = scalar_lea.vmem [#allocation7], 1
        %v3066 = vld [vmem:[%s3065] sm:$0x1]
        %v3068 = vlaneseq
        %v3069 = vshrl.u32 %v3068, 7
        %v3070 = vsub.s32 0, %v3069
        %v3071 = vrot.slane %v3066, %v3070
        %3073 = vmatprep.subr.mxu0 0.0
        %3074 = vmatpush1.msra.mxu0 %v3064
        %3075 = vmatprep.subr.mxu0 0.0
        %3076 = vmatpush1.msra.mxu0 0.0
        %3077 = vmatprep.subr.mxu0 0.0
        %3078 = vmatpush1.msra.mxu0 0.0
        %3079 = vmatprep.subr.mxu0 0.0
        %3080 = vmatpush1.msra.mxu0 0.0
        %3081 = vmatprep.subr.mxu0 0.0
        %3082 = vmatpush1.msra.mxu0 0.0
        %3083 = vmatprep.subr.mxu0 0.0
        %3084 = vmatpush1.msra.mxu0 0.0
        %3085 = vmatprep.subr.mxu0 0.0
        %3086 = vmatpush1.msra.mxu0 0.0
        %3087 = vmatprep.subr.mxu0 0.0
        %3088 = vmatpush1.msra.mxu0 0.0
        %3089 = vmatprep.subr.mxu0 0.0
        %3090 = vmatpush1.msra.mxu0 0.0
        %3091 = vmatprep.subr.mxu0 0.0
        %3092 = vmatpush1.msra.mxu0 0.0
        %3093 = vmatprep.subr.mxu0 0.0
        %3094 = vmatpush1.msra.mxu0 0.0
        %3095 = vmatprep.subr.mxu0 0.0
        %3096 = vmatpush1.msra.mxu0 0.0
        %3097 = vmatprep.subr.mxu0 0.0
        %3098 = vmatpush1.msra.mxu0 0.0
        %3099 = vmatprep.subr.mxu0 0.0
        %3100 = vmatpush1.msra.mxu0 0.0
        %3101 = vmatprep.subr.mxu0 0.0
        %3102 = vmatpush1.msra.mxu0 0.0
        %3103 = vmatprep.subr.mxu0 0.0
        %3104 = vmatpush1.msra.mxu0 0.0
        %3105 = vmatprep.subr.mxu0 0.0
        %3106 = vmatpush1.msra.mxu0 0.0
        %3107 = vmatprep.subr.mxu0 0.0
        %3108 = vmatpush1.msra.mxu0 0.0
        %3109 = vmatprep.subr.mxu0 0.0
        %3110 = vmatpush1.msra.mxu0 0.0
        %3111 = vmatprep.subr.mxu0 0.0
        %3112 = vmatpush1.msra.mxu0 0.0
        %3113 = vmatprep.subr.mxu0 0.0
        %3114 = vmatpush1.msra.mxu0 0.0
        %3115 = vmatprep.subr.mxu0 0.0
        %3116 = vmatpush1.msra.mxu0 0.0
        %3117 = vmatprep.subr.mxu0 0.0
        %3118 = vmatpush1.msra.mxu0 0.0
        %3119 = vmatprep.subr.mxu0 0.0
        %3120 = vmatpush1.msra.mxu0 0.0
        %3121 = vmatprep.subr.mxu0 0.0
        %3122 = vmatpush1.msra.mxu0 0.0
        %3123 = vmatprep.subr.mxu0 0.0
        %3124 = vmatpush1.msra.mxu0 0.0
        %3125 = vmatprep.subr.mxu0 0.0
        %3126 = vmatpush1.msra.mxu0 0.0
        %3127 = vmatprep.subr.mxu0 0.0
        %3128 = vmatpush1.msra.mxu0 0.0
        %3129 = vmatprep.subr.mxu0 0.0
        %3130 = vmatpush1.msra.mxu0 0.0
        %3131 = vmatprep.subr.mxu0 0.0
        %3132 = vmatpush1.msra.mxu0 0.0
        %3133 = vmatprep.subr.mxu0 0.0
        %3134 = vmatpush1.msra.mxu0 0.0
        %3135 = vmatprep.subr.mxu0 0.0
        %3136 = vmatpush1.msra.mxu0 0.0
        %3137 = vmatprep.mubr.f32.mxu0 0.0
        %3138 = vmatmul.mubr.f32.gmra.mrb[0].mxu0 %v1563
        %v3139 = vpop.f32.mrb[0].mxu0
        %v3140 = vadd.f32 %v3071, %v3139
        %v3141 = vpop.f32.mrb[0].mxu0
        %3142 = vmatprep.mubr.f32.mxu0 0.0
        %3143 = vmatmul.mubr.f32.gmra.mrb[0].mxu0 %v1566
        %v3144 = vpop.f32.mrb[0].mxu0
        %v3145 = vadd.f32 %v3071, %v3144
        %v3146 = vpop.f32.mrb[0].mxu0
        %3147 = vdwg.mxu0
        %v3148 = vmax.f32 %v3140, 0.0
        %v3149 = vmax.f32 %v3145, 0.0
        %s3150 = scalar_lea.vmem [#allocation8], 64
        %v3151 = vld [vmem:[%s3150] sm:$0xff]
        %v3152 = vld [vmem:[%s3150 + $0x8] sm:$0xff]
        %v3153 = vld [vmem:[%s3150 + $0x10] sm:$0xff]
        %v3154 = vld [vmem:[%s3150 + $0x18] sm:$0xff]
        %v3155 = vld [vmem:[%s3150 + $0x20] sm:$0xff]
        %v3156 = vld [vmem:[%s3150 + $0x28] sm:$0xff]
        %v3157 = vld [vmem:[%s3150 + $0x30] sm:$0xff]
        %v3158 = vld [vmem:[%s3150 + $0x38] sm:$0xff]
        %s3159 = scalar_lea.vmem [#allocation10], 2
        %v3160 = vld [vmem:[%s3159] sm:$0x3]
        %v3162 = vlaneseq
        %v3163 = vshrl.u32 %v3162, 7
        %v3164 = vsub.s32 0, %v3163
        %v3165 = vrot.slane %v3160, %v3164
        %v3166 = vlaneseq
        %v3167 = vshrl.u32 %v3166, 7
        %v3168 = vsub.s32 1, %v3167
        %v3169 = vrot.slane %v3160, %v3168
        %v3173 = vsel %vm1665, %v3148, 0
        %v3176 = vsel %vm1665, %v3149, 0
        %3178 = vmatprep.subr.mxu0 %v3152
        %3179 = vmatpush1.msra.mxu0 %v3151
        %3180 = vmatprep.subr.mxu0 %v3154
        %3181 = vmatpush1.msra.mxu0 %v3153
        %3182 = vmatprep.subr.mxu0 %v3156
        %3183 = vmatpush1.msra.mxu0 %v3155
        %3184 = vmatprep.subr.mxu0 %v3158
        %3185 = vmatpush1.msra.mxu0 %v3157
        %3186 = vmatprep.subr.mxu0 0.0
        %3187 = vmatpush1.msra.mxu0 0.0
        %3188 = vmatprep.subr.mxu0 0.0
        %3189 = vmatpush1.msra.mxu0 0.0
        %3190 = vmatprep.subr.mxu0 0.0
        %3191 = vmatpush1.msra.mxu0 0.0
        %3192 = vmatprep.subr.mxu0 0.0
        %3193 = vmatpush1.msra.mxu0 0.0
        %3194 = vmatprep.subr.mxu0 0.0
        %3195 = vmatpush1.msra.mxu0 0.0
        %3196 = vmatprep.subr.mxu0 0.0
        %3197 = vmatpush1.msra.mxu0 0.0
        %3198 = vmatprep.subr.mxu0 0.0
        %3199 = vmatpush1.msra.mxu0 0.0
        %3200 = vmatprep.subr.mxu0 0.0
        %3201 = vmatpush1.msra.mxu0 0.0
        %3202 = vmatprep.subr.mxu0 0.0
        %3203 = vmatpush1.msra.mxu0 0.0
        %3204 = vmatprep.subr.mxu0 0.0
        %3205 = vmatpush1.msra.mxu0 0.0
        %3206 = vmatprep.subr.mxu0 0.0
        %3207 = vmatpush1.msra.mxu0 0.0
        %3208 = vmatprep.subr.mxu0 0.0
        %3209 = vmatpush1.msra.mxu0 0.0
        %3210 = vmatprep.subr.mxu0 0.0
        %3211 = vmatpush1.msra.mxu0 0.0
        %3212 = vmatprep.subr.mxu0 0.0
        %3213 = vmatpush1.msra.mxu0 0.0
        %3214 = vmatprep.subr.mxu0 0.0
        %3215 = vmatpush1.msra.mxu0 0.0
        %3216 = vmatprep.subr.mxu0 0.0
        %3217 = vmatpush1.msra.mxu0 0.0
        %3218 = vmatprep.subr.mxu0 0.0
        %3219 = vmatpush1.msra.mxu0 0.0
        %3220 = vmatprep.subr.mxu0 0.0
        %3221 = vmatpush1.msra.mxu0 0.0
        %3222 = vmatprep.subr.mxu0 0.0
        %3223 = vmatpush1.msra.mxu0 0.0
        %3224 = vmatprep.subr.mxu0 0.0
        %3225 = vmatpush1.msra.mxu0 0.0
        %3226 = vmatprep.subr.mxu0 0.0
        %3227 = vmatpush1.msra.mxu0 0.0
        %3228 = vmatprep.subr.mxu0 0.0
        %3229 = vmatpush1.msra.mxu0 0.0
        %3230 = vmatprep.subr.mxu0 0.0
        %3231 = vmatpush1.msra.mxu0 0.0
        %3232 = vmatprep.subr.mxu0 0.0
        %3233 = vmatpush1.msra.mxu0 0.0
        %3234 = vmatprep.subr.mxu0 0.0
        %3235 = vmatpush1.msra.mxu0 0.0
        %3236 = vmatprep.subr.mxu0 0.0
        %3237 = vmatpush1.msra.mxu0 0.0
        %3238 = vmatprep.subr.mxu0 0.0
        %3239 = vmatpush1.msra.mxu0 0.0
        %3240 = vmatprep.subr.mxu0 0.0
        %3241 = vmatpush1.msra.mxu0 0.0
        %3242 = vmatprep.mubr.f32.mxu0 0.0
        %3243 = vmatmul.mubr.f32.gmra.mrb[0].mxu0 %v3173
        %v3244 = vpop.f32.mrb[0].mxu0
        %v3245 = vadd.f32 %v3165, %v3244
        %v3246 = vpop.f32.mrb[0].mxu0
        %v3247 = vadd.f32 %v3169, %v3246
        %3248 = vmatprep.mubr.f32.mxu0 0.0
        %3249 = vmatmul.mubr.f32.gmra.mrb[0].mxu0 %v3176
        %v3250 = vpop.f32.mrb[0].mxu0
        %v3251 = vadd.f32 %v3165, %v3250
        %v3252 = vpop.f32.mrb[0].mxu0
        %v3253 = vadd.f32 %v3169, %v3252
        %3254 = vdwg.mxu0
        %v3256 = vsel %vm1665, %v3247, 0
        %v3259 = vsel %vm1665, %v3253, 0
        %3261 = vmatprep.subr.mxu0 %v1750
        %3262 = vmatpush1.msra.mxu0 %v1749
        %3263 = vmatprep.subr.mxu0 %v1753
        %3264 = vmatpush1.msra.mxu0 %v1752
        %3265 = vmatprep.subr.mxu0 %v1756
        %3266 = vmatpush1.msra.mxu0 %v1755
        %3267 = vmatprep.subr.mxu0 %v1759
        %3268 = vmatpush1.msra.mxu0 %v1758
        %3269 = vmatprep.subr.mxu0 %v1762
        %3270 = vmatpush1.msra.mxu0 %v1761
        %3271 = vmatprep.subr.mxu0 %v1765
        %3272 = vmatpush1.msra.mxu0 %v1764
        %3273 = vmatprep.subr.mxu0 %v1768
        %3274 = vmatpush1.msra.mxu0 %v1767
        %3275 = vmatprep.subr.mxu0 %v1771
        %3276 = vmatpush1.msra.mxu0 %v1770
        %3277 = vmatprep.subr.mxu0 %v1774
        %3278 = vmatpush1.msra.mxu0 %v1773
        %3279 = vmatprep.subr.mxu0 %v1777
        %3280 = vmatpush1.msra.mxu0 %v1776
        %3281 = vmatprep.subr.mxu0 %v1780
        %3282 = vmatpush1.msra.mxu0 %v1779
        %3283 = vmatprep.subr.mxu0 %v1783
        %3284 = vmatpush1.msra.mxu0 %v1782
        %3285 = vmatprep.subr.mxu0 %v1786
        %3286 = vmatpush1.msra.mxu0 %v1785
        %3287 = vmatprep.subr.mxu0 %v1789
        %3288 = vmatpush1.msra.mxu0 %v1788
        %3289 = vmatprep.subr.mxu0 %v1792
        %3290 = vmatpush1.msra.mxu0 %v1791
        %3291 = vmatprep.subr.mxu0 %v1795
        %3292 = vmatpush1.msra.mxu0 %v1794
        %3293 = vmatprep.subr.mxu0 %v1798
        %3294 = vmatpush1.msra.mxu0 %v1797
        %3295 = vmatprep.subr.mxu0 %v1801
        %3296 = vmatpush1.msra.mxu0 %v1800
        %3297 = vmatprep.subr.mxu0 %v1804
        %3298 = vmatpush1.msra.mxu0 %v1803
        %3299 = vmatprep.subr.mxu0 %v1807
        %3300 = vmatpush1.msra.mxu0 %v1806
        %3301 = vmatprep.subr.mxu0 0.0
        %3302 = vmatpush1.msra.mxu0 0.0
        %3303 = vmatprep.subr.mxu0 0.0
        %3304 = vmatpush1.msra.mxu0 0.0
        %3305 = vmatprep.subr.mxu0 0.0
        %3306 = vmatpush1.msra.mxu0 0.0
        %3307 = vmatprep.subr.mxu0 0.0
        %3308 = vmatpush1.msra.mxu0 0.0
        %3309 = vmatprep.subr.mxu0 0.0
        %3310 = vmatpush1.msra.mxu0 0.0
        %3311 = vmatprep.subr.mxu0 0.0
        %3312 = vmatpush1.msra.mxu0 0.0
        %3313 = vmatprep.subr.mxu0 0.0
        %3314 = vmatpush1.msra.mxu0 0.0
        %3315 = vmatprep.subr.mxu0 0.0
        %3316 = vmatpush1.msra.mxu0 0.0
        %3317 = vmatprep.subr.mxu0 0.0
        %3318 = vmatpush1.msra.mxu0 0.0
        %3319 = vmatprep.subr.mxu0 0.0
        %3320 = vmatpush1.msra.mxu0 0.0
        %3321 = vmatprep.subr.mxu0 0.0
        %3322 = vmatpush1.msra.mxu0 0.0
        %3323 = vmatprep.subr.mxu0 0.0
        %3324 = vmatpush1.msra.mxu0 0.0
        %3325 = vmatprep.mubr.f32.mxu0 %v3256
        %3326 = vmatmul.mubr.f32.gmra.mrb[0].mxu0 %v3245
        %v3327 = vpop.f32.mrb[0].mxu0
        %v3328 = vadd.f32 0.0, %v3327
        %v3329 = vpop.f32.mrb[0].mxu0
        %v3330 = vadd.f32 0.0, %v3329
        %3331 = vmatprep.mubr.f32.mxu0 %v3259
        %3332 = vmatmul.mubr.f32.gmra.mrb[0].mxu0 %v3251
        %v3333 = vpop.f32.mrb[0].mxu0
        %v3334 = vadd.f32 0.0, %v3333
        %v3335 = vpop.f32.mrb[0].mxu0
        %v3336 = vadd.f32 0.0, %v3335
        %3337 = vdwg.mxu0
        %3338 = vmatprep.subr.mxu0 0.0
        %3339 = vmatpush1.msra.mxu0 %v1751
        %3340 = vmatprep.subr.mxu0 0.0
        %3341 = vmatpush1.msra.mxu0 %v1754
        %3342 = vmatprep.subr.mxu0 0.0
        %3343 = vmatpush1.msra.mxu0 %v1757
        %3344 = vmatprep.subr.mxu0 0.0
        %3345 = vmatpush1.msra.mxu0 %v1760
        %3346 = vmatprep.subr.mxu0 0.0
        %3347 = vmatpush1.msra.mxu0 %v1763
        %3348 = vmatprep.subr.mxu0 0.0
        %3349 = vmatpush1.msra.mxu0 %v1766
        %3350 = vmatprep.subr.mxu0 0.0
        %3351 = vmatpush1.msra.mxu0 %v1769
        %3352 = vmatprep.subr.mxu0 0.0
        %3353 = vmatpush1.msra.mxu0 %v1772
        %3354 = vmatprep.subr.mxu0 0.0
        %3355 = vmatpush1.msra.mxu0 %v1775
        %3356 = vmatprep.subr.mxu0 0.0
        %3357 = vmatpush1.msra.mxu0 %v1778
        %3358 = vmatprep.subr.mxu0 0.0
        %3359 = vmatpush1.msra.mxu0 %v1781
        %3360 = vmatprep.subr.mxu0 0.0
        %3361 = vmatpush1.msra.mxu0 %v1784
        %3362 = vmatprep.subr.mxu0 0.0
        %3363 = vmatpush1.msra.mxu0 %v1787
        %3364 = vmatprep.subr.mxu0 0.0
        %3365 = vmatpush1.msra.mxu0 %v1790
        %3366 = vmatprep.subr.mxu0 0.0
        %3367 = vmatpush1.msra.mxu0 %v1793
        %3368 = vmatprep.subr.mxu0 0.0
        %3369 = vmatpush1.msra.mxu0 %v1796
        %3370 = vmatprep.subr.mxu0 0.0
        %3371 = vmatpush1.msra.mxu0 %v1799
        %3372 = vmatprep.subr.mxu0 0.0
        %3373 = vmatpush1.msra.mxu0 %v1802
        %3374 = vmatprep.subr.mxu0 0.0
        %3375 = vmatpush1.msra.mxu0 %v1805
        %3376 = vmatprep.subr.mxu0 0.0
        %3377 = vmatpush1.msra.mxu0 %v1808
        %3378 = vmatprep.subr.mxu0 0.0
        %3379 = vmatpush1.msra.mxu0 0.0
        %3380 = vmatprep.subr.mxu0 0.0
        %3381 = vmatpush1.msra.mxu0 0.0
        %3382 = vmatprep.subr.mxu0 0.0
        %3383 = vmatpush1.msra.mxu0 0.0
        %3384 = vmatprep.subr.mxu0 0.0
        %3385 = vmatpush1.msra.mxu0 0.0
        %3386 = vmatprep.subr.mxu0 0.0
        %3387 = vmatpush1.msra.mxu0 0.0
        %3388 = vmatprep.subr.mxu0 0.0
        %3389 = vmatpush1.msra.mxu0 0.0
        %3390 = vmatprep.subr.mxu0 0.0
        %3391 = vmatpush1.msra.mxu0 0.0
        %3392 = vmatprep.subr.mxu0 0.0
        %3393 = vmatpush1.msra.mxu0 0.0
        %3394 = vmatprep.subr.mxu0 0.0
        %3395 = vmatpush1.msra.mxu0 0.0
        %3396 = vmatprep.subr.mxu0 0.0
        %3397 = vmatpush1.msra.mxu0 0.0
        %3398 = vmatprep.subr.mxu0 0.0
        %3399 = vmatpush1.msra.mxu0 0.0
        %3400 = vmatprep.subr.mxu0 0.0
        %3401 = vmatpush1.msra.mxu0 0.0
        %3402 = vmatprep.mubr.f32.mxu0 %v3256
        %3403 = vmatmul.mubr.f32.gmra.mrb[0].mxu0 %v3245
        %v3404 = vpop.f32.mrb[0].mxu0
        %v3405 = vadd.f32 0.0, %v3404
        %v3406 = vpop.f32.mrb[0].mxu0
        %3407 = vmatprep.mubr.f32.mxu0 %v3259
        %3408 = vmatmul.mubr.f32.gmra.mrb[0].mxu0 %v3251
        %v3409 = vpop.f32.mrb[0].mxu0
        %v3410 = vadd.f32 0.0, %v3409
        %v3411 = vpop.f32.mrb[0].mxu0
        %3412 = vdwg.mxu0
        %3413 = vmatprep.subr.mxu0 %v1968
        %3414 = vmatpush1.msra.mxu0 %v1967
        %3415 = vmatprep.subr.mxu0 %v1971
        %3416 = vmatpush1.msra.mxu0 %v1970
        %3417 = vmatprep.subr.mxu0 %v1974
        %3418 = vmatpush1.msra.mxu0 %v1973
        %3419 = vmatprep.subr.mxu0 %v1977
        %3420 = vmatpush1.msra.mxu0 %v1976
        %3421 = vmatprep.subr.mxu0 %v1980
        %3422 = vmatpush1.msra.mxu0 %v1979
        %3423 = vmatprep.subr.mxu0 %v1983
        %3424 = vmatpush1.msra.mxu0 %v1982
        %3425 = vmatprep.subr.mxu0 %v1986
        %3426 = vmatpush1.msra.mxu0 %v1985
        %3427 = vmatprep.subr.mxu0 %v1989
        %3428 = vmatpush1.msra.mxu0 %v1988
        %3429 = vmatprep.subr.mxu0 %v1992
        %3430 = vmatpush1.msra.mxu0 %v1991
        %3431 = vmatprep.subr.mxu0 %v1995
        %3432 = vmatpush1.msra.mxu0 %v1994
        %3433 = vmatprep.subr.mxu0 %v1998
        %3434 = vmatpush1.msra.mxu0 %v1997
        %3435 = vmatprep.subr.mxu0 %v2001
        %3436 = vmatpush1.msra.mxu0 %v2000
        %3437 = vmatprep.subr.mxu0 %v2004
        %3438 = vmatpush1.msra.mxu0 %v2003
        %3439 = vmatprep.subr.mxu0 %v2007
        %3440 = vmatpush1.msra.mxu0 %v2006
        %3441 = vmatprep.subr.mxu0 %v2010
        %3442 = vmatpush1.msra.mxu0 %v2009
        %3443 = vmatprep.subr.mxu0 %v2013
        %3444 = vmatpush1.msra.mxu0 %v2012
        %3445 = vmatprep.subr.mxu0 %v2016
        %3446 = vmatpush1.msra.mxu0 %v2015
        %3447 = vmatprep.subr.mxu0 %v2019
        %3448 = vmatpush1.msra.mxu0 %v2018
        %3449 = vmatprep.subr.mxu0 %v2022
        %3450 = vmatpush1.msra.mxu0 %v2021
        %3451 = vmatprep.subr.mxu0 %v2025
        %3452 = vmatpush1.msra.mxu0 %v2024
        %3453 = vmatprep.subr.mxu0 0.0
        %3454 = vmatpush1.msra.mxu0 0.0
        %3455 = vmatprep.subr.mxu0 0.0
        %3456 = vmatpush1.msra.mxu0 0.0
        %3457 = vmatprep.subr.mxu0 0.0
        %3458 = vmatpush1.msra.mxu0 0.0
        %3459 = vmatprep.subr.mxu0 0.0
        %3460 = vmatpush1.msra.mxu0 0.0
        %3461 = vmatprep.subr.mxu0 0.0
        %3462 = vmatpush1.msra.mxu0 0.0
        %3463 = vmatprep.subr.mxu0 0.0
        %3464 = vmatpush1.msra.mxu0 0.0
        %3465 = vmatprep.subr.mxu0 0.0
        %3466 = vmatpush1.msra.mxu0 0.0
        %3467 = vmatprep.subr.mxu0 0.0
        %3468 = vmatpush1.msra.mxu0 0.0
        %3469 = vmatprep.subr.mxu0 0.0
        %3470 = vmatpush1.msra.mxu0 0.0
        %3471 = vmatprep.subr.mxu0 0.0
        %3472 = vmatpush1.msra.mxu0 0.0
        %3473 = vmatprep.subr.mxu0 0.0
        %3474 = vmatpush1.msra.mxu0 0.0
        %3475 = vmatprep.subr.mxu0 0.0
        %3476 = vmatpush1.msra.mxu0 0.0
        %3477 = vmatprep.mubr.f32.mxu0 %v3256
        %3478 = vmatmul.mubr.f32.gmra.mrb[0].mxu0 %v3245
        %v3479 = vpop.f32.mrb[0].mxu0
        %v3480 = vadd.f32 0.0, %v3479
        %v3481 = vpop.f32.mrb[0].mxu0
        %v3482 = vadd.f32 0.0, %v3481
        %3483 = vmatprep.mubr.f32.mxu0 %v3259
        %3484 = vmatmul.mubr.f32.gmra.mrb[0].mxu0 %v3251
        %v3485 = vpop.f32.mrb[0].mxu0
        %v3486 = vadd.f32 0.0, %v3485
        %v3487 = vpop.f32.mrb[0].mxu0
        %v3488 = vadd.f32 0.0, %v3487
        %3489 = vdwg.mxu0
        %3490 = vmatprep.subr.mxu0 0.0
        %3491 = vmatpush1.msra.mxu0 %v1969
        %3492 = vmatprep.subr.mxu0 0.0
        %3493 = vmatpush1.msra.mxu0 %v1972
        %3494 = vmatprep.subr.mxu0 0.0
        %3495 = vmatpush1.msra.mxu0 %v1975
        %3496 = vmatprep.subr.mxu0 0.0
        %3497 = vmatpush1.msra.mxu0 %v1978
        %3498 = vmatprep.subr.mxu0 0.0
        %3499 = vmatpush1.msra.mxu0 %v1981
        %3500 = vmatprep.subr.mxu0 0.0
        %3501 = vmatpush1.msra.mxu0 %v1984
        %3502 = vmatprep.subr.mxu0 0.0
        %3503 = vmatpush1.msra.mxu0 %v1987
        %3504 = vmatprep.subr.mxu0 0.0
        %3505 = vmatpush1.msra.mxu0 %v1990
        %3506 = vmatprep.subr.mxu0 0.0
        %3507 = vmatpush1.msra.mxu0 %v1993
        %3508 = vmatprep.subr.mxu0 0.0
        %3509 = vmatpush1.msra.mxu0 %v1996
        %3510 = vmatprep.subr.mxu0 0.0
        %3511 = vmatpush1.msra.mxu0 %v1999
        %3512 = vmatprep.subr.mxu0 0.0
        %3513 = vmatpush1.msra.mxu0 %v2002
        %3514 = vmatprep.subr.mxu0 0.0
        %3515 = vmatpush1.msra.mxu0 %v2005
        %3516 = vmatprep.subr.mxu0 0.0
        %3517 = vmatpush1.msra.mxu0 %v2008
        %3518 = vmatprep.subr.mxu0 0.0
        %3519 = vmatpush1.msra.mxu0 %v2011
        %3520 = vmatprep.subr.mxu0 0.0
        %3521 = vmatpush1.msra.mxu0 %v2014
        %3522 = vmatprep.subr.mxu0 0.0
        %3523 = vmatpush1.msra.mxu0 %v2017
        %3524 = vmatprep.subr.mxu0 0.0
        %3525 = vmatpush1.msra.mxu0 %v2020
        %3526 = vmatprep.subr.mxu0 0.0
        %3527 = vmatpush1.msra.mxu0 %v2023
        %3528 = vmatprep.subr.mxu0 0.0
        %3529 = vmatpush1.msra.mxu0 %v2026
        %3530 = vmatprep.subr.mxu0 0.0
        %3531 = vmatpush1.msra.mxu0 0.0
        %3532 = vmatprep.subr.mxu0 0.0
        %3533 = vmatpush1.msra.mxu0 0.0
        %3534 = vmatprep.subr.mxu0 0.0
        %3535 = vmatpush1.msra.mxu0 0.0
        %3536 = vmatprep.subr.mxu0 0.0
        %3537 = vmatpush1.msra.mxu0 0.0
        %3538 = vmatprep.subr.mxu0 0.0
        %3539 = vmatpush1.msra.mxu0 0.0
        %3540 = vmatprep.subr.mxu0 0.0
        %3541 = vmatpush1.msra.mxu0 0.0
        %3542 = vmatprep.subr.mxu0 0.0
        %3543 = vmatpush1.msra.mxu0 0.0
        %3544 = vmatprep.subr.mxu0 0.0
        %3545 = vmatpush1.msra.mxu0 0.0
        %3546 = vmatprep.subr.mxu0 0.0
        %3547 = vmatpush1.msra.mxu0 0.0
        %3548 = vmatprep.subr.mxu0 0.0
        %3549 = vmatpush1.msra.mxu0 0.0
        %3550 = vmatprep.subr.mxu0 0.0
        %3551 = vmatpush1.msra.mxu0 0.0
        %3552 = vmatprep.subr.mxu0 0.0
        %3553 = vmatpush1.msra.mxu0 0.0
        %3554 = vmatprep.mubr.f32.mxu0 %v3256
        %3555 = vmatmul.mubr.f32.gmra.mrb[0].mxu0 %v3245
        %v3556 = vpop.f32.mrb[0].mxu0
        %v3557 = vadd.f32 0.0, %v3556
        %v3558 = vpop.f32.mrb[0].mxu0
        %3559 = vmatprep.mubr.f32.mxu0 %v3259
        %3560 = vmatmul.mubr.f32.gmra.mrb[0].mxu0 %v3251
        %v3561 = vpop.f32.mrb[0].mxu0
        %v3562 = vadd.f32 0.0, %v3561
        %v3563 = vpop.f32.mrb[0].mxu0
        %3564 = vdwg.mxu0
        %v3566 = vsel %vm1665, %v2978, 0
        %v3569 = vsel %vm1665, %v2984, 0
        %3571 = vmatprep.subr.mxu0 %v2180
        %3572 = vmatpush1.msra.mxu0 %v2179
        %3573 = vmatprep.subr.mxu0 %v2183
        %3574 = vmatpush1.msra.mxu0 %v2182
        %3575 = vmatprep.subr.mxu0 %v2186
        %3576 = vmatpush1.msra.mxu0 %v2185
        %3577 = vmatprep.subr.mxu0 %v2189
        %3578 = vmatpush1.msra.mxu0 %v2188
        %3579 = vmatprep.subr.mxu0 0.0
        %3580 = vmatpush1.msra.mxu0 0.0
        %3581 = vmatprep.subr.mxu0 0.0
        %3582 = vmatpush1.msra.mxu0 0.0
        %3583 = vmatprep.subr.mxu0 0.0
        %3584 = vmatpush1.msra.mxu0 0.0
        %3585 = vmatprep.subr.mxu0 0.0
        %3586 = vmatpush1.msra.mxu0 0.0
        %3587 = vmatprep.subr.mxu0 0.0
        %3588 = vmatpush1.msra.mxu0 0.0
        %3589 = vmatprep.subr.mxu0 0.0
        %3590 = vmatpush1.msra.mxu0 0.0
        %3591 = vmatprep.subr.mxu0 0.0
        %3592 = vmatpush1.msra.mxu0 0.0
        %3593 = vmatprep.subr.mxu0 0.0
        %3594 = vmatpush1.msra.mxu0 0.0
        %3595 = vmatprep.subr.mxu0 0.0
        %3596 = vmatpush1.msra.mxu0 0.0
        %3597 = vmatprep.subr.mxu0 0.0
        %3598 = vmatpush1.msra.mxu0 0.0
        %3599 = vmatprep.subr.mxu0 0.0
        %3600 = vmatpush1.msra.mxu0 0.0
        %3601 = vmatprep.subr.mxu0 0.0
        %3602 = vmatpush1.msra.mxu0 0.0
        %3603 = vmatprep.subr.mxu0 0.0
        %3604 = vmatpush1.msra.mxu0 0.0
        %3605 = vmatprep.subr.mxu0 0.0
        %3606 = vmatpush1.msra.mxu0 0.0
        %3607 = vmatprep.subr.mxu0 0.0
        %3608 = vmatpush1.msra.mxu0 0.0
        %3609 = vmatprep.subr.mxu0 0.0
        %3610 = vmatpush1.msra.mxu0 0.0
        %3611 = vmatprep.subr.mxu0 0.0
        %3612 = vmatpush1.msra.mxu0 0.0
        %3613 = vmatprep.subr.mxu0 0.0
        %3614 = vmatpush1.msra.mxu0 0.0
        %3615 = vmatprep.subr.mxu0 0.0
        %3616 = vmatpush1.msra.mxu0 0.0
        %3617 = vmatprep.subr.mxu0 0.0
        %3618 = vmatpush1.msra.mxu0 0.0
        %3619 = vmatprep.subr.mxu0 0.0
        %3620 = vmatpush1.msra.mxu0 0.0
        %3621 = vmatprep.subr.mxu0 0.0
        %3622 = vmatpush1.msra.mxu0 0.0
        %3623 = vmatprep.subr.mxu0 0.0
        %3624 = vmatpush1.msra.mxu0 0.0
        %3625 = vmatprep.subr.mxu0 0.0
        %3626 = vmatpush1.msra.mxu0 0.0
        %3627 = vmatprep.subr.mxu0 0.0
        %3628 = vmatpush1.msra.mxu0 0.0
        %3629 = vmatprep.subr.mxu0 0.0
        %3630 = vmatpush1.msra.mxu0 0.0
        %3631 = vmatprep.subr.mxu0 0.0
        %3632 = vmatpush1.msra.mxu0 0.0
        %3633 = vmatprep.subr.mxu0 0.0
        %3634 = vmatpush1.msra.mxu0 0.0
        %3635 = vmatprep.mubr.f32.mxu0 0.0
        %3636 = vmatmul.mubr.f32.gmra.mrb[0].mxu0 %v3566
        %v3637 = vpop.f32.mrb[0].mxu0
        %v3638 = vadd.f32 0.0, %v3637
        %v3639 = vpop.f32.mrb[0].mxu0
        %v3640 = vadd.f32 0.0, %v3639
        %3641 = vmatprep.mubr.f32.mxu0 0.0
        %3642 = vmatmul.mubr.f32.gmra.mrb[0].mxu0 %v3569
        %v3643 = vpop.f32.mrb[0].mxu0
        %v3644 = vadd.f32 0.0, %v3643
        %v3645 = vpop.f32.mrb[0].mxu0
        %v3646 = vadd.f32 0.0, %v3645
        %3647 = vdwg.mxu0
        %3648 = vmatprep.subr.mxu0 0.0
        %3649 = vmatpush1.msra.mxu0 %v2181
        %3650 = vmatprep.subr.mxu0 0.0
        %3651 = vmatpush1.msra.mxu0 %v2184
        %3652 = vmatprep.subr.mxu0 0.0
        %3653 = vmatpush1.msra.mxu0 %v2187
        %3654 = vmatprep.subr.mxu0 0.0
        %3655 = vmatpush1.msra.mxu0 %v2190
        %3656 = vmatprep.subr.mxu0 0.0
        %3657 = vmatpush1.msra.mxu0 0.0
        %3658 = vmatprep.subr.mxu0 0.0
        %3659 = vmatpush1.msra.mxu0 0.0
        %3660 = vmatprep.subr.mxu0 0.0
        %3661 = vmatpush1.msra.mxu0 0.0
        %3662 = vmatprep.subr.mxu0 0.0
        %3663 = vmatpush1.msra.mxu0 0.0
        %3664 = vmatprep.subr.mxu0 0.0
        %3665 = vmatpush1.msra.mxu0 0.0
        %3666 = vmatprep.subr.mxu0 0.0
        %3667 = vmatpush1.msra.mxu0 0.0
        %3668 = vmatprep.subr.mxu0 0.0
        %3669 = vmatpush1.msra.mxu0 0.0
        %3670 = vmatprep.subr.mxu0 0.0
        %3671 = vmatpush1.msra.mxu0 0.0
        %3672 = vmatprep.subr.mxu0 0.0
        %3673 = vmatpush1.msra.mxu0 0.0
        %3674 = vmatprep.subr.mxu0 0.0
        %3675 = vmatpush1.msra.mxu0 0.0
        %3676 = vmatprep.subr.mxu0 0.0
        %3677 = vmatpush1.msra.mxu0 0.0
        %3678 = vmatprep.subr.mxu0 0.0
        %3679 = vmatpush1.msra.mxu0 0.0
        %3680 = vmatprep.subr.mxu0 0.0
        %3681 = vmatpush1.msra.mxu0 0.0
        %3682 = vmatprep.subr.mxu0 0.0
        %3683 = vmatpush1.msra.mxu0 0.0
        %3684 = vmatprep.subr.mxu0 0.0
        %3685 = vmatpush1.msra.mxu0 0.0
        %3686 = vmatprep.subr.mxu0 0.0
        %3687 = vmatpush1.msra.mxu0 0.0
        %3688 = vmatprep.subr.mxu0 0.0
        %3689 = vmatpush1.msra.mxu0 0.0
        %3690 = vmatprep.subr.mxu0 0.0
        %3691 = vmatpush1.msra.mxu0 0.0
        %3692 = vmatprep.subr.mxu0 0.0
        %3693 = vmatpush1.msra.mxu0 0.0
        %3694 = vmatprep.subr.mxu0 0.0
        %3695 = vmatpush1.msra.mxu0 0.0
        %3696 = vmatprep.subr.mxu0 0.0
        %3697 = vmatpush1.msra.mxu0 0.0
        %3698 = vmatprep.subr.mxu0 0.0
        %3699 = vmatpush1.msra.mxu0 0.0
        %3700 = vmatprep.subr.mxu0 0.0
        %3701 = vmatpush1.msra.mxu0 0.0
        %3702 = vmatprep.subr.mxu0 0.0
        %3703 = vmatpush1.msra.mxu0 0.0
        %3704 = vmatprep.subr.mxu0 0.0
        %3705 = vmatpush1.msra.mxu0 0.0
        %3706 = vmatprep.subr.mxu0 0.0
        %3707 = vmatpush1.msra.mxu0 0.0
        %3708 = vmatprep.subr.mxu0 0.0
        %3709 = vmatpush1.msra.mxu0 0.0
        %3710 = vmatprep.subr.mxu0 0.0
        %3711 = vmatpush1.msra.mxu0 0.0
        %3712 = vmatprep.mubr.f32.mxu0 0.0
        %3713 = vmatmul.mubr.f32.gmra.mrb[0].mxu0 %v3566
        %v3714 = vpop.f32.mrb[0].mxu0
        %v3715 = vadd.f32 0.0, %v3714
        %v3716 = vpop.f32.mrb[0].mxu0
        %3717 = vmatprep.mubr.f32.mxu0 0.0
        %3718 = vmatmul.mubr.f32.gmra.mrb[0].mxu0 %v3569
        %v3719 = vpop.f32.mrb[0].mxu0
        %v3720 = vadd.f32 0.0, %v3719
        %v3721 = vpop.f32.mrb[0].mxu0
        %3722 = vdwg.mxu0
        %v3723 = vmul.f32 %v3328, %v1113
        %v3724 = vmul.f32 %v3330, %v1114
        %v3725 = vmul.f32 %v3405, %v1115
        %v3726 = vmul.f32 %v3334, %v1116
        %v3727 = vmul.f32 %v3336, %v1117
        %v3728 = vmul.f32 %v3410, %v1118
        %v3729 = vmul.f32 %v3723, %v3638
        %v3730 = vmul.f32 %v3724, %v3640
        %v3731 = vmul.f32 %v3725, %v3715
        %v3732 = vmul.f32 %v3726, %v3644
        %v3733 = vmul.f32 %v3727, %v3646
        %v3734 = vmul.f32 %v3728, %v3720
        %v3735 = vmul.f32 %v3480, %v2978
        %v3736 = vmul.f32 %v3482, %v2980
        %v3737 = vmul.f32 %v3557, %v3055
        %v3738 = vmul.f32 %v3486, %v2984
        %v3739 = vmul.f32 %v3488, %v2986
        %v3740 = vmul.f32 %v3562, %v3060
        %v3741 = vadd.f32 %v3729, %v3735
        %v3742 = vadd.f32 %v3730, %v3736
        %v3743 = vadd.f32 %v3731, %v3737
        %v3744 = vadd.f32 %v3732, %v3738
        %v3745 = vadd.f32 %v3733, %v3739
        %v3746 = vadd.f32 %v3734, %v3740
        %3747 = vmatprep.subr.mxu0 %v3742
        %3748 = vmatpush1.msra.mxu0 %v3741
        %3749 = vmatprep.subr.mxu0 %v3745
        %3750 = vmatpush1.msra.mxu0 %v3744
        %3751 = vmatprep.subr.mxu0 0.0
        %3752 = vmatpush1.msra.mxu0 0.0
        %3753 = vmatprep.subr.mxu0 0.0
        %3754 = vmatpush1.msra.mxu0 0.0
        %3755 = vmatprep.subr.mxu0 0.0
        %3756 = vmatpush1.msra.mxu0 0.0
        %3757 = vmatprep.subr.mxu0 0.0
        %3758 = vmatpush1.msra.mxu0 0.0
        %3759 = vmatprep.subr.mxu0 0.0
        %3760 = vmatpush1.msra.mxu0 0.0
        %3761 = vmatprep.subr.mxu0 0.0
        %3762 = vmatpush1.msra.mxu0 0.0
        %3763 = vmatprep.subr.mxu0 0.0
        %3764 = vmatpush1.msra.mxu0 0.0
        %3765 = vmatprep.subr.mxu0 0.0
        %3766 = vmatpush1.msra.mxu0 0.0
        %3767 = vmatprep.subr.mxu0 0.0
        %3768 = vmatpush1.msra.mxu0 0.0
        %3769 = vmatprep.subr.mxu0 0.0
        %3770 = vmatpush1.msra.mxu0 0.0
        %3771 = vmatprep.subr.mxu0 0.0
        %3772 = vmatpush1.msra.mxu0 0.0
        %3773 = vmatprep.subr.mxu0 0.0
        %3774 = vmatpush1.msra.mxu0 0.0
        %3775 = vmatprep.subr.mxu0 0.0
        %3776 = vmatpush1.msra.mxu0 0.0
        %3777 = vmatprep.subr.mxu0 0.0
        %3778 = vmatpush1.msra.mxu0 0.0
        %3779 = vmatprep.subr.mxu0 0.0
        %3780 = vmatpush1.msra.mxu0 0.0
        %3781 = vmatprep.subr.mxu0 0.0
        %3782 = vmatpush1.msra.mxu0 0.0
        %3783 = vmatprep.subr.mxu0 0.0
        %3784 = vmatpush1.msra.mxu0 0.0
        %3785 = vmatprep.subr.mxu0 0.0
        %3786 = vmatpush1.msra.mxu0 0.0
        %3787 = vmatprep.subr.mxu0 0.0
        %3788 = vmatpush1.msra.mxu0 0.0
        %3789 = vmatprep.subr.mxu0 0.0
        %3790 = vmatpush1.msra.mxu0 0.0
        %3791 = vmatprep.subr.mxu0 0.0
        %3792 = vmatpush1.msra.mxu0 0.0
        %3793 = vmatprep.subr.mxu0 0.0
        %3794 = vmatpush1.msra.mxu0 0.0
        %3795 = vmatprep.subr.mxu0 0.0
        %3796 = vmatpush1.msra.mxu0 0.0
        %3797 = vmatprep.subr.mxu0 0.0
        %3798 = vmatpush1.msra.mxu0 0.0
        %3799 = vmatprep.subr.mxu0 0.0
        %3800 = vmatpush1.msra.mxu0 0.0
        %3801 = vmatprep.subr.mxu0 0.0
        %3802 = vmatpush1.msra.mxu0 0.0
        %3803 = vmatprep.subr.mxu0 0.0
        %3804 = vmatpush1.msra.mxu0 0.0
        %3805 = vmatprep.subr.mxu0 0.0
        %3806 = vmatpush1.msra.mxu0 0.0
        %3807 = vmatprep.subr.mxu0 0.0
        %3808 = vmatpush1.msra.mxu0 0.0
        %3809 = vmatprep.subr.mxu0 0.0
        %3810 = vmatpush1.msra.mxu0 0.0
        %3811 = vmatprep.mubr.f32.mxu0 0.0
        %3812 = vmatmul.mubr.f32.gmra.mrb[0].mxu0 %v2375
        %v3813 = vpop.f32.mrb[0].mxu0
        %v3814 = vadd.f32 0.0, %v3813
        %v3815 = vpop.f32.mrb[0].mxu0
        %v3816 = vadd.f32 0.0, %v3815
        %3817 = vdwg.mxu0
        %3818 = vmatprep.subr.mxu0 0.0
        %3819 = vmatpush1.msra.mxu0 %v3743
        %3820 = vmatprep.subr.mxu0 0.0
        %3821 = vmatpush1.msra.mxu0 %v3746
        %3822 = vmatprep.subr.mxu0 0.0
        %3823 = vmatpush1.msra.mxu0 0.0
        %3824 = vmatprep.subr.mxu0 0.0
        %3825 = vmatpush1.msra.mxu0 0.0
        %3826 = vmatprep.subr.mxu0 0.0
        %3827 = vmatpush1.msra.mxu0 0.0
        %3828 = vmatprep.subr.mxu0 0.0
        %3829 = vmatpush1.msra.mxu0 0.0
        %3830 = vmatprep.subr.mxu0 0.0
        %3831 = vmatpush1.msra.mxu0 0.0
        %3832 = vmatprep.subr.mxu0 0.0
        %3833 = vmatpush1.msra.mxu0 0.0
        %3834 = vmatprep.subr.mxu0 0.0
        %3835 = vmatpush1.msra.mxu0 0.0
        %3836 = vmatprep.subr.mxu0 0.0
        %3837 = vmatpush1.msra.mxu0 0.0
        %3838 = vmatprep.subr.mxu0 0.0
        %3839 = vmatpush1.msra.mxu0 0.0
        %3840 = vmatprep.subr.mxu0 0.0
        %3841 = vmatpush1.msra.mxu0 0.0
        %3842 = vmatprep.subr.mxu0 0.0
        %3843 = vmatpush1.msra.mxu0 0.0
        %3844 = vmatprep.subr.mxu0 0.0
        %3845 = vmatpush1.msra.mxu0 0.0
        %3846 = vmatprep.subr.mxu0 0.0
        %3847 = vmatpush1.msra.mxu0 0.0
        %3848 = vmatprep.subr.mxu0 0.0
        %3849 = vmatpush1.msra.mxu0 0.0
        %3850 = vmatprep.subr.mxu0 0.0
        %3851 = vmatpush1.msra.mxu0 0.0
        %3852 = vmatprep.subr.mxu0 0.0
        %3853 = vmatpush1.msra.mxu0 0.0
        %3854 = vmatprep.subr.mxu0 0.0
        %3855 = vmatpush1.msra.mxu0 0.0
        %3856 = vmatprep.subr.mxu0 0.0
        %3857 = vmatpush1.msra.mxu0 0.0
        %3858 = vmatprep.subr.mxu0 0.0
        %3859 = vmatpush1.msra.mxu0 0.0
        %3860 = vmatprep.subr.mxu0 0.0
        %3861 = vmatpush1.msra.mxu0 0.0
        %3862 = vmatprep.subr.mxu0 0.0
        %3863 = vmatpush1.msra.mxu0 0.0
        %3864 = vmatprep.subr.mxu0 0.0
        %3865 = vmatpush1.msra.mxu0 0.0
        %3866 = vmatprep.subr.mxu0 0.0
        %3867 = vmatpush1.msra.mxu0 0.0
        %3868 = vmatprep.subr.mxu0 0.0
        %3869 = vmatpush1.msra.mxu0 0.0
        %3870 = vmatprep.subr.mxu0 0.0
        %3871 = vmatpush1.msra.mxu0 0.0
        %3872 = vmatprep.subr.mxu0 0.0
        %3873 = vmatpush1.msra.mxu0 0.0
        %3874 = vmatprep.subr.mxu0 0.0
        %3875 = vmatpush1.msra.mxu0 0.0
        %3876 = vmatprep.subr.mxu0 0.0
        %3877 = vmatpush1.msra.mxu0 0.0
        %3878 = vmatprep.subr.mxu0 0.0
        %3879 = vmatpush1.msra.mxu0 0.0
        %3880 = vmatprep.subr.mxu0 0.0
        %3881 = vmatpush1.msra.mxu0 0.0
        %3882 = vmatprep.mubr.f32.mxu0 0.0
        %3883 = vmatmul.mubr.f32.gmra.mrb[0].mxu0 %v2375
        %v3884 = vpop.f32.mrb[0].mxu0
        %v3885 = vadd.f32 0.0, %v3884
        %v3886 = vpop.f32.mrb[0].mxu0
        %3887 = vdwg.mxu0
        %s3888 = scalar_lea.vmem [#allocation16], 864
        %v3889 = vld [vmem:[%s3888] sm:$0xff]
        %v3890 = vld [vmem:[%s3888 + $0x8] sm:$0xff]
        %v3891 = vld [vmem:[%s3888 + $0x10] sm:$0xff]
        %v3892 = vld [vmem:[%s3888 + $0x18] sm:$0xff]
        %v3893 = vld [vmem:[%s3888 + $0x20] sm:$0xff]
        %v3894 = vld [vmem:[%s3888 + $0x28] sm:$0xff]
        %v3895 = vld [vmem:[%s3888 + $0x30] sm:$0xff]
        %v3896 = vld [vmem:[%s3888 + $0x38] sm:$0xff]
        %v3897 = vld [vmem:[%s3888 + $0x40] sm:$0xff]
        %v3898 = vld [vmem:[%s3888 + $0x48] sm:$0xff]
        %v3899 = vld [vmem:[%s3888 + $0x50] sm:$0xff]
        %v3900 = vld [vmem:[%s3888 + $0x58] sm:$0xff]
        %v3901 = vld [vmem:[%s3888 + $0x60] sm:$0xff]
        %v3902 = vld [vmem:[%s3888 + $0x68] sm:$0xff]
        %v3903 = vld [vmem:[%s3888 + $0x70] sm:$0xff]
        %v3904 = vld [vmem:[%s3888 + $0x78] sm:$0xff]
        %v3905 = vld [vmem:[%s3888 + $0x80] sm:$0xff]
        %v3906 = vld [vmem:[%s3888 + $0x88] sm:$0xff]
        %v3907 = vld [vmem:[%s3888 + $0x90] sm:$0xff]
        %v3908 = vld [vmem:[%s3888 + $0x98] sm:$0xff]
        %v3909 = vld [vmem:[%s3888 + $0xa0] sm:$0xff]
        %v3910 = vld [vmem:[%s3888 + $0xa8] sm:$0xff]
        %v3911 = vld [vmem:[%s3888 + $0xb0] sm:$0xff]
        %v3912 = vld [vmem:[%s3888 + $0xb8] sm:$0xff]
        %v3913 = vld [vmem:[%s3888 + $0xc0] sm:$0xff]
        %v3914 = vld [vmem:[%s3888 + $0xc8] sm:$0xff]
        %v3915 = vld [vmem:[%s3888 + $0xd0] sm:$0xff]
        %v3916 = vld [vmem:[%s3888 + $0xd8] sm:$0xff]
        %v3917 = vld [vmem:[%s3888 + $0xe0] sm:$0xff]
        %v3918 = vld [vmem:[%s3888 + $0xe8] sm:$0xff]
        %v3919 = vld [vmem:[%s3888 + $0xf0] sm:$0xff]
        %v3920 = vld [vmem:[%s3888 + $0xf8] sm:$0xff]
        %v3921 = vld [vmem:[%s3888 + $0x100] sm:$0xff]
        %v3922 = vld [vmem:[%s3888 + $0x108] sm:$0xff]
        %v3923 = vld [vmem:[%s3888 + $0x110] sm:$0xff]
        %v3924 = vld [vmem:[%s3888 + $0x118] sm:$0xff]
        %v3925 = vld [vmem:[%s3888 + $0x120] sm:$0xff]
        %v3926 = vld [vmem:[%s3888 + $0x128] sm:$0xff]
        %v3927 = vld [vmem:[%s3888 + $0x130] sm:$0xff]
        %v3928 = vld [vmem:[%s3888 + $0x138] sm:$0xff]
        %v3929 = vld [vmem:[%s3888 + $0x140] sm:$0xff]
        %v3930 = vld [vmem:[%s3888 + $0x148] sm:$0xff]
        %v3931 = vld [vmem:[%s3888 + $0x150] sm:$0xff]
        %v3932 = vld [vmem:[%s3888 + $0x158] sm:$0xff]
        %v3933 = vld [vmem:[%s3888 + $0x160] sm:$0xff]
        %v3934 = vld [vmem:[%s3888 + $0x168] sm:$0xff]
        %v3935 = vld [vmem:[%s3888 + $0x170] sm:$0xff]
        %v3936 = vld [vmem:[%s3888 + $0x178] sm:$0xff]
        %v3937 = vld [vmem:[%s3888 + $0x180] sm:$0xff]
        %v3938 = vld [vmem:[%s3888 + $0x188] sm:$0xff]
        %v3939 = vld [vmem:[%s3888 + $0x190] sm:$0xff]
        %v3940 = vld [vmem:[%s3888 + $0x198] sm:$0xff]
        %v3941 = vld [vmem:[%s3888 + $0x1a0] sm:$0xff]
        %v3942 = vld [vmem:[%s3888 + $0x1a8] sm:$0xff]
        %v3943 = vld [vmem:[%s3888 + $0x1b0] sm:$0xff]
        %v3944 = vld [vmem:[%s3888 + $0x1b8] sm:$0xff]
        %v3945 = vld [vmem:[%s3888 + $0x1c0] sm:$0xff]
        %v3946 = vld [vmem:[%s3888 + $0x1c8] sm:$0xff]
        %v3947 = vld [vmem:[%s3888 + $0x1d0] sm:$0xff]
        %v3948 = vld [vmem:[%s3888 + $0x1d8] sm:$0xff]
        %v3949 = vld [vmem:[%s3888 + $0x1e0] sm:$0xff]
        %v3950 = vld [vmem:[%s3888 + $0x1e8] sm:$0xff]
        %v3951 = vld [vmem:[%s3888 + $0x1f0] sm:$0xff]
        %v3952 = vld [vmem:[%s3888 + $0x1f8] sm:$0xff]
        %v3953 = vld [vmem:[%s3888 + $0x200] sm:$0xff]
        %v3954 = vld [vmem:[%s3888 + $0x208] sm:$0xff]
        %v3955 = vld [vmem:[%s3888 + $0x210] sm:$0xff]
        %v3956 = vld [vmem:[%s3888 + $0x218] sm:$0xff]
        %v3957 = vld [vmem:[%s3888 + $0x220] sm:$0xff]
        %v3958 = vld [vmem:[%s3888 + $0x228] sm:$0xff]
        %v3959 = vld [vmem:[%s3888 + $0x230] sm:$0xff]
        %v3960 = vld [vmem:[%s3888 + $0x238] sm:$0xff]
        %v3961 = vld [vmem:[%s3888 + $0x240] sm:$0xff]
        %v3962 = vld [vmem:[%s3888 + $0x248] sm:$0xff]
        %v3963 = vld [vmem:[%s3888 + $0x250] sm:$0xff]
        %v3964 = vld [vmem:[%s3888 + $0x258] sm:$0xff]
        %v3965 = vld [vmem:[%s3888 + $0x260] sm:$0xff]
        %v3966 = vld [vmem:[%s3888 + $0x268] sm:$0xff]
        %v3967 = vld [vmem:[%s3888 + $0x270] sm:$0xff]
        %v3968 = vld [vmem:[%s3888 + $0x278] sm:$0xff]
        %v3969 = vld [vmem:[%s3888 + $0x280] sm:$0xff]
        %v3970 = vld [vmem:[%s3888 + $0x288] sm:$0xff]
        %v3971 = vld [vmem:[%s3888 + $0x290] sm:$0xff]
        %v3972 = vld [vmem:[%s3888 + $0x298] sm:$0xff]
        %v3973 = vld [vmem:[%s3888 + $0x2a0] sm:$0xff]
        %v3974 = vld [vmem:[%s3888 + $0x2a8] sm:$0xff]
        %v3975 = vld [vmem:[%s3888 + $0x2b0] sm:$0xff]
        %v3976 = vld [vmem:[%s3888 + $0x2b8] sm:$0xff]
        %v3977 = vld [vmem:[%s3888 + $0x2c0] sm:$0xff]
        %v3978 = vld [vmem:[%s3888 + $0x2c8] sm:$0xff]
        %v3979 = vld [vmem:[%s3888 + $0x2d0] sm:$0xff]
        %v3980 = vld [vmem:[%s3888 + $0x2d8] sm:$0xff]
        %v3981 = vld [vmem:[%s3888 + $0x2e0] sm:$0xff]
        %v3982 = vld [vmem:[%s3888 + $0x2e8] sm:$0xff]
        %v3983 = vld [vmem:[%s3888 + $0x2f0] sm:$0xff]
        %v3984 = vld [vmem:[%s3888 + $0x2f8] sm:$0xff]
        %v3985 = vld [vmem:[%s3888 + $0x300] sm:$0xff]
        %v3986 = vld [vmem:[%s3888 + $0x308] sm:$0xff]
        %v3987 = vld [vmem:[%s3888 + $0x310] sm:$0xff]
        %v3988 = vld [vmem:[%s3888 + $0x318] sm:$0xff]
        %v3989 = vld [vmem:[%s3888 + $0x320] sm:$0xff]
        %v3990 = vld [vmem:[%s3888 + $0x328] sm:$0xff]
        %v3991 = vld [vmem:[%s3888 + $0x330] sm:$0xff]
        %v3992 = vld [vmem:[%s3888 + $0x338] sm:$0xff]
        %v3993 = vld [vmem:[%s3888 + $0x340] sm:$0xff]
        %v3994 = vld [vmem:[%s3888 + $0x348] sm:$0xff]
        %v3995 = vld [vmem:[%s3888 + $0x350] sm:$0xff]
        %v3996 = vld [vmem:[%s3888 + $0x358] sm:$0xff]
        %v3998 = vsel %vm1665, %v3885, 0
        %4000 = vmatprep.subr.mxu0 %v3890
        %4001 = vmatpush1.msra.mxu0 %v3889
        %4002 = vmatprep.subr.mxu0 %v3893
        %4003 = vmatpush1.msra.mxu0 %v3892
        %4004 = vmatprep.subr.mxu0 %v3896
        %4005 = vmatpush1.msra.mxu0 %v3895
        %4006 = vmatprep.subr.mxu0 %v3899
        %4007 = vmatpush1.msra.mxu0 %v3898
        %4008 = vmatprep.subr.mxu0 %v3902
        %4009 = vmatpush1.msra.mxu0 %v3901
        %4010 = vmatprep.subr.mxu0 %v3905
        %4011 = vmatpush1.msra.mxu0 %v3904
        %4012 = vmatprep.subr.mxu0 %v3908
        %4013 = vmatpush1.msra.mxu0 %v3907
        %4014 = vmatprep.subr.mxu0 %v3911
        %4015 = vmatpush1.msra.mxu0 %v3910
        %4016 = vmatprep.subr.mxu0 %v3914
        %4017 = vmatpush1.msra.mxu0 %v3913
        %4018 = vmatprep.subr.mxu0 %v3917
        %4019 = vmatpush1.msra.mxu0 %v3916
        %4020 = vmatprep.subr.mxu0 %v3920
        %4021 = vmatpush1.msra.mxu0 %v3919
        %4022 = vmatprep.subr.mxu0 %v3923
        %4023 = vmatpush1.msra.mxu0 %v3922
        %4024 = vmatprep.subr.mxu0 %v3926
        %4025 = vmatpush1.msra.mxu0 %v3925
        %4026 = vmatprep.subr.mxu0 %v3929
        %4027 = vmatpush1.msra.mxu0 %v3928
        %4028 = vmatprep.subr.mxu0 %v3932
        %4029 = vmatpush1.msra.mxu0 %v3931
        %4030 = vmatprep.subr.mxu0 %v3935
        %4031 = vmatpush1.msra.mxu0 %v3934
        %4032 = vmatprep.subr.mxu0 %v3938
        %4033 = vmatpush1.msra.mxu0 %v3937
        %4034 = vmatprep.subr.mxu0 %v3941
        %4035 = vmatpush1.msra.mxu0 %v3940
        %4036 = vmatprep.subr.mxu0 %v3944
        %4037 = vmatpush1.msra.mxu0 %v3943
        %4038 = vmatprep.subr.mxu0 %v3947
        %4039 = vmatpush1.msra.mxu0 %v3946
        %4040 = vmatprep.subr.mxu0 %v3950
        %4041 = vmatpush1.msra.mxu0 %v3949
        %4042 = vmatprep.subr.mxu0 %v3953
        %4043 = vmatpush1.msra.mxu0 %v3952
        %4044 = vmatprep.subr.mxu0 %v3956
        %4045 = vmatpush1.msra.mxu0 %v3955
        %4046 = vmatprep.subr.mxu0 %v3959
        %4047 = vmatpush1.msra.mxu0 %v3958
        %4048 = vmatprep.subr.mxu0 %v3962
        %4049 = vmatpush1.msra.mxu0 %v3961
        %4050 = vmatprep.subr.mxu0 %v3965
        %4051 = vmatpush1.msra.mxu0 %v3964
        %4052 = vmatprep.subr.mxu0 %v3968
        %4053 = vmatpush1.msra.mxu0 %v3967
        %4054 = vmatprep.subr.mxu0 %v3971
        %4055 = vmatpush1.msra.mxu0 %v3970
        %4056 = vmatprep.subr.mxu0 %v3974
        %4057 = vmatpush1.msra.mxu0 %v3973
        %4058 = vmatprep.subr.mxu0 %v3977
        %4059 = vmatpush1.msra.mxu0 %v3976
        %4060 = vmatprep.subr.mxu0 %v3980
        %4061 = vmatpush1.msra.mxu0 %v3979
        %4062 = vmatprep.subr.mxu0 %v3983
        %4063 = vmatpush1.msra.mxu0 %v3982
        %4064 = vmatprep.mubr.f32.mxu0 %v3816
        %4065 = vmatmul.mubr.f32.gmra.mrb[0].mxu0 %v3814
        %v4066 = vpop.f32.mrb[0].mxu0
        %v4067 = vadd.f32 %v2767, %v4066
        %v4068 = vpop.f32.mrb[0].mxu0
        %v4069 = vadd.f32 %v2769, %v4068
        %4070 = vdwg.mxu0
        %4071 = vmatprep.subr.mxu0 %v3986
        %4072 = vmatpush1.msra.mxu0 %v3985
        %4073 = vmatprep.subr.mxu0 %v3989
        %4074 = vmatpush1.msra.mxu0 %v3988
        %4075 = vmatprep.subr.mxu0 %v3992
        %4076 = vmatpush1.msra.mxu0 %v3991
        %4077 = vmatprep.subr.mxu0 %v3995
        %4078 = vmatpush1.msra.mxu0 %v3994
        %4079 = vmatprep.subr.mxu0 0.0
        %4080 = vmatpush1.msra.mxu0 0.0
        %4081 = vmatprep.subr.mxu0 0.0
        %4082 = vmatpush1.msra.mxu0 0.0
        %4083 = vmatprep.subr.mxu0 0.0
        %4084 = vmatpush1.msra.mxu0 0.0
        %4085 = vmatprep.subr.mxu0 0.0
        %4086 = vmatpush1.msra.mxu0 0.0
        %4087 = vmatprep.subr.mxu0 0.0
        %4088 = vmatpush1.msra.mxu0 0.0
        %4089 = vmatprep.subr.mxu0 0.0
        %4090 = vmatpush1.msra.mxu0 0.0
        %4091 = vmatprep.subr.mxu0 0.0
        %4092 = vmatpush1.msra.mxu0 0.0
        %4093 = vmatprep.subr.mxu0 0.0
        %4094 = vmatpush1.msra.mxu0 0.0
        %4095 = vmatprep.subr.mxu0 0.0
        %4096 = vmatpush1.msra.mxu0 0.0
        %4097 = vmatprep.subr.mxu0 0.0
        %4098 = vmatpush1.msra.mxu0 0.0
        %4099 = vmatprep.subr.mxu0 0.0
        %4100 = vmatpush1.msra.mxu0 0.0
        %4101 = vmatprep.subr.mxu0 0.0
        %4102 = vmatpush1.msra.mxu0 0.0
        %4103 = vmatprep.subr.mxu0 0.0
        %4104 = vmatpush1.msra.mxu0 0.0
        %4105 = vmatprep.subr.mxu0 0.0
        %4106 = vmatpush1.msra.mxu0 0.0
        %4107 = vmatprep.subr.mxu0 0.0
        %4108 = vmatpush1.msra.mxu0 0.0
        %4109 = vmatprep.subr.mxu0 0.0
        %4110 = vmatpush1.msra.mxu0 0.0
        %4111 = vmatprep.subr.mxu0 0.0
        %4112 = vmatpush1.msra.mxu0 0.0
        %4113 = vmatprep.subr.mxu0 0.0
        %4114 = vmatpush1.msra.mxu0 0.0
        %4115 = vmatprep.subr.mxu0 0.0
        %4116 = vmatpush1.msra.mxu0 0.0
        %4117 = vmatprep.subr.mxu0 0.0
        %4118 = vmatpush1.msra.mxu0 0.0
        %4119 = vmatprep.subr.mxu0 0.0
        %4120 = vmatpush1.msra.mxu0 0.0
        %4121 = vmatprep.subr.mxu0 0.0
        %4122 = vmatpush1.msra.mxu0 0.0
        %4123 = vmatprep.subr.mxu0 0.0
        %4124 = vmatpush1.msra.mxu0 0.0
        %4125 = vmatprep.subr.mxu0 0.0
        %4126 = vmatpush1.msra.mxu0 0.0
        %4127 = vmatprep.subr.mxu0 0.0
        %4128 = vmatpush1.msra.mxu0 0.0
        %4129 = vmatprep.subr.mxu0 0.0
        %4130 = vmatpush1.msra.mxu0 0.0
        %4131 = vmatprep.subr.mxu0 0.0
        %4132 = vmatpush1.msra.mxu0 0.0
        %4133 = vmatprep.subr.mxu0 0.0
        %4134 = vmatpush1.msra.mxu0 0.0
        %4135 = vmatprep.mubr.f32.mxu0 0.0
        %4136 = vmatmul.mubr.f32.gmra.mrb[0].mxu0 %v3998
        %v4137 = vpop.f32.mrb[0].mxu0
        %v4138 = vadd.f32 %v4067, %v4137
        %v4139 = vpop.f32.mrb[0].mxu0
        %v4140 = vadd.f32 %v4069, %v4139
        %4141 = vdwg.mxu0
        %4142 = vmatprep.subr.mxu0 0.0
        %4143 = vmatpush1.msra.mxu0 %v3891
        %4144 = vmatprep.subr.mxu0 0.0
        %4145 = vmatpush1.msra.mxu0 %v3894
        %4146 = vmatprep.subr.mxu0 0.0
        %4147 = vmatpush1.msra.mxu0 %v3897
        %4148 = vmatprep.subr.mxu0 0.0
        %4149 = vmatpush1.msra.mxu0 %v3900
        %4150 = vmatprep.subr.mxu0 0.0
        %4151 = vmatpush1.msra.mxu0 %v3903
        %4152 = vmatprep.subr.mxu0 0.0
        %4153 = vmatpush1.msra.mxu0 %v3906
        %4154 = vmatprep.subr.mxu0 0.0
        %4155 = vmatpush1.msra.mxu0 %v3909
        %4156 = vmatprep.subr.mxu0 0.0
        %4157 = vmatpush1.msra.mxu0 %v3912
        %4158 = vmatprep.subr.mxu0 0.0
        %4159 = vmatpush1.msra.mxu0 %v3915
        %4160 = vmatprep.subr.mxu0 0.0
        %4161 = vmatpush1.msra.mxu0 %v3918
        %4162 = vmatprep.subr.mxu0 0.0
        %4163 = vmatpush1.msra.mxu0 %v3921
        %4164 = vmatprep.subr.mxu0 0.0
        %4165 = vmatpush1.msra.mxu0 %v3924
        %4166 = vmatprep.subr.mxu0 0.0
        %4167 = vmatpush1.msra.mxu0 %v3927
        %4168 = vmatprep.subr.mxu0 0.0
        %4169 = vmatpush1.msra.mxu0 %v3930
        %4170 = vmatprep.subr.mxu0 0.0
        %4171 = vmatpush1.msra.mxu0 %v3933
        %4172 = vmatprep.subr.mxu0 0.0
        %4173 = vmatpush1.msra.mxu0 %v3936
        %4174 = vmatprep.subr.mxu0 0.0
        %4175 = vmatpush1.msra.mxu0 %v3939
        %4176 = vmatprep.subr.mxu0 0.0
        %4177 = vmatpush1.msra.mxu0 %v3942
        %4178 = vmatprep.subr.mxu0 0.0
        %4179 = vmatpush1.msra.mxu0 %v3945
        %4180 = vmatprep.subr.mxu0 0.0
        %4181 = vmatpush1.msra.mxu0 %v3948
        %4182 = vmatprep.subr.mxu0 0.0
        %4183 = vmatpush1.msra.mxu0 %v3951
        %4184 = vmatprep.subr.mxu0 0.0
        %4185 = vmatpush1.msra.mxu0 %v3954
        %4186 = vmatprep.subr.mxu0 0.0
        %4187 = vmatpush1.msra.mxu0 %v3957
        %4188 = vmatprep.subr.mxu0 0.0
        %4189 = vmatpush1.msra.mxu0 %v3960
        %4190 = vmatprep.subr.mxu0 0.0
        %4191 = vmatpush1.msra.mxu0 %v3963
        %4192 = vmatprep.subr.mxu0 0.0
        %4193 = vmatpush1.msra.mxu0 %v3966
        %4194 = vmatprep.subr.mxu0 0.0
        %4195 = vmatpush1.msra.mxu0 %v3969
        %4196 = vmatprep.subr.mxu0 0.0
        %4197 = vmatpush1.msra.mxu0 %v3972
        %4198 = vmatprep.subr.mxu0 0.0
        %4199 = vmatpush1.msra.mxu0 %v3975
        %4200 = vmatprep.subr.mxu0 0.0
        %4201 = vmatpush1.msra.mxu0 %v3978
        %4202 = vmatprep.subr.mxu0 0.0
        %4203 = vmatpush1.msra.mxu0 %v3981
        %4204 = vmatprep.subr.mxu0 0.0
        %4205 = vmatpush1.msra.mxu0 %v3984
        %4206 = vmatprep.mubr.f32.mxu0 %v3816
        %4207 = vmatmul.mubr.f32.gmra.mrb[0].mxu0 %v3814
        %v4208 = vpop.f32.mrb[0].mxu0
        %v4209 = vadd.f32 %v2908, %v4208
        %v4210 = vpop.f32.mrb[0].mxu0
        %4211 = vdwg.mxu0
        %4212 = vmatprep.subr.mxu0 0.0
        %4213 = vmatpush1.msra.mxu0 %v3987
        %4214 = vmatprep.subr.mxu0 0.0
        %4215 = vmatpush1.msra.mxu0 %v3990
        %4216 = vmatprep.subr.mxu0 0.0
        %4217 = vmatpush1.msra.mxu0 %v3993
        %4218 = vmatprep.subr.mxu0 0.0
        %4219 = vmatpush1.msra.mxu0 %v3996
        %4220 = vmatprep.subr.mxu0 0.0
        %4221 = vmatpush1.msra.mxu0 0.0
        %4222 = vmatprep.subr.mxu0 0.0
        %4223 = vmatpush1.msra.mxu0 0.0
        %4224 = vmatprep.subr.mxu0 0.0
        %4225 = vmatpush1.msra.mxu0 0.0
        %4226 = vmatprep.subr.mxu0 0.0
        %4227 = vmatpush1.msra.mxu0 0.0
        %4228 = vmatprep.subr.mxu0 0.0
        %4229 = vmatpush1.msra.mxu0 0.0
        %4230 = vmatprep.subr.mxu0 0.0
        %4231 = vmatpush1.msra.mxu0 0.0
        %4232 = vmatprep.subr.mxu0 0.0
        %4233 = vmatpush1.msra.mxu0 0.0
        %4234 = vmatprep.subr.mxu0 0.0
        %4235 = vmatpush1.msra.mxu0 0.0
        %4236 = vmatprep.subr.mxu0 0.0
        %4237 = vmatpush1.msra.mxu0 0.0
        %4238 = vmatprep.subr.mxu0 0.0
        %4239 = vmatpush1.msra.mxu0 0.0
        %4240 = vmatprep.subr.mxu0 0.0
        %4241 = vmatpush1.msra.mxu0 0.0
        %4242 = vmatprep.subr.mxu0 0.0
        %4243 = vmatpush1.msra.mxu0 0.0
        %4244 = vmatprep.subr.mxu0 0.0
        %4245 = vmatpush1.msra.mxu0 0.0
        %4246 = vmatprep.subr.mxu0 0.0
        %4247 = vmatpush1.msra.mxu0 0.0
        %4248 = vmatprep.subr.mxu0 0.0
        %4249 = vmatpush1.msra.mxu0 0.0
        %4250 = vmatprep.subr.mxu0 0.0
        %4251 = vmatpush1.msra.mxu0 0.0
        %4252 = vmatprep.subr.mxu0 0.0
        %4253 = vmatpush1.msra.mxu0 0.0
        %4254 = vmatprep.subr.mxu0 0.0
        %4255 = vmatpush1.msra.mxu0 0.0
        %4256 = vmatprep.subr.mxu0 0.0
        %4257 = vmatpush1.msra.mxu0 0.0
        %4258 = vmatprep.subr.mxu0 0.0
        %4259 = vmatpush1.msra.mxu0 0.0
        %4260 = vmatprep.subr.mxu0 0.0
        %4261 = vmatpush1.msra.mxu0 0.0
        %4262 = vmatprep.subr.mxu0 0.0
        %4263 = vmatpush1.msra.mxu0 0.0
        %4264 = vmatprep.subr.mxu0 0.0
        %4265 = vmatpush1.msra.mxu0 0.0
        %4266 = vmatprep.subr.mxu0 0.0
        %4267 = vmatpush1.msra.mxu0 0.0
        %4268 = vmatprep.subr.mxu0 0.0
        %4269 = vmatpush1.msra.mxu0 0.0
        %4270 = vmatprep.subr.mxu0 0.0
        %4271 = vmatpush1.msra.mxu0 0.0
        %4272 = vmatprep.subr.mxu0 0.0
        %4273 = vmatpush1.msra.mxu0 0.0
        %4274 = vmatprep.subr.mxu0 0.0
        %4275 = vmatpush1.msra.mxu0 0.0
        %4276 = vmatprep.mubr.f32.mxu0 0.0
        %4277 = vmatmul.mubr.f32.gmra.mrb[0].mxu0 %v3998
        %v4278 = vpop.f32.mrb[0].mxu0
        %v4279 = vadd.f32 %v4209, %v4278
        %v4280 = vpop.f32.mrb[0].mxu0
        %4281 = vdwg.mxu0
        %4282 = vmatprep.subr.mxu0 %v4140
        %4283 = vmatpush1.msra.mxu0 %v4138
        %4284 = vmatprep.subr.mxu0 0.0
        %4285 = vmatpush1.msra.mxu0 0.0
        %4286 = vmatprep.subr.mxu0 0.0
        %4287 = vmatpush1.msra.mxu0 0.0
        %4288 = vmatprep.subr.mxu0 0.0
        %4289 = vmatpush1.msra.mxu0 0.0
        %4290 = vmatprep.subr.mxu0 0.0
        %4291 = vmatpush1.msra.mxu0 0.0
        %4292 = vmatprep.subr.mxu0 0.0
        %4293 = vmatpush1.msra.mxu0 0.0
        %4294 = vmatprep.subr.mxu0 0.0
        %4295 = vmatpush1.msra.mxu0 0.0
        %4296 = vmatprep.subr.mxu0 0.0
        %4297 = vmatpush1.msra.mxu0 0.0
        %4298 = vmatprep.subr.mxu0 0.0
        %4299 = vmatpush1.msra.mxu0 0.0
        %4300 = vmatprep.subr.mxu0 0.0
        %4301 = vmatpush1.msra.mxu0 0.0
        %4302 = vmatprep.subr.mxu0 0.0
        %4303 = vmatpush1.msra.mxu0 0.0
        %4304 = vmatprep.subr.mxu0 0.0
        %4305 = vmatpush1.msra.mxu0 0.0
        %4306 = vmatprep.subr.mxu0 0.0
        %4307 = vmatpush1.msra.mxu0 0.0
        %4308 = vmatprep.subr.mxu0 0.0
        %4309 = vmatpush1.msra.mxu0 0.0
        %4310 = vmatprep.subr.mxu0 0.0
        %4311 = vmatpush1.msra.mxu0 0.0
        %4312 = vmatprep.subr.mxu0 0.0
        %4313 = vmatpush1.msra.mxu0 0.0
        %4314 = vmatprep.subr.mxu0 0.0
        %4315 = vmatpush1.msra.mxu0 0.0
        %4316 = vmatprep.subr.mxu0 0.0
        %4317 = vmatpush1.msra.mxu0 0.0
        %4318 = vmatprep.subr.mxu0 0.0
        %4319 = vmatpush1.msra.mxu0 0.0
        %4320 = vmatprep.subr.mxu0 0.0
        %4321 = vmatpush1.msra.mxu0 0.0
        %4322 = vmatprep.subr.mxu0 0.0
        %4323 = vmatpush1.msra.mxu0 0.0
        %4324 = vmatprep.subr.mxu0 0.0
        %4325 = vmatpush1.msra.mxu0 0.0
        %4326 = vmatprep.subr.mxu0 0.0
        %4327 = vmatpush1.msra.mxu0 0.0
        %4328 = vmatprep.subr.mxu0 0.0
        %4329 = vmatpush1.msra.mxu0 0.0
        %4330 = vmatprep.subr.mxu0 0.0
        %4331 = vmatpush1.msra.mxu0 0.0
        %4332 = vmatprep.subr.mxu0 0.0
        %4333 = vmatpush1.msra.mxu0 0.0
        %4334 = vmatprep.subr.mxu0 0.0
        %4335 = vmatpush1.msra.mxu0 0.0
        %4336 = vmatprep.subr.mxu0 0.0
        %4337 = vmatpush1.msra.mxu0 0.0
        %4338 = vmatprep.subr.mxu0 0.0
        %4339 = vmatpush1.msra.mxu0 0.0
        %4340 = vmatprep.subr.mxu0 0.0
        %4341 = vmatpush1.msra.mxu0 0.0
        %4342 = vmatprep.subr.mxu0 0.0
        %4343 = vmatpush1.msra.mxu0 0.0
        %4344 = vmatprep.subr.mxu0 0.0
        %4345 = vmatpush1.msra.mxu0 0.0
        %4346 = vmatprep.mubr.f32.mxu0 0.0
        %4347 = vmatmul.mubr.f32.gmra.mrb[0].mxu0 %v1397
        %v4348 = vpop.f32.mrb[0].mxu0
        %v4349 = vadd.f32 0.0, %v4348
        %v4350 = vpop.f32.mrb[0].mxu0
        %v4351 = vadd.f32 0.0, %v4350
        %4352 = vmatprep.mubr.f32.mxu0 0.0
        %4353 = vmatmul.mubr.f32.gmra.mrb[0].mxu0 %v1400
        %v4354 = vpop.f32.mrb[0].mxu0
        %v4355 = vadd.f32 0.0, %v4354
        %v4356 = vpop.f32.mrb[0].mxu0
        %v4357 = vadd.f32 0.0, %v4356
        %4358 = vdwg.mxu0
        %4359 = vmatprep.subr.mxu0 0.0
        %4360 = vmatpush1.msra.mxu0 %v4279
        %4361 = vmatprep.subr.mxu0 0.0
        %4362 = vmatpush1.msra.mxu0 0.0
        %4363 = vmatprep.subr.mxu0 0.0
        %4364 = vmatpush1.msra.mxu0 0.0
        %4365 = vmatprep.subr.mxu0 0.0
        %4366 = vmatpush1.msra.mxu0 0.0
        %4367 = vmatprep.subr.mxu0 0.0
        %4368 = vmatpush1.msra.mxu0 0.0
        %4369 = vmatprep.subr.mxu0 0.0
        %4370 = vmatpush1.msra.mxu0 0.0
        %4371 = vmatprep.subr.mxu0 0.0
        %4372 = vmatpush1.msra.mxu0 0.0
        %4373 = vmatprep.subr.mxu0 0.0
        %4374 = vmatpush1.msra.mxu0 0.0
        %4375 = vmatprep.subr.mxu0 0.0
        %4376 = vmatpush1.msra.mxu0 0.0
        %4377 = vmatprep.subr.mxu0 0.0
        %4378 = vmatpush1.msra.mxu0 0.0
        %4379 = vmatprep.subr.mxu0 0.0
        %4380 = vmatpush1.msra.mxu0 0.0
        %4381 = vmatprep.subr.mxu0 0.0
        %4382 = vmatpush1.msra.mxu0 0.0
        %4383 = vmatprep.subr.mxu0 0.0
        %4384 = vmatpush1.msra.mxu0 0.0
        %4385 = vmatprep.subr.mxu0 0.0
        %4386 = vmatpush1.msra.mxu0 0.0
        %4387 = vmatprep.subr.mxu0 0.0
        %4388 = vmatpush1.msra.mxu0 0.0
        %4389 = vmatprep.subr.mxu0 0.0
        %4390 = vmatpush1.msra.mxu0 0.0
        %4391 = vmatprep.subr.mxu0 0.0
        %4392 = vmatpush1.msra.mxu0 0.0
        %4393 = vmatprep.subr.mxu0 0.0
        %4394 = vmatpush1.msra.mxu0 0.0
        %4395 = vmatprep.subr.mxu0 0.0
        %4396 = vmatpush1.msra.mxu0 0.0
        %4397 = vmatprep.subr.mxu0 0.0
        %4398 = vmatpush1.msra.mxu0 0.0
        %4399 = vmatprep.subr.mxu0 0.0
        %4400 = vmatpush1.msra.mxu0 0.0
        %4401 = vmatprep.subr.mxu0 0.0
        %4402 = vmatpush1.msra.mxu0 0.0
        %4403 = vmatprep.subr.mxu0 0.0
        %4404 = vmatpush1.msra.mxu0 0.0
        %4405 = vmatprep.subr.mxu0 0.0
        %4406 = vmatpush1.msra.mxu0 0.0
        %4407 = vmatprep.subr.mxu0 0.0
        %4408 = vmatpush1.msra.mxu0 0.0
        %4409 = vmatprep.subr.mxu0 0.0
        %4410 = vmatpush1.msra.mxu0 0.0
        %4411 = vmatprep.subr.mxu0 0.0
        %4412 = vmatpush1.msra.mxu0 0.0
        %4413 = vmatprep.subr.mxu0 0.0
        %4414 = vmatpush1.msra.mxu0 0.0
        %4415 = vmatprep.subr.mxu0 0.0
        %4416 = vmatpush1.msra.mxu0 0.0
        %4417 = vmatprep.subr.mxu0 0.0
        %4418 = vmatpush1.msra.mxu0 0.0
        %4419 = vmatprep.subr.mxu0 0.0
        %4420 = vmatpush1.msra.mxu0 0.0
        %4421 = vmatprep.subr.mxu0 0.0
        %4422 = vmatpush1.msra.mxu0 0.0
        %4423 = vmatprep.mubr.f32.mxu0 0.0
        %4424 = vmatmul.mubr.f32.gmra.mrb[0].mxu0 %v1397
        %v4425 = vpop.f32.mrb[0].mxu0
        %v4426 = vadd.f32 0.0, %v4425
        %v4427 = vpop.f32.mrb[0].mxu0
        %4428 = vmatprep.mubr.f32.mxu0 0.0
        %4429 = vmatmul.mubr.f32.gmra.mrb[0].mxu0 %v1400
        %v4430 = vpop.f32.mrb[0].mxu0
        %v4431 = vadd.f32 0.0, %v4430
        %v4432 = vpop.f32.mrb[0].mxu0
        %4433 = vdwg.mxu0
        %s4434 = scalar_lea.vmem [#allocation5], 16
        %v4435 = vld [vmem:[%s4434] sm:$0xff]
        %s4436 = scalar_lea.vmem [#allocation7], 2
        %v4437 = vld [vmem:[%s4436] sm:$0x1]
        %v4439 = vlaneseq
        %v4440 = vshrl.u32 %v4439, 7
        %v4441 = vsub.s32 0, %v4440
        %v4442 = vrot.slane %v4437, %v4441
        %4444 = vmatprep.subr.mxu0 0.0
        %4445 = vmatpush1.msra.mxu0 %v4435
        %4446 = vmatprep.subr.mxu0 0.0
        %4447 = vmatpush1.msra.mxu0 0.0
        %4448 = vmatprep.subr.mxu0 0.0
        %4449 = vmatpush1.msra.mxu0 0.0
        %4450 = vmatprep.subr.mxu0 0.0
        %4451 = vmatpush1.msra.mxu0 0.0
        %4452 = vmatprep.subr.mxu0 0.0
        %4453 = vmatpush1.msra.mxu0 0.0
        %4454 = vmatprep.subr.mxu0 0.0
        %4455 = vmatpush1.msra.mxu0 0.0
        %4456 = vmatprep.subr.mxu0 0.0
        %4457 = vmatpush1.msra.mxu0 0.0
        %4458 = vmatprep.subr.mxu0 0.0
        %4459 = vmatpush1.msra.mxu0 0.0
        %4460 = vmatprep.subr.mxu0 0.0
        %4461 = vmatpush1.msra.mxu0 0.0
        %4462 = vmatprep.subr.mxu0 0.0
        %4463 = vmatpush1.msra.mxu0 0.0
        %4464 = vmatprep.subr.mxu0 0.0
        %4465 = vmatpush1.msra.mxu0 0.0
        %4466 = vmatprep.subr.mxu0 0.0
        %4467 = vmatpush1.msra.mxu0 0.0
        %4468 = vmatprep.subr.mxu0 0.0
        %4469 = vmatpush1.msra.mxu0 0.0
        %4470 = vmatprep.subr.mxu0 0.0
        %4471 = vmatpush1.msra.mxu0 0.0
        %4472 = vmatprep.subr.mxu0 0.0
        %4473 = vmatpush1.msra.mxu0 0.0
        %4474 = vmatprep.subr.mxu0 0.0
        %4475 = vmatpush1.msra.mxu0 0.0
        %4476 = vmatprep.subr.mxu0 0.0
        %4477 = vmatpush1.msra.mxu0 0.0
        %4478 = vmatprep.subr.mxu0 0.0
        %4479 = vmatpush1.msra.mxu0 0.0
        %4480 = vmatprep.subr.mxu0 0.0
        %4481 = vmatpush1.msra.mxu0 0.0
        %4482 = vmatprep.subr.mxu0 0.0
        %4483 = vmatpush1.msra.mxu0 0.0
        %4484 = vmatprep.subr.mxu0 0.0
        %4485 = vmatpush1.msra.mxu0 0.0
        %4486 = vmatprep.subr.mxu0 0.0
        %4487 = vmatpush1.msra.mxu0 0.0
        %4488 = vmatprep.subr.mxu0 0.0
        %4489 = vmatpush1.msra.mxu0 0.0
        %4490 = vmatprep.subr.mxu0 0.0
        %4491 = vmatpush1.msra.mxu0 0.0
        %4492 = vmatprep.subr.mxu0 0.0
        %4493 = vmatpush1.msra.mxu0 0.0
        %4494 = vmatprep.subr.mxu0 0.0
        %4495 = vmatpush1.msra.mxu0 0.0
        %4496 = vmatprep.subr.mxu0 0.0
        %4497 = vmatpush1.msra.mxu0 0.0
        %4498 = vmatprep.subr.mxu0 0.0
        %4499 = vmatpush1.msra.mxu0 0.0
        %4500 = vmatprep.subr.mxu0 0.0
        %4501 = vmatpush1.msra.mxu0 0.0
        %4502 = vmatprep.subr.mxu0 0.0
        %4503 = vmatpush1.msra.mxu0 0.0
        %4504 = vmatprep.subr.mxu0 0.0
        %4505 = vmatpush1.msra.mxu0 0.0
        %4506 = vmatprep.subr.mxu0 0.0
        %4507 = vmatpush1.msra.mxu0 0.0
        %4508 = vmatprep.mubr.f32.mxu0 0.0
        %4509 = vmatmul.mubr.f32.gmra.mrb[0].mxu0 %v1563
        %v4510 = vpop.f32.mrb[0].mxu0
        %v4511 = vadd.f32 %v4442, %v4510
        %v4512 = vpop.f32.mrb[0].mxu0
        %4513 = vmatprep.mubr.f32.mxu0 0.0
        %4514 = vmatmul.mubr.f32.gmra.mrb[0].mxu0 %v1566
        %v4515 = vpop.f32.mrb[0].mxu0
        %v4516 = vadd.f32 %v4442, %v4515
        %v4517 = vpop.f32.mrb[0].mxu0
        %4518 = vdwg.mxu0
        %v4519 = vmax.f32 %v4511, 0.0
        %v4520 = vmax.f32 %v4516, 0.0
        %s4521 = scalar_lea.vmem [#allocation8], 128
        %v4522 = vld [vmem:[%s4521] sm:$0xff]
        %v4523 = vld [vmem:[%s4521 + $0x8] sm:$0xff]
        %v4524 = vld [vmem:[%s4521 + $0x10] sm:$0xff]
        %v4525 = vld [vmem:[%s4521 + $0x18] sm:$0xff]
        %v4526 = vld [vmem:[%s4521 + $0x20] sm:$0xff]
        %v4527 = vld [vmem:[%s4521 + $0x28] sm:$0xff]
        %v4528 = vld [vmem:[%s4521 + $0x30] sm:$0xff]
        %v4529 = vld [vmem:[%s4521 + $0x38] sm:$0xff]
        %s4530 = scalar_lea.vmem [#allocation10], 4
        %v4531 = vld [vmem:[%s4530] sm:$0x3]
        %v4533 = vlaneseq
        %v4534 = vshrl.u32 %v4533, 7
        %v4535 = vsub.s32 0, %v4534
        %v4536 = vrot.slane %v4531, %v4535
        %v4537 = vlaneseq
        %v4538 = vshrl.u32 %v4537, 7
        %v4539 = vsub.s32 1, %v4538
        %v4540 = vrot.slane %v4531, %v4539
        %v4544 = vsel %vm1665, %v4519, 0
        %v4547 = vsel %vm1665, %v4520, 0
        %4549 = vmatprep.subr.mxu0 %v4523
        %4550 = vmatpush1.msra.mxu0 %v4522
        %4551 = vmatprep.subr.mxu0 %v4525
        %4552 = vmatpush1.msra.mxu0 %v4524
        %4553 = vmatprep.subr.mxu0 %v4527
        %4554 = vmatpush1.msra.mxu0 %v4526
        %4555 = vmatprep.subr.mxu0 %v4529
        %4556 = vmatpush1.msra.mxu0 %v4528
        %4557 = vmatprep.subr.mxu0 0.0
        %4558 = vmatpush1.msra.mxu0 0.0
        %4559 = vmatprep.subr.mxu0 0.0
        %4560 = vmatpush1.msra.mxu0 0.0
        %4561 = vmatprep.subr.mxu0 0.0
        %4562 = vmatpush1.msra.mxu0 0.0
        %4563 = vmatprep.subr.mxu0 0.0
        %4564 = vmatpush1.msra.mxu0 0.0
        %4565 = vmatprep.subr.mxu0 0.0
        %4566 = vmatpush1.msra.mxu0 0.0
        %4567 = vmatprep.subr.mxu0 0.0
        %4568 = vmatpush1.msra.mxu0 0.0
        %4569 = vmatprep.subr.mxu0 0.0
        %4570 = vmatpush1.msra.mxu0 0.0
        %4571 = vmatprep.subr.mxu0 0.0
        %4572 = vmatpush1.msra.mxu0 0.0
        %4573 = vmatprep.subr.mxu0 0.0
        %4574 = vmatpush1.msra.mxu0 0.0
        %4575 = vmatprep.subr.mxu0 0.0
        %4576 = vmatpush1.msra.mxu0 0.0
        %4577 = vmatprep.subr.mxu0 0.0
        %4578 = vmatpush1.msra.mxu0 0.0
        %4579 = vmatprep.subr.mxu0 0.0
        %4580 = vmatpush1.msra.mxu0 0.0
        %4581 = vmatprep.subr.mxu0 0.0
        %4582 = vmatpush1.msra.mxu0 0.0
        %4583 = vmatprep.subr.mxu0 0.0
        %4584 = vmatpush1.msra.mxu0 0.0
        %4585 = vmatprep.subr.mxu0 0.0
        %4586 = vmatpush1.msra.mxu0 0.0
        %4587 = vmatprep.subr.mxu0 0.0
        %4588 = vmatpush1.msra.mxu0 0.0
        %4589 = vmatprep.subr.mxu0 0.0
        %4590 = vmatpush1.msra.mxu0 0.0
        %4591 = vmatprep.subr.mxu0 0.0
        %4592 = vmatpush1.msra.mxu0 0.0
        %4593 = vmatprep.subr.mxu0 0.0
        %4594 = vmatpush1.msra.mxu0 0.0
        %4595 = vmatprep.subr.mxu0 0.0
        %4596 = vmatpush1.msra.mxu0 0.0
        %4597 = vmatprep.subr.mxu0 0.0
        %4598 = vmatpush1.msra.mxu0 0.0
        %4599 = vmatprep.subr.mxu0 0.0
        %4600 = vmatpush1.msra.mxu0 0.0
        %4601 = vmatprep.subr.mxu0 0.0
        %4602 = vmatpush1.msra.mxu0 0.0
        %4603 = vmatprep.subr.mxu0 0.0
        %4604 = vmatpush1.msra.mxu0 0.0
        %4605 = vmatprep.subr.mxu0 0.0
        %4606 = vmatpush1.msra.mxu0 0.0
        %4607 = vmatprep.subr.mxu0 0.0
        %4608 = vmatpush1.msra.mxu0 0.0
        %4609 = vmatprep.subr.mxu0 0.0
        %4610 = vmatpush1.msra.mxu0 0.0
        %4611 = vmatprep.subr.mxu0 0.0
        %4612 = vmatpush1.msra.mxu0 0.0
        %4613 = vmatprep.mubr.f32.mxu0 0.0
        %4614 = vmatmul.mubr.f32.gmra.mrb[0].mxu0 %v4544
        %v4615 = vpop.f32.mrb[0].mxu0
        %v4616 = vadd.f32 %v4536, %v4615
        %v4617 = vpop.f32.mrb[0].mxu0
        %v4618 = vadd.f32 %v4540, %v4617
        %4619 = vmatprep.mubr.f32.mxu0 0.0
        %4620 = vmatmul.mubr.f32.gmra.mrb[0].mxu0 %v4547
        %v4621 = vpop.f32.mrb[0].mxu0
        %v4622 = vadd.f32 %v4536, %v4621
        %v4623 = vpop.f32.mrb[0].mxu0
        %v4624 = vadd.f32 %v4540, %v4623
        %4625 = vdwg.mxu0
        %v4627 = vsel %vm1665, %v4618, 0
        %v4630 = vsel %vm1665, %v4624, 0
        %4632 = vmatprep.subr.mxu0 %v1750
        %4633 = vmatpush1.msra.mxu0 %v1749
        %4634 = vmatprep.subr.mxu0 %v1753
        %4635 = vmatpush1.msra.mxu0 %v1752
        %4636 = vmatprep.subr.mxu0 %v1756
        %4637 = vmatpush1.msra.mxu0 %v1755
        %4638 = vmatprep.subr.mxu0 %v1759
        %4639 = vmatpush1.msra.mxu0 %v1758
        %4640 = vmatprep.subr.mxu0 %v1762
        %4641 = vmatpush1.msra.mxu0 %v1761
        %4642 = vmatprep.subr.mxu0 %v1765
        %4643 = vmatpush1.msra.mxu0 %v1764
        %4644 = vmatprep.subr.mxu0 %v1768
        %4645 = vmatpush1.msra.mxu0 %v1767
        %4646 = vmatprep.subr.mxu0 %v1771
        %4647 = vmatpush1.msra.mxu0 %v1770
        %4648 = vmatprep.subr.mxu0 %v1774
        %4649 = vmatpush1.msra.mxu0 %v1773
        %4650 = vmatprep.subr.mxu0 %v1777
        %4651 = vmatpush1.msra.mxu0 %v1776
        %4652 = vmatprep.subr.mxu0 %v1780
        %4653 = vmatpush1.msra.mxu0 %v1779
        %4654 = vmatprep.subr.mxu0 %v1783
        %4655 = vmatpush1.msra.mxu0 %v1782
        %4656 = vmatprep.subr.mxu0 %v1786
        %4657 = vmatpush1.msra.mxu0 %v1785
        %4658 = vmatprep.subr.mxu0 %v1789
        %4659 = vmatpush1.msra.mxu0 %v1788
        %4660 = vmatprep.subr.mxu0 %v1792
        %4661 = vmatpush1.msra.mxu0 %v1791
        %4662 = vmatprep.subr.mxu0 %v1795
        %4663 = vmatpush1.msra.mxu0 %v1794
        %4664 = vmatprep.subr.mxu0 %v1798
        %4665 = vmatpush1.msra.mxu0 %v1797
        %4666 = vmatprep.subr.mxu0 %v1801
        %4667 = vmatpush1.msra.mxu0 %v1800
        %4668 = vmatprep.subr.mxu0 %v1804
        %4669 = vmatpush1.msra.mxu0 %v1803
        %4670 = vmatprep.subr.mxu0 %v1807
        %4671 = vmatpush1.msra.mxu0 %v1806
        %4672 = vmatprep.subr.mxu0 0.0
        %4673 = vmatpush1.msra.mxu0 0.0
        %4674 = vmatprep.subr.mxu0 0.0
        %4675 = vmatpush1.msra.mxu0 0.0
        %4676 = vmatprep.subr.mxu0 0.0
        %4677 = vmatpush1.msra.mxu0 0.0
        %4678 = vmatprep.subr.mxu0 0.0
        %4679 = vmatpush1.msra.mxu0 0.0
        %4680 = vmatprep.subr.mxu0 0.0
        %4681 = vmatpush1.msra.mxu0 0.0
        %4682 = vmatprep.subr.mxu0 0.0
        %4683 = vmatpush1.msra.mxu0 0.0
        %4684 = vmatprep.subr.mxu0 0.0
        %4685 = vmatpush1.msra.mxu0 0.0
        %4686 = vmatprep.subr.mxu0 0.0
        %4687 = vmatpush1.msra.mxu0 0.0
        %4688 = vmatprep.subr.mxu0 0.0
        %4689 = vmatpush1.msra.mxu0 0.0
        %4690 = vmatprep.subr.mxu0 0.0
        %4691 = vmatpush1.msra.mxu0 0.0
        %4692 = vmatprep.subr.mxu0 0.0
        %4693 = vmatpush1.msra.mxu0 0.0
        %4694 = vmatprep.subr.mxu0 0.0
        %4695 = vmatpush1.msra.mxu0 0.0
        %4696 = vmatprep.mubr.f32.mxu0 %v4627
        %4697 = vmatmul.mubr.f32.gmra.mrb[0].mxu0 %v4616
        %v4698 = vpop.f32.mrb[0].mxu0
        %v4699 = vadd.f32 0.0, %v4698
        %v4700 = vpop.f32.mrb[0].mxu0
        %v4701 = vadd.f32 0.0, %v4700
        %4702 = vmatprep.mubr.f32.mxu0 %v4630
        %4703 = vmatmul.mubr.f32.gmra.mrb[0].mxu0 %v4622
        %v4704 = vpop.f32.mrb[0].mxu0
        %v4705 = vadd.f32 0.0, %v4704
        %v4706 = vpop.f32.mrb[0].mxu0
        %v4707 = vadd.f32 0.0, %v4706
        %4708 = vdwg.mxu0
        %4709 = vmatprep.subr.mxu0 0.0
        %4710 = vmatpush1.msra.mxu0 %v1751
        %4711 = vmatprep.subr.mxu0 0.0
        %4712 = vmatpush1.msra.mxu0 %v1754
        %4713 = vmatprep.subr.mxu0 0.0
        %4714 = vmatpush1.msra.mxu0 %v1757
        %4715 = vmatprep.subr.mxu0 0.0
        %4716 = vmatpush1.msra.mxu0 %v1760
        %4717 = vmatprep.subr.mxu0 0.0
        %4718 = vmatpush1.msra.mxu0 %v1763
        %4719 = vmatprep.subr.mxu0 0.0
        %4720 = vmatpush1.msra.mxu0 %v1766
        %4721 = vmatprep.subr.mxu0 0.0
        %4722 = vmatpush1.msra.mxu0 %v1769
        %4723 = vmatprep.subr.mxu0 0.0
        %4724 = vmatpush1.msra.mxu0 %v1772
        %4725 = vmatprep.subr.mxu0 0.0
        %4726 = vmatpush1.msra.mxu0 %v1775
        %4727 = vmatprep.subr.mxu0 0.0
        %4728 = vmatpush1.msra.mxu0 %v1778
        %4729 = vmatprep.subr.mxu0 0.0
        %4730 = vmatpush1.msra.mxu0 %v1781
        %4731 = vmatprep.subr.mxu0 0.0
        %4732 = vmatpush1.msra.mxu0 %v1784
        %4733 = vmatprep.subr.mxu0 0.0
        %4734 = vmatpush1.msra.mxu0 %v1787
        %4735 = vmatprep.subr.mxu0 0.0
        %4736 = vmatpush1.msra.mxu0 %v1790
        %4737 = vmatprep.subr.mxu0 0.0
        %4738 = vmatpush1.msra.mxu0 %v1793
        %4739 = vmatprep.subr.mxu0 0.0
        %4740 = vmatpush1.msra.mxu0 %v1796
        %4741 = vmatprep.subr.mxu0 0.0
        %4742 = vmatpush1.msra.mxu0 %v1799
        %4743 = vmatprep.subr.mxu0 0.0
        %4744 = vmatpush1.msra.mxu0 %v1802
        %4745 = vmatprep.subr.mxu0 0.0
        %4746 = vmatpush1.msra.mxu0 %v1805
        %4747 = vmatprep.subr.mxu0 0.0
        %4748 = vmatpush1.msra.mxu0 %v1808
        %4749 = vmatprep.subr.mxu0 0.0
        %4750 = vmatpush1.msra.mxu0 0.0
        %4751 = vmatprep.subr.mxu0 0.0
        %4752 = vmatpush1.msra.mxu0 0.0
        %4753 = vmatprep.subr.mxu0 0.0
        %4754 = vmatpush1.msra.mxu0 0.0
        %4755 = vmatprep.subr.mxu0 0.0
        %4756 = vmatpush1.msra.mxu0 0.0
        %4757 = vmatprep.subr.mxu0 0.0
        %4758 = vmatpush1.msra.mxu0 0.0
        %4759 = vmatprep.subr.mxu0 0.0
        %4760 = vmatpush1.msra.mxu0 0.0
        %4761 = vmatprep.subr.mxu0 0.0
        %4762 = vmatpush1.msra.mxu0 0.0
        %4763 = vmatprep.subr.mxu0 0.0
        %4764 = vmatpush1.msra.mxu0 0.0
        %4765 = vmatprep.subr.mxu0 0.0
        %4766 = vmatpush1.msra.mxu0 0.0
        %4767 = vmatprep.subr.mxu0 0.0
        %4768 = vmatpush1.msra.mxu0 0.0
        %4769 = vmatprep.subr.mxu0 0.0
        %4770 = vmatpush1.msra.mxu0 0.0
        %4771 = vmatprep.subr.mxu0 0.0
        %4772 = vmatpush1.msra.mxu0 0.0
        %4773 = vmatprep.mubr.f32.mxu0 %v4627
        %4774 = vmatmul.mubr.f32.gmra.mrb[0].mxu0 %v4616
        %v4775 = vpop.f32.mrb[0].mxu0
        %v4776 = vadd.f32 0.0, %v4775
        %v4777 = vpop.f32.mrb[0].mxu0
        %4778 = vmatprep.mubr.f32.mxu0 %v4630
        %4779 = vmatmul.mubr.f32.gmra.mrb[0].mxu0 %v4622
        %v4780 = vpop.f32.mrb[0].mxu0
        %v4781 = vadd.f32 0.0, %v4780
        %v4782 = vpop.f32.mrb[0].mxu0
        %4783 = vdwg.mxu0
        %4784 = vmatprep.subr.mxu0 %v1968
        %4785 = vmatpush1.msra.mxu0 %v1967
        %4786 = vmatprep.subr.mxu0 %v1971
        %4787 = vmatpush1.msra.mxu0 %v1970
        %4788 = vmatprep.subr.mxu0 %v1974
        %4789 = vmatpush1.msra.mxu0 %v1973
        %4790 = vmatprep.subr.mxu0 %v1977
        %4791 = vmatpush1.msra.mxu0 %v1976
        %4792 = vmatprep.subr.mxu0 %v1980
        %4793 = vmatpush1.msra.mxu0 %v1979
        %4794 = vmatprep.subr.mxu0 %v1983
        %4795 = vmatpush1.msra.mxu0 %v1982
        %4796 = vmatprep.subr.mxu0 %v1986
        %4797 = vmatpush1.msra.mxu0 %v1985
        %4798 = vmatprep.subr.mxu0 %v1989
        %4799 = vmatpush1.msra.mxu0 %v1988
        %4800 = vmatprep.subr.mxu0 %v1992
        %4801 = vmatpush1.msra.mxu0 %v1991
        %4802 = vmatprep.subr.mxu0 %v1995
        %4803 = vmatpush1.msra.mxu0 %v1994
        %4804 = vmatprep.subr.mxu0 %v1998
        %4805 = vmatpush1.msra.mxu0 %v1997
        %4806 = vmatprep.subr.mxu0 %v2001
        %4807 = vmatpush1.msra.mxu0 %v2000
        %4808 = vmatprep.subr.mxu0 %v2004
        %4809 = vmatpush1.msra.mxu0 %v2003
        %4810 = vmatprep.subr.mxu0 %v2007
        %4811 = vmatpush1.msra.mxu0 %v2006
        %4812 = vmatprep.subr.mxu0 %v2010
        %4813 = vmatpush1.msra.mxu0 %v2009
        %4814 = vmatprep.subr.mxu0 %v2013
        %4815 = vmatpush1.msra.mxu0 %v2012
        %4816 = vmatprep.subr.mxu0 %v2016
        %4817 = vmatpush1.msra.mxu0 %v2015
        %4818 = vmatprep.subr.mxu0 %v2019
        %4819 = vmatpush1.msra.mxu0 %v2018
        %4820 = vmatprep.subr.mxu0 %v2022
        %4821 = vmatpush1.msra.mxu0 %v2021
        %4822 = vmatprep.subr.mxu0 %v2025
        %4823 = vmatpush1.msra.mxu0 %v2024
        %4824 = vmatprep.subr.mxu0 0.0
        %4825 = vmatpush1.msra.mxu0 0.0
        %4826 = vmatprep.subr.mxu0 0.0
        %4827 = vmatpush1.msra.mxu0 0.0
        %4828 = vmatprep.subr.mxu0 0.0
        %4829 = vmatpush1.msra.mxu0 0.0
        %4830 = vmatprep.subr.mxu0 0.0
        %4831 = vmatpush1.msra.mxu0 0.0
        %4832 = vmatprep.subr.mxu0 0.0
        %4833 = vmatpush1.msra.mxu0 0.0
        %4834 = vmatprep.subr.mxu0 0.0
        %4835 = vmatpush1.msra.mxu0 0.0
        %4836 = vmatprep.subr.mxu0 0.0
        %4837 = vmatpush1.msra.mxu0 0.0
        %4838 = vmatprep.subr.mxu0 0.0
        %4839 = vmatpush1.msra.mxu0 0.0
        %4840 = vmatprep.subr.mxu0 0.0
        %4841 = vmatpush1.msra.mxu0 0.0
        %4842 = vmatprep.subr.mxu0 0.0
        %4843 = vmatpush1.msra.mxu0 0.0
        %4844 = vmatprep.subr.mxu0 0.0
        %4845 = vmatpush1.msra.mxu0 0.0
        %4846 = vmatprep.subr.mxu0 0.0
        %4847 = vmatpush1.msra.mxu0 0.0
        %4848 = vmatprep.mubr.f32.mxu0 %v4627
        %4849 = vmatmul.mubr.f32.gmra.mrb[0].mxu0 %v4616
        %v4850 = vpop.f32.mrb[0].mxu0
        %v4851 = vadd.f32 0.0, %v4850
        %v4852 = vpop.f32.mrb[0].mxu0
        %v4853 = vadd.f32 0.0, %v4852
        %4854 = vmatprep.mubr.f32.mxu0 %v4630
        %4855 = vmatmul.mubr.f32.gmra.mrb[0].mxu0 %v4622
        %v4856 = vpop.f32.mrb[0].mxu0
        %v4857 = vadd.f32 0.0, %v4856
        %v4858 = vpop.f32.mrb[0].mxu0
        %v4859 = vadd.f32 0.0, %v4858
        %4860 = vdwg.mxu0
        %4861 = vmatprep.subr.mxu0 0.0
        %4862 = vmatpush1.msra.mxu0 %v1969
        %4863 = vmatprep.subr.mxu0 0.0
        %4864 = vmatpush1.msra.mxu0 %v1972
        %4865 = vmatprep.subr.mxu0 0.0
        %4866 = vmatpush1.msra.mxu0 %v1975
        %4867 = vmatprep.subr.mxu0 0.0
        %4868 = vmatpush1.msra.mxu0 %v1978
        %4869 = vmatprep.subr.mxu0 0.0
        %4870 = vmatpush1.msra.mxu0 %v1981
        %4871 = vmatprep.subr.mxu0 0.0
        %4872 = vmatpush1.msra.mxu0 %v1984
        %4873 = vmatprep.subr.mxu0 0.0
        %4874 = vmatpush1.msra.mxu0 %v1987
        %4875 = vmatprep.subr.mxu0 0.0
        %4876 = vmatpush1.msra.mxu0 %v1990
        %4877 = vmatprep.subr.mxu0 0.0
        %4878 = vmatpush1.msra.mxu0 %v1993
        %4879 = vmatprep.subr.mxu0 0.0
        %4880 = vmatpush1.msra.mxu0 %v1996
        %4881 = vmatprep.subr.mxu0 0.0
        %4882 = vmatpush1.msra.mxu0 %v1999
        %4883 = vmatprep.subr.mxu0 0.0
        %4884 = vmatpush1.msra.mxu0 %v2002
        %4885 = vmatprep.subr.mxu0 0.0
        %4886 = vmatpush1.msra.mxu0 %v2005
        %4887 = vmatprep.subr.mxu0 0.0
        %4888 = vmatpush1.msra.mxu0 %v2008
        %4889 = vmatprep.subr.mxu0 0.0
        %4890 = vmatpush1.msra.mxu0 %v2011
        %4891 = vmatprep.subr.mxu0 0.0
        %4892 = vmatpush1.msra.mxu0 %v2014
        %4893 = vmatprep.subr.mxu0 0.0
        %4894 = vmatpush1.msra.mxu0 %v2017
        %4895 = vmatprep.subr.mxu0 0.0
        %4896 = vmatpush1.msra.mxu0 %v2020
        %4897 = vmatprep.subr.mxu0 0.0
        %4898 = vmatpush1.msra.mxu0 %v2023
        %4899 = vmatprep.subr.mxu0 0.0
        %4900 = vmatpush1.msra.mxu0 %v2026
        %4901 = vmatprep.subr.mxu0 0.0
        %4902 = vmatpush1.msra.mxu0 0.0
        %4903 = vmatprep.subr.mxu0 0.0
        %4904 = vmatpush1.msra.mxu0 0.0
        %4905 = vmatprep.subr.mxu0 0.0
        %4906 = vmatpush1.msra.mxu0 0.0
        %4907 = vmatprep.subr.mxu0 0.0
        %4908 = vmatpush1.msra.mxu0 0.0
        %4909 = vmatprep.subr.mxu0 0.0
        %4910 = vmatpush1.msra.mxu0 0.0
        %4911 = vmatprep.subr.mxu0 0.0
        %4912 = vmatpush1.msra.mxu0 0.0
        %4913 = vmatprep.subr.mxu0 0.0
        %4914 = vmatpush1.msra.mxu0 0.0
        %4915 = vmatprep.subr.mxu0 0.0
        %4916 = vmatpush1.msra.mxu0 0.0
        %4917 = vmatprep.subr.mxu0 0.0
        %4918 = vmatpush1.msra.mxu0 0.0
        %4919 = vmatprep.subr.mxu0 0.0
        %4920 = vmatpush1.msra.mxu0 0.0
        %4921 = vmatprep.subr.mxu0 0.0
        %4922 = vmatpush1.msra.mxu0 0.0
        %4923 = vmatprep.subr.mxu0 0.0
        %4924 = vmatpush1.msra.mxu0 0.0
        %4925 = vmatprep.mubr.f32.mxu0 %v4627
        %4926 = vmatmul.mubr.f32.gmra.mrb[0].mxu0 %v4616
        %v4927 = vpop.f32.mrb[0].mxu0
        %v4928 = vadd.f32 0.0, %v4927
        %v4929 = vpop.f32.mrb[0].mxu0
        %4930 = vmatprep.mubr.f32.mxu0 %v4630
        %4931 = vmatmul.mubr.f32.gmra.mrb[0].mxu0 %v4622
        %v4932 = vpop.f32.mrb[0].mxu0
        %v4933 = vadd.f32 0.0, %v4932
        %v4934 = vpop.f32.mrb[0].mxu0
        %4935 = vdwg.mxu0
        %v4937 = vsel %vm1665, %v4349, 0
        %v4940 = vsel %vm1665, %v4355, 0
        %4942 = vmatprep.subr.mxu0 %v2180
        %4943 = vmatpush1.msra.mxu0 %v2179
        %4944 = vmatprep.subr.mxu0 %v2183
        %4945 = vmatpush1.msra.mxu0 %v2182
        %4946 = vmatprep.subr.mxu0 %v2186
        %4947 = vmatpush1.msra.mxu0 %v2185
        %4948 = vmatprep.subr.mxu0 %v2189
        %4949 = vmatpush1.msra.mxu0 %v2188
        %4950 = vmatprep.subr.mxu0 0.0
        %4951 = vmatpush1.msra.mxu0 0.0
        %4952 = vmatprep.subr.mxu0 0.0
        %4953 = vmatpush1.msra.mxu0 0.0
        %4954 = vmatprep.subr.mxu0 0.0
        %4955 = vmatpush1.msra.mxu0 0.0
        %4956 = vmatprep.subr.mxu0 0.0
        %4957 = vmatpush1.msra.mxu0 0.0
        %4958 = vmatprep.subr.mxu0 0.0
        %4959 = vmatpush1.msra.mxu0 0.0
        %4960 = vmatprep.subr.mxu0 0.0
        %4961 = vmatpush1.msra.mxu0 0.0
        %4962 = vmatprep.subr.mxu0 0.0
        %4963 = vmatpush1.msra.mxu0 0.0
        %4964 = vmatprep.subr.mxu0 0.0
        %4965 = vmatpush1.msra.mxu0 0.0
        %4966 = vmatprep.subr.mxu0 0.0
        %4967 = vmatpush1.msra.mxu0 0.0
        %4968 = vmatprep.subr.mxu0 0.0
        %4969 = vmatpush1.msra.mxu0 0.0
        %4970 = vmatprep.subr.mxu0 0.0
        %4971 = vmatpush1.msra.mxu0 0.0
        %4972 = vmatprep.subr.mxu0 0.0
        %4973 = vmatpush1.msra.mxu0 0.0
        %4974 = vmatprep.subr.mxu0 0.0
        %4975 = vmatpush1.msra.mxu0 0.0
        %4976 = vmatprep.subr.mxu0 0.0
        %4977 = vmatpush1.msra.mxu0 0.0
        %4978 = vmatprep.subr.mxu0 0.0
        %4979 = vmatpush1.msra.mxu0 0.0
        %4980 = vmatprep.subr.mxu0 0.0
        %4981 = vmatpush1.msra.mxu0 0.0
        %4982 = vmatprep.subr.mxu0 0.0
        %4983 = vmatpush1.msra.mxu0 0.0
        %4984 = vmatprep.subr.mxu0 0.0
        %4985 = vmatpush1.msra.mxu0 0.0
        %4986 = vmatprep.subr.mxu0 0.0
        %4987 = vmatpush1.msra.mxu0 0.0
        %4988 = vmatprep.subr.mxu0 0.0
        %4989 = vmatpush1.msra.mxu0 0.0
        %4990 = vmatprep.subr.mxu0 0.0
        %4991 = vmatpush1.msra.mxu0 0.0
        %4992 = vmatprep.subr.mxu0 0.0
        %4993 = vmatpush1.msra.mxu0 0.0
        %4994 = vmatprep.subr.mxu0 0.0
        %4995 = vmatpush1.msra.mxu0 0.0
        %4996 = vmatprep.subr.mxu0 0.0
        %4997 = vmatpush1.msra.mxu0 0.0
        %4998 = vmatprep.subr.mxu0 0.0
        %4999 = vmatpush1.msra.mxu0 0.0
        %5000 = vmatprep.subr.mxu0 0.0
        %5001 = vmatpush1.msra.mxu0 0.0
        %5002 = vmatprep.subr.mxu0 0.0
        %5003 = vmatpush1.msra.mxu0 0.0
        %5004 = vmatprep.subr.mxu0 0.0
        %5005 = vmatpush1.msra.mxu0 0.0
        %5006 = vmatprep.mubr.f32.mxu0 0.0
        %5007 = vmatmul.mubr.f32.gmra.mrb[0].mxu0 %v4937
        %v5008 = vpop.f32.mrb[0].mxu0
        %v5009 = vadd.f32 0.0, %v5008
        %v5010 = vpop.f32.mrb[0].mxu0
        %v5011 = vadd.f32 0.0, %v5010
        %5012 = vmatprep.mubr.f32.mxu0 0.0
        %5013 = vmatmul.mubr.f32.gmra.mrb[0].mxu0 %v4940
        %v5014 = vpop.f32.mrb[0].mxu0
        %v5015 = vadd.f32 0.0, %v5014
        %v5016 = vpop.f32.mrb[0].mxu0
        %v5017 = vadd.f32 0.0, %v5016
        %5018 = vdwg.mxu0
        %5019 = vmatprep.subr.mxu0 0.0
        %5020 = vmatpush1.msra.mxu0 %v2181
        %5021 = vmatprep.subr.mxu0 0.0
        %5022 = vmatpush1.msra.mxu0 %v2184
        %5023 = vmatprep.subr.mxu0 0.0
        %5024 = vmatpush1.msra.mxu0 %v2187
        %5025 = vmatprep.subr.mxu0 0.0
        %5026 = vmatpush1.msra.mxu0 %v2190
        %5027 = vmatprep.subr.mxu0 0.0
        %5028 = vmatpush1.msra.mxu0 0.0
        %5029 = vmatprep.subr.mxu0 0.0
        %5030 = vmatpush1.msra.mxu0 0.0
        %5031 = vmatprep.subr.mxu0 0.0
        %5032 = vmatpush1.msra.mxu0 0.0
        %5033 = vmatprep.subr.mxu0 0.0
        %5034 = vmatpush1.msra.mxu0 0.0
        %5035 = vmatprep.subr.mxu0 0.0
        %5036 = vmatpush1.msra.mxu0 0.0
        %5037 = vmatprep.subr.mxu0 0.0
        %5038 = vmatpush1.msra.mxu0 0.0
        %5039 = vmatprep.subr.mxu0 0.0
        %5040 = vmatpush1.msra.mxu0 0.0
        %5041 = vmatprep.subr.mxu0 0.0
        %5042 = vmatpush1.msra.mxu0 0.0
        %5043 = vmatprep.subr.mxu0 0.0
        %5044 = vmatpush1.msra.mxu0 0.0
        %5045 = vmatprep.subr.mxu0 0.0
        %5046 = vmatpush1.msra.mxu0 0.0
        %5047 = vmatprep.subr.mxu0 0.0
        %5048 = vmatpush1.msra.mxu0 0.0
        %5049 = vmatprep.subr.mxu0 0.0
        %5050 = vmatpush1.msra.mxu0 0.0
        %5051 = vmatprep.subr.mxu0 0.0
        %5052 = vmatpush1.msra.mxu0 0.0
        %5053 = vmatprep.subr.mxu0 0.0
        %5054 = vmatpush1.msra.mxu0 0.0
        %5055 = vmatprep.subr.mxu0 0.0
        %5056 = vmatpush1.msra.mxu0 0.0
        %5057 = vmatprep.subr.mxu0 0.0
        %5058 = vmatpush1.msra.mxu0 0.0
        %5059 = vmatprep.subr.mxu0 0.0
        %5060 = vmatpush1.msra.mxu0 0.0
        %5061 = vmatprep.subr.mxu0 0.0
        %5062 = vmatpush1.msra.mxu0 0.0
        %5063 = vmatprep.subr.mxu0 0.0
        %5064 = vmatpush1.msra.mxu0 0.0
        %5065 = vmatprep.subr.mxu0 0.0
        %5066 = vmatpush1.msra.mxu0 0.0
        %5067 = vmatprep.subr.mxu0 0.0
        %5068 = vmatpush1.msra.mxu0 0.0
        %5069 = vmatprep.subr.mxu0 0.0
        %5070 = vmatpush1.msra.mxu0 0.0
        %5071 = vmatprep.subr.mxu0 0.0
        %5072 = vmatpush1.msra.mxu0 0.0
        %5073 = vmatprep.subr.mxu0 0.0
        %5074 = vmatpush1.msra.mxu0 0.0
        %5075 = vmatprep.subr.mxu0 0.0
        %5076 = vmatpush1.msra.mxu0 0.0
        %5077 = vmatprep.subr.mxu0 0.0
        %5078 = vmatpush1.msra.mxu0 0.0
        %5079 = vmatprep.subr.mxu0 0.0
        %5080 = vmatpush1.msra.mxu0 0.0
        %5081 = vmatprep.subr.mxu0 0.0
        %5082 = vmatpush1.msra.mxu0 0.0
        %5083 = vmatprep.mubr.f32.mxu0 0.0
        %5084 = vmatmul.mubr.f32.gmra.mrb[0].mxu0 %v4937
        %v5085 = vpop.f32.mrb[0].mxu0
        %v5086 = vadd.f32 0.0, %v5085
        %v5087 = vpop.f32.mrb[0].mxu0
        %5088 = vmatprep.mubr.f32.mxu0 0.0
        %5089 = vmatmul.mubr.f32.gmra.mrb[0].mxu0 %v4940
        %v5090 = vpop.f32.mrb[0].mxu0
        %v5091 = vadd.f32 0.0, %v5090
        %v5092 = vpop.f32.mrb[0].mxu0
        %5093 = vdwg.mxu0
        %v5094 = vmul.f32 %v4699, %v1113
        %v5095 = vmul.f32 %v4701, %v1114
        %v5096 = vmul.f32 %v4776, %v1115
        %v5097 = vmul.f32 %v4705, %v1116
        %v5098 = vmul.f32 %v4707, %v1117
        %v5099 = vmul.f32 %v4781, %v1118
        %v5100 = vmul.f32 %v5094, %v5009
        %v5101 = vmul.f32 %v5095, %v5011
        %v5102 = vmul.f32 %v5096, %v5086
        %v5103 = vmul.f32 %v5097, %v5015
        %v5104 = vmul.f32 %v5098, %v5017
        %v5105 = vmul.f32 %v5099, %v5091
        %v5106 = vmul.f32 %v4851, %v4349
        %v5107 = vmul.f32 %v4853, %v4351
        %v5108 = vmul.f32 %v4928, %v4426
        %v5109 = vmul.f32 %v4857, %v4355
        %v5110 = vmul.f32 %v4859, %v4357
        %v5111 = vmul.f32 %v4933, %v4431
        %v5112 = vadd.f32 %v5100, %v5106
        %v5113 = vadd.f32 %v5101, %v5107
        %v5114 = vadd.f32 %v5102, %v5108
        %v5115 = vadd.f32 %v5103, %v5109
        %v5116 = vadd.f32 %v5104, %v5110
        %v5117 = vadd.f32 %v5105, %v5111
        %5118 = vmatprep.subr.mxu0 %v5113
        %5119 = vmatpush1.msra.mxu0 %v5112
        %5120 = vmatprep.subr.mxu0 %v5116
        %5121 = vmatpush1.msra.mxu0 %v5115
        %5122 = vmatprep.subr.mxu0 0.0
        %5123 = vmatpush1.msra.mxu0 0.0
        %5124 = vmatprep.subr.mxu0 0.0
        %5125 = vmatpush1.msra.mxu0 0.0
        %5126 = vmatprep.subr.mxu0 0.0
        %5127 = vmatpush1.msra.mxu0 0.0
        %5128 = vmatprep.subr.mxu0 0.0
        %5129 = vmatpush1.msra.mxu0 0.0
        %5130 = vmatprep.subr.mxu0 0.0
        %5131 = vmatpush1.msra.mxu0 0.0
        %5132 = vmatprep.subr.mxu0 0.0
        %5133 = vmatpush1.msra.mxu0 0.0
        %5134 = vmatprep.subr.mxu0 0.0
        %5135 = vmatpush1.msra.mxu0 0.0
        %5136 = vmatprep.subr.mxu0 0.0
        %5137 = vmatpush1.msra.mxu0 0.0
        %5138 = vmatprep.subr.mxu0 0.0
        %5139 = vmatpush1.msra.mxu0 0.0
        %5140 = vmatprep.subr.mxu0 0.0
        %5141 = vmatpush1.msra.mxu0 0.0
        %5142 = vmatprep.subr.mxu0 0.0
        %5143 = vmatpush1.msra.mxu0 0.0
        %5144 = vmatprep.subr.mxu0 0.0
        %5145 = vmatpush1.msra.mxu0 0.0
        %5146 = vmatprep.subr.mxu0 0.0
        %5147 = vmatpush1.msra.mxu0 0.0
        %5148 = vmatprep.subr.mxu0 0.0
        %5149 = vmatpush1.msra.mxu0 0.0
        %5150 = vmatprep.subr.mxu0 0.0
        %5151 = vmatpush1.msra.mxu0 0.0
        %5152 = vmatprep.subr.mxu0 0.0
        %5153 = vmatpush1.msra.mxu0 0.0
        %5154 = vmatprep.subr.mxu0 0.0
        %5155 = vmatpush1.msra.mxu0 0.0
        %5156 = vmatprep.subr.mxu0 0.0
        %5157 = vmatpush1.msra.mxu0 0.0
        %5158 = vmatprep.subr.mxu0 0.0
        %5159 = vmatpush1.msra.mxu0 0.0
        %5160 = vmatprep.subr.mxu0 0.0
        %5161 = vmatpush1.msra.mxu0 0.0
        %5162 = vmatprep.subr.mxu0 0.0
        %5163 = vmatpush1.msra.mxu0 0.0
        %5164 = vmatprep.subr.mxu0 0.0
        %5165 = vmatpush1.msra.mxu0 0.0
        %5166 = vmatprep.subr.mxu0 0.0
        %5167 = vmatpush1.msra.mxu0 0.0
        %5168 = vmatprep.subr.mxu0 0.0
        %5169 = vmatpush1.msra.mxu0 0.0
        %5170 = vmatprep.subr.mxu0 0.0
        %5171 = vmatpush1.msra.mxu0 0.0
        %5172 = vmatprep.subr.mxu0 0.0
        %5173 = vmatpush1.msra.mxu0 0.0
        %5174 = vmatprep.subr.mxu0 0.0
        %5175 = vmatpush1.msra.mxu0 0.0
        %5176 = vmatprep.subr.mxu0 0.0
        %5177 = vmatpush1.msra.mxu0 0.0
        %5178 = vmatprep.subr.mxu0 0.0
        %5179 = vmatpush1.msra.mxu0 0.0
        %5180 = vmatprep.subr.mxu0 0.0
        %5181 = vmatpush1.msra.mxu0 0.0
        %5182 = vmatprep.mubr.f32.mxu0 0.0
        %5183 = vmatmul.mubr.f32.gmra.mrb[0].mxu0 %v2375
        %v5184 = vpop.f32.mrb[0].mxu0
        %v5185 = vadd.f32 0.0, %v5184
        %v5186 = vpop.f32.mrb[0].mxu0
        %v5187 = vadd.f32 0.0, %v5186
        %5188 = vdwg.mxu0
        %5189 = vmatprep.subr.mxu0 0.0
        %5190 = vmatpush1.msra.mxu0 %v5114
        %5191 = vmatprep.subr.mxu0 0.0
        %5192 = vmatpush1.msra.mxu0 %v5117
        %5193 = vmatprep.subr.mxu0 0.0
        %5194 = vmatpush1.msra.mxu0 0.0
        %5195 = vmatprep.subr.mxu0 0.0
        %5196 = vmatpush1.msra.mxu0 0.0
        %5197 = vmatprep.subr.mxu0 0.0
        %5198 = vmatpush1.msra.mxu0 0.0
        %5199 = vmatprep.subr.mxu0 0.0
        %5200 = vmatpush1.msra.mxu0 0.0
        %5201 = vmatprep.subr.mxu0 0.0
        %5202 = vmatpush1.msra.mxu0 0.0
        %5203 = vmatprep.subr.mxu0 0.0
        %5204 = vmatpush1.msra.mxu0 0.0
        %5205 = vmatprep.subr.mxu0 0.0
        %5206 = vmatpush1.msra.mxu0 0.0
        %5207 = vmatprep.subr.mxu0 0.0
        %5208 = vmatpush1.msra.mxu0 0.0
        %5209 = vmatprep.subr.mxu0 0.0
        %5210 = vmatpush1.msra.mxu0 0.0
        %5211 = vmatprep.subr.mxu0 0.0
        %5212 = vmatpush1.msra.mxu0 0.0
        %5213 = vmatprep.subr.mxu0 0.0
        %5214 = vmatpush1.msra.mxu0 0.0
        %5215 = vmatprep.subr.mxu0 0.0
        %5216 = vmatpush1.msra.mxu0 0.0
        %5217 = vmatprep.subr.mxu0 0.0
        %5218 = vmatpush1.msra.mxu0 0.0
        %5219 = vmatprep.subr.mxu0 0.0
        %5220 = vmatpush1.msra.mxu0 0.0
        %5221 = vmatprep.subr.mxu0 0.0
        %5222 = vmatpush1.msra.mxu0 0.0
        %5223 = vmatprep.subr.mxu0 0.0
        %5224 = vmatpush1.msra.mxu0 0.0
        %5225 = vmatprep.subr.mxu0 0.0
        %5226 = vmatpush1.msra.mxu0 0.0
        %5227 = vmatprep.subr.mxu0 0.0
        %5228 = vmatpush1.msra.mxu0 0.0
        %5229 = vmatprep.subr.mxu0 0.0
        %5230 = vmatpush1.msra.mxu0 0.0
        %5231 = vmatprep.subr.mxu0 0.0
        %5232 = vmatpush1.msra.mxu0 0.0
        %5233 = vmatprep.subr.mxu0 0.0
        %5234 = vmatpush1.msra.mxu0 0.0
        %5235 = vmatprep.subr.mxu0 0.0
        %5236 = vmatpush1.msra.mxu0 0.0
        %5237 = vmatprep.subr.mxu0 0.0
        %5238 = vmatpush1.msra.mxu0 0.0
        %5239 = vmatprep.subr.mxu0 0.0
        %5240 = vmatpush1.msra.mxu0 0.0
        %5241 = vmatprep.subr.mxu0 0.0
        %5242 = vmatpush1.msra.mxu0 0.0
        %5243 = vmatprep.subr.mxu0 0.0
        %5244 = vmatpush1.msra.mxu0 0.0
        %5245 = vmatprep.subr.mxu0 0.0
        %5246 = vmatpush1.msra.mxu0 0.0
        %5247 = vmatprep.subr.mxu0 0.0
        %5248 = vmatpush1.msra.mxu0 0.0
        %5249 = vmatprep.subr.mxu0 0.0
        %5250 = vmatpush1.msra.mxu0 0.0
        %5251 = vmatprep.subr.mxu0 0.0
        %5252 = vmatpush1.msra.mxu0 0.0
        %5253 = vmatprep.mubr.f32.mxu0 0.0
        %5254 = vmatmul.mubr.f32.gmra.mrb[0].mxu0 %v2375
        %v5255 = vpop.f32.mrb[0].mxu0
        %v5256 = vadd.f32 0.0, %v5255
        %v5257 = vpop.f32.mrb[0].mxu0
        %5258 = vdwg.mxu0
        %s5259 = scalar_lea.vmem [#allocation16], 1728
        %v5260 = vld [vmem:[%s5259] sm:$0xff]
        %v5261 = vld [vmem:[%s5259 + $0x8] sm:$0xff]
        %v5262 = vld [vmem:[%s5259 + $0x18] sm:$0xff]
        %v5263 = vld [vmem:[%s5259 + $0x20] sm:$0xff]
        %v5264 = vld [vmem:[%s5259 + $0x30] sm:$0xff]
        %v5265 = vld [vmem:[%s5259 + $0x38] sm:$0xff]
        %v5266 = vld [vmem:[%s5259 + $0x48] sm:$0xff]
        %v5267 = vld [vmem:[%s5259 + $0x50] sm:$0xff]
        %v5268 = vld [vmem:[%s5259 + $0x60] sm:$0xff]
        %v5269 = vld [vmem:[%s5259 + $0x68] sm:$0xff]
        %v5270 = vld [vmem:[%s5259 + $0x78] sm:$0xff]
        %v5271 = vld [vmem:[%s5259 + $0x80] sm:$0xff]
        %v5272 = vld [vmem:[%s5259 + $0x90] sm:$0xff]
        %v5273 = vld [vmem:[%s5259 + $0x98] sm:$0xff]
        %v5274 = vld [vmem:[%s5259 + $0xa8] sm:$0xff]
        %v5275 = vld [vmem:[%s5259 + $0xb0] sm:$0xff]
        %v5276 = vld [vmem:[%s5259 + $0xc0] sm:$0xff]
        %v5277 = vld [vmem:[%s5259 + $0xc8] sm:$0xff]
        %v5278 = vld [vmem:[%s5259 + $0xd8] sm:$0xff]
        %v5279 = vld [vmem:[%s5259 + $0xe0] sm:$0xff]
        %v5280 = vld [vmem:[%s5259 + $0xf0] sm:$0xff]
        %v5281 = vld [vmem:[%s5259 + $0xf8] sm:$0xff]
        %v5282 = vld [vmem:[%s5259 + $0x108] sm:$0xff]
        %v5283 = vld [vmem:[%s5259 + $0x110] sm:$0xff]
        %v5284 = vld [vmem:[%s5259 + $0x120] sm:$0xff]
        %v5285 = vld [vmem:[%s5259 + $0x128] sm:$0xff]
        %v5286 = vld [vmem:[%s5259 + $0x138] sm:$0xff]
        %v5287 = vld [vmem:[%s5259 + $0x140] sm:$0xff]
        %v5288 = vld [vmem:[%s5259 + $0x150] sm:$0xff]
        %v5289 = vld [vmem:[%s5259 + $0x158] sm:$0xff]
        %v5290 = vld [vmem:[%s5259 + $0x168] sm:$0xff]
        %v5291 = vld [vmem:[%s5259 + $0x170] sm:$0xff]
        %v5292 = vld [vmem:[%s5259 + $0x180] sm:$0xff]
        %v5293 = vld [vmem:[%s5259 + $0x188] sm:$0xff]
        %v5294 = vld [vmem:[%s5259 + $0x198] sm:$0xff]
        %v5295 = vld [vmem:[%s5259 + $0x1a0] sm:$0xff]
        %v5296 = vld [vmem:[%s5259 + $0x1b0] sm:$0xff]
        %v5297 = vld [vmem:[%s5259 + $0x1b8] sm:$0xff]
        %v5298 = vld [vmem:[%s5259 + $0x1c8] sm:$0xff]
        %v5299 = vld [vmem:[%s5259 + $0x1d0] sm:$0xff]
        %v5300 = vld [vmem:[%s5259 + $0x1e0] sm:$0xff]
        %v5301 = vld [vmem:[%s5259 + $0x1e8] sm:$0xff]
        %v5302 = vld [vmem:[%s5259 + $0x1f8] sm:$0xff]
        %v5303 = vld [vmem:[%s5259 + $0x200] sm:$0xff]
        %v5304 = vld [vmem:[%s5259 + $0x210] sm:$0xff]
        %v5305 = vld [vmem:[%s5259 + $0x218] sm:$0xff]
        %v5306 = vld [vmem:[%s5259 + $0x228] sm:$0xff]
        %v5307 = vld [vmem:[%s5259 + $0x230] sm:$0xff]
        %v5308 = vld [vmem:[%s5259 + $0x240] sm:$0xff]
        %v5309 = vld [vmem:[%s5259 + $0x248] sm:$0xff]
        %v5310 = vld [vmem:[%s5259 + $0x258] sm:$0xff]
        %v5311 = vld [vmem:[%s5259 + $0x260] sm:$0xff]
        %v5312 = vld [vmem:[%s5259 + $0x270] sm:$0xff]
        %v5313 = vld [vmem:[%s5259 + $0x278] sm:$0xff]
        %v5314 = vld [vmem:[%s5259 + $0x288] sm:$0xff]
        %v5315 = vld [vmem:[%s5259 + $0x290] sm:$0xff]
        %v5316 = vld [vmem:[%s5259 + $0x2a0] sm:$0xff]
        %v5317 = vld [vmem:[%s5259 + $0x2a8] sm:$0xff]
        %v5318 = vld [vmem:[%s5259 + $0x2b8] sm:$0xff]
        %v5319 = vld [vmem:[%s5259 + $0x2c0] sm:$0xff]
        %v5320 = vld [vmem:[%s5259 + $0x2d0] sm:$0xff]
        %v5321 = vld [vmem:[%s5259 + $0x2d8] sm:$0xff]
        %v5322 = vld [vmem:[%s5259 + $0x2e8] sm:$0xff]
        %v5323 = vld [vmem:[%s5259 + $0x2f0] sm:$0xff]
        %v5324 = vld [vmem:[%s5259 + $0x300] sm:$0xff]
        %v5325 = vld [vmem:[%s5259 + $0x308] sm:$0xff]
        %v5326 = vld [vmem:[%s5259 + $0x318] sm:$0xff]
        %v5327 = vld [vmem:[%s5259 + $0x320] sm:$0xff]
        %v5328 = vld [vmem:[%s5259 + $0x330] sm:$0xff]
        %v5329 = vld [vmem:[%s5259 + $0x338] sm:$0xff]
        %v5330 = vld [vmem:[%s5259 + $0x348] sm:$0xff]
        %v5331 = vld [vmem:[%s5259 + $0x350] sm:$0xff]
        %v5333 = vsel %vm1665, %v5256, 0
        %5335 = vmatprep.subr.mxu0 %v5261
        %5336 = vmatpush1.msra.mxu0 %v5260
        %5337 = vmatprep.subr.mxu0 %v5263
        %5338 = vmatpush1.msra.mxu0 %v5262
        %5339 = vmatprep.subr.mxu0 %v5265
        %5340 = vmatpush1.msra.mxu0 %v5264
        %5341 = vmatprep.subr.mxu0 %v5267
        %5342 = vmatpush1.msra.mxu0 %v5266
        %5343 = vmatprep.subr.mxu0 %v5269
        %5344 = vmatpush1.msra.mxu0 %v5268
        %5345 = vmatprep.subr.mxu0 %v5271
        %5346 = vmatpush1.msra.mxu0 %v5270
        %5347 = vmatprep.subr.mxu0 %v5273
        %5348 = vmatpush1.msra.mxu0 %v5272
        %5349 = vmatprep.subr.mxu0 %v5275
        %5350 = vmatpush1.msra.mxu0 %v5274
        %5351 = vmatprep.subr.mxu0 %v5277
        %5352 = vmatpush1.msra.mxu0 %v5276
        %5353 = vmatprep.subr.mxu0 %v5279
        %5354 = vmatpush1.msra.mxu0 %v5278
        %5355 = vmatprep.subr.mxu0 %v5281
        %5356 = vmatpush1.msra.mxu0 %v5280
        %5357 = vmatprep.subr.mxu0 %v5283
        %5358 = vmatpush1.msra.mxu0 %v5282
        %5359 = vmatprep.subr.mxu0 %v5285
        %5360 = vmatpush1.msra.mxu0 %v5284
        %5361 = vmatprep.subr.mxu0 %v5287
        %5362 = vmatpush1.msra.mxu0 %v5286
        %5363 = vmatprep.subr.mxu0 %v5289
        %5364 = vmatpush1.msra.mxu0 %v5288
        %5365 = vmatprep.subr.mxu0 %v5291
        %5366 = vmatpush1.msra.mxu0 %v5290
        %5367 = vmatprep.subr.mxu0 %v5293
        %5368 = vmatpush1.msra.mxu0 %v5292
        %5369 = vmatprep.subr.mxu0 %v5295
        %5370 = vmatpush1.msra.mxu0 %v5294
        %5371 = vmatprep.subr.mxu0 %v5297
        %5372 = vmatpush1.msra.mxu0 %v5296
        %5373 = vmatprep.subr.mxu0 %v5299
        %5374 = vmatpush1.msra.mxu0 %v5298
        %5375 = vmatprep.subr.mxu0 %v5301
        %5376 = vmatpush1.msra.mxu0 %v5300
        %5377 = vmatprep.subr.mxu0 %v5303
        %5378 = vmatpush1.msra.mxu0 %v5302
        %5379 = vmatprep.subr.mxu0 %v5305
        %5380 = vmatpush1.msra.mxu0 %v5304
        %5381 = vmatprep.subr.mxu0 %v5307
        %5382 = vmatpush1.msra.mxu0 %v5306
        %5383 = vmatprep.subr.mxu0 %v5309
        %5384 = vmatpush1.msra.mxu0 %v5308
        %5385 = vmatprep.subr.mxu0 %v5311
        %5386 = vmatpush1.msra.mxu0 %v5310
        %5387 = vmatprep.subr.mxu0 %v5313
        %5388 = vmatpush1.msra.mxu0 %v5312
        %5389 = vmatprep.subr.mxu0 %v5315
        %5390 = vmatpush1.msra.mxu0 %v5314
        %5391 = vmatprep.subr.mxu0 %v5317
        %5392 = vmatpush1.msra.mxu0 %v5316
        %5393 = vmatprep.subr.mxu0 %v5319
        %5394 = vmatpush1.msra.mxu0 %v5318
        %5395 = vmatprep.subr.mxu0 %v5321
        %5396 = vmatpush1.msra.mxu0 %v5320
        %5397 = vmatprep.subr.mxu0 %v5323
        %5398 = vmatpush1.msra.mxu0 %v5322
        %5399 = vmatprep.mubr.f32.mxu0 %v5187
        %5400 = vmatmul.mubr.f32.gmra.mrb[0].mxu0 %v5185
        %v5401 = vpop.f32.mrb[0].mxu0
        %v5402 = vadd.f32 %v4138, %v5401
        %v5403 = vpop.f32.mrb[0].mxu0
        %5404 = vdwg.mxu0
        %5405 = vmatprep.subr.mxu0 %v5325
        %5406 = vmatpush1.msra.mxu0 %v5324
        %5407 = vmatprep.subr.mxu0 %v5327
        %5408 = vmatpush1.msra.mxu0 %v5326
        %5409 = vmatprep.subr.mxu0 %v5329
        %5410 = vmatpush1.msra.mxu0 %v5328
        %5411 = vmatprep.subr.mxu0 %v5331
        %5412 = vmatpush1.msra.mxu0 %v5330
        %5413 = vmatprep.subr.mxu0 0.0
        %5414 = vmatpush1.msra.mxu0 0.0
        %5415 = vmatprep.subr.mxu0 0.0
        %5416 = vmatpush1.msra.mxu0 0.0
        %5417 = vmatprep.subr.mxu0 0.0
        %5418 = vmatpush1.msra.mxu0 0.0
        %5419 = vmatprep.subr.mxu0 0.0
        %5420 = vmatpush1.msra.mxu0 0.0
        %5421 = vmatprep.subr.mxu0 0.0
        %5422 = vmatpush1.msra.mxu0 0.0
        %5423 = vmatprep.subr.mxu0 0.0
        %5424 = vmatpush1.msra.mxu0 0.0
        %5425 = vmatprep.subr.mxu0 0.0
        %5426 = vmatpush1.msra.mxu0 0.0
        %5427 = vmatprep.subr.mxu0 0.0
        %5428 = vmatpush1.msra.mxu0 0.0
        %5429 = vmatprep.subr.mxu0 0.0
        %5430 = vmatpush1.msra.mxu0 0.0
        %5431 = vmatprep.subr.mxu0 0.0
        %5432 = vmatpush1.msra.mxu0 0.0
        %5433 = vmatprep.subr.mxu0 0.0
        %5434 = vmatpush1.msra.mxu0 0.0
        %5435 = vmatprep.subr.mxu0 0.0
        %5436 = vmatpush1.msra.mxu0 0.0
        %5437 = vmatprep.subr.mxu0 0.0
        %5438 = vmatpush1.msra.mxu0 0.0
        %5439 = vmatprep.subr.mxu0 0.0
        %5440 = vmatpush1.msra.mxu0 0.0
        %5441 = vmatprep.subr.mxu0 0.0
        %5442 = vmatpush1.msra.mxu0 0.0
        %5443 = vmatprep.subr.mxu0 0.0
        %5444 = vmatpush1.msra.mxu0 0.0
        %5445 = vmatprep.subr.mxu0 0.0
        %5446 = vmatpush1.msra.mxu0 0.0
        %5447 = vmatprep.subr.mxu0 0.0
        %5448 = vmatpush1.msra.mxu0 0.0
        %5449 = vmatprep.subr.mxu0 0.0
        %5450 = vmatpush1.msra.mxu0 0.0
        %5451 = vmatprep.subr.mxu0 0.0
        %5452 = vmatpush1.msra.mxu0 0.0
        %5453 = vmatprep.subr.mxu0 0.0
        %5454 = vmatpush1.msra.mxu0 0.0
        %5455 = vmatprep.subr.mxu0 0.0
        %5456 = vmatpush1.msra.mxu0 0.0
        %5457 = vmatprep.subr.mxu0 0.0
        %5458 = vmatpush1.msra.mxu0 0.0
        %5459 = vmatprep.subr.mxu0 0.0
        %5460 = vmatpush1.msra.mxu0 0.0
        %5461 = vmatprep.subr.mxu0 0.0
        %5462 = vmatpush1.msra.mxu0 0.0
        %5463 = vmatprep.subr.mxu0 0.0
        %5464 = vmatpush1.msra.mxu0 0.0
        %5465 = vmatprep.subr.mxu0 0.0
        %5466 = vmatpush1.msra.mxu0 0.0
        %5467 = vmatprep.subr.mxu0 0.0
        %5468 = vmatpush1.msra.mxu0 0.0
        %5469 = vmatprep.mubr.f32.mxu0 0.0
        %5470 = vmatmul.mubr.f32.gmra.mrb[0].mxu0 %v5333
        %v5471 = vpop.f32.mrb[0].mxu0
        %v5472 = vadd.f32 %v5402, %v5471
        %v5473 = vpop.f32.mrb[0].mxu0
        %5474 = vdwg.mxu0
        %5475 = vst.msk [vmem:[%s548] sm:$0xff] %vm1665, %v5472
        %s5476 = sand.u32 %s301, 1
        %s5477 = scalar_lea.sflag [#allocation4], %s5476
        %s5478 = sand.u32 %s301, 1
        %s5479 = smul.addr %s5478, 8
        %s5480 = scalar_lea.vmem [#allocation17], %s5479
        // Predicated region
        $region105: #{mace_forward.1} parent=67 // pred_check
          %p5481 = pneg %p311
        $region106: #{mace_forward.1} parent=67 // pred_check_branch
          %5483 = sbr.rel (%p5481) target = $region108
        $region107: #{mace_forward.1} parent=67 // pred_region
          %s5485 = ssub.s32 128, 128
          %5486 = vsyncadd %s5477, %s5485
          %s5487 = smul.addr %s31, 128
          %s5488 = scalar_lea.hbm %s12, %s5487
          %s5490 = sshll.u32 %s5480, 4
          %s5491 = int_to_ptr.vmem [resolvable:$true] %s5490
          %5493 = dma.vmem_to_hbm [thread:$0]  %s5491, 128, %s5488, %s5477
        $region108: #{mace_forward.1} parent=67 // pred_fallthru
          _
      $region68: #{mace_forward.1} parent=5 // pred_fallthru
        _
      %p5494 = scmp.le.s32.totalorder 2, %s26
      // Predicated region
      $region109: #{mace_forward.1} parent=5 // pred_check
        %p5495 = pneg %p5494
      $region110: #{mace_forward.1} parent=5 // pred_check_branch
        %5497 = sbr.rel (%p5495) target = $region112
      $region111: #{mace_forward.1} parent=5 // pred_region
        %s5498 = ssub.s32 %s26, 2
        // Predicated region
        $region113: #{mace_forward.1} parent=111 // pred_check
          %p5499 = pneg %p317
        $region114: #{mace_forward.1} parent=111 // pred_check_branch
          %5501 = sbr.rel (%p5499) target = $region116
        $region115: #{mace_forward.1} parent=111 // pred_region
          %s5502 = sand.u32 %s302, 1
          %s5503 = scalar_lea.sflag [#allocation4], %s5502
          %s5504 = sand.u32 %s302, 1
          %s5505 = smul.addr %s5504, 8
          %s5506 = scalar_lea.vmem [#allocation17], %s5505
          %5507 = dma.done %s5503, 128
        $region116: #{mace_forward.1} parent=111 // pred_fallthru
          _
      $region112: #{mace_forward.1} parent=5 // pred_fallthru
        _
    $region6: #{mace_forward.1} parent=1 // loop_footer
      %s30 = sadd.s32 1, %s26
    $region7: #{mace_forward.1} parent=1 // loop_footer_branch
      %25 = sbr.rel target = $region3
    $region8: #{mace_forward.1} parent=1 // loop_exit
      _
    %5508 = vsyncpa [#allocation3], 1
    %s5509 = scalar_lea.sflag [#allocation3], 1
    %5510 = vsyncpa %s5509, 1
    %5511 = vsyncpa [#allocation6], 1
    %5512 = vsyncpa [#allocation9], 1
    %5513 = vsyncpa [#allocation12], 1
    %5514 = vsyncpa [#allocation15], 1
    %5515 = vsyncpa [#allocation4], 1
    %s5516 = scalar_lea.sflag [#allocation4], 1
    %5517 = vsyncpa %s5516, 1

</llo_original>
